<compile_context>
chip_gen: v7x
topology: tpu7x:2x2x1
jax: 0.10.0
libtpu: 0.0.40
codegen_flags: <defaults>
</compile_context>

<pallas_src>
import functools

import jax
import jax.numpy as jnp
from jax import lax
from jax.experimental import pallas as pl
from jax.experimental.pallas import tpu as pltpu


def autopad(k, p=None):
    if p is None:
        p = k // 2 if isinstance(k, int) else [x // 2 for x in k]
    return p


def _round_up(x, m):
    return ((x + m - 1) // m) * m


# ----------------------------- Pallas kernel --------------------------------
def _conv_bn_hswish_kernel(x_ref, w_ref, b_ref, o_ref, acc_ref, *, k, s, wp, mq):
    """Fused conv + BN bias + Hardswish for one batch element.

    x_ref:   (R, c1p)        bf16  zero-padded image, rows = flattened (Hp*Wp) + zero tail
    w_ref:   (k*k, c1p, c2p) bf16  conv weight with BN scale folded in, one (c1p,c2p) per tap
    b_ref:   (1, c2p)        f32   folded BN bias
    o_ref:   (mq, c2p)             output on the padded-width grid (Ho, Wp) flattened
    acc_ref: (mq, c2p)       f32   VMEM accumulator scratch
    """
    acc_ref[...] = jnp.zeros_like(acc_ref)
    # k*k shifted flat matmuls: output flat index m = i*Wp + j reads input row s*m + di*Wp + dj.
    for di in range(k):
        for dj in range(k):
            off = di * wp + dj
            if s == 1:
                a = x_ref[pl.ds(off, mq), :]
            else:
                a = x_ref[pl.ds(off, mq, s), :]
            acc_ref[...] += jnp.dot(a, w_ref[di * k + dj],
                                    preferred_element_type=jnp.float32)
    y = acc_ref[...] + b_ref[...]
    # Hardswish: y * relu6(y + 3) / 6
    o_ref[...] = (y * jnp.clip(y + 3.0, 0.0, 6.0) * (1.0 / 6.0)).astype(o_ref.dtype)


# ----------------------------- wrapper ---------------------------------------
def conv_bn_hswish_pallas(x_nchw, weight, gamma, beta, running_mean, running_var,
                          *, k, s, p=None, eps=1e-5, out_dtype=jnp.float32):
    """Conv2d(c1->c2, k, s, autopad, groups=1, bias=False) -> BatchNorm2d(eval) -> Hardswish."""
    # TODO(synk): groups > 1 (grouped / depthwise conv) not implemented; module default g=1.
    p = autopad(k, p)
    n, c1, h, w = x_nchw.shape
    c2 = weight.shape[0]
    assert weight.shape == (c2, c1, k, k), "only groups=1 supported"

    ho = (h + 2 * p - k) // s + 1
    wo = (w + 2 * p - k) // s + 1
    hp, wp = h + 2 * p, w + 2 * p

    c1p = _round_up(c1, 8)          # contraction dim padding (zero rows/channels)
    c2p = _round_up(c2, 128)        # lane-dense output channels
    mq = _round_up(ho * wp, 8)      # output rows on the padded-width grid (Ho x Wp)

    # rows of the flattened input the kernel may touch (incl. garbage wrap columns)
    r_need = s * (mq - 1) + (k - 1) * (wp + 1) + 1
    r_pad = _round_up(max(hp * wp, r_need), 8)

    # --- glue: NCHW -> NHWC, spatial + channel zero pad, flatten rows, bf16 ----
    x_nhwc = jnp.transpose(x_nchw, (0, 2, 3, 1)).astype(jnp.float32)
    xq = jnp.pad(x_nhwc, ((0, 0), (p, p), (p, p), (0, c1p - c1)))
    x_flat = xq.reshape(n, hp * wp, c1p)
    x_flat = jnp.pad(x_flat, ((0, 0), (0, r_pad - hp * wp), (0, 0)))
    x_flat = x_flat.astype(jnp.bfloat16)

    # --- fold BatchNorm (inference / running stats) into weight scale + bias ---
    scale = gamma.astype(jnp.float32) / jnp.sqrt(running_var.astype(jnp.float32) + eps)
    bias = beta.astype(jnp.float32) - running_mean.astype(jnp.float32) * scale
    w_f = weight.astype(jnp.float32) * scale[:, None, None, None]      # (c2, c1, k, k)
    w_khwio = jnp.transpose(w_f, (2, 3, 1, 0))                          # (k, k, c1, c2)
    w_khwio = jnp.pad(w_khwio, ((0, 0), (0, 0), (0, c1p - c1), (0, c2p - c2)))
    w_taps = w_khwio.reshape(k * k, c1p, c2p).astype(jnp.bfloat16)
    bias_p = jnp.pad(bias, (0, c2p - c2)).reshape(1, c2p)

    kern = functools.partial(_conv_bn_hswish_kernel, k=k, s=s, wp=wp, mq=mq)

    flops = 2 * n * ho * wo * k * k * c1 * c2
    bytes_accessed = (x_flat.size * 2 + w_taps.size * 2 + bias_p.size * 4
                      + n * mq * c2p * jnp.dtype(out_dtype).itemsize)

    out = pl.pallas_call(
        kern,
        out_shape=jax.ShapeDtypeStruct((n, mq, c2p), out_dtype),
        grid_spec=pltpu.PrefetchScalarGridSpec(
            num_scalar_prefetch=0,
            grid=(n,),
            in_specs=[
                pl.BlockSpec((None, r_pad, c1p), lambda b: (b, 0, 0)),   # per-batch image slab
                pl.BlockSpec((k * k, c1p, c2p), lambda b: (0, 0, 0)),    # resident folded weight
                pl.BlockSpec((1, c2p), lambda b: (0, 0)),                # folded BN bias
            ],
            out_specs=pl.BlockSpec((None, mq, c2p), lambda b: (b, 0, 0)),
            scratch_shapes=[pltpu.VMEM((mq, c2p), jnp.float32)],
        ),
        compiler_params=pltpu.CompilerParams(dimension_semantics=("parallel",)),
        cost_estimate=pl.CostEstimate(flops=int(flops), transcendentals=0,
                                      bytes_accessed=int(bytes_accessed)),
    )(x_flat, w_taps, bias_p)

    # (N, mq, c2p) -> (N, Ho, Wp, c2) -> drop garbage width columns -> NCHW
    out = out[:, :ho * wp, :c2].reshape(n, ho, wp, c2)[:, :, :wo, :]
    return jnp.transpose(out, (0, 3, 1, 2)).astype(jnp.float32)


# ----------------------------- reference (pure JAX) --------------------------
def conv_bn_hswish_ref(x, weight, gamma, beta, mean, var, *, k, s, p, eps=1e-5,
                       quantize_bf16=False):
    del k  # implied by weight shape
    scale = gamma / jnp.sqrt(var + eps)
    bias = beta - mean * scale
    w_f = weight.astype(jnp.float32) * scale[:, None, None, None]
    xr = x.astype(jnp.float32)
    if quantize_bf16:   # emulate bf16 MXU operands (same quantization as the kernel)
        w_f = w_f.astype(jnp.bfloat16).astype(jnp.float32)
        xr = xr.astype(jnp.bfloat16).astype(jnp.float32)
    y = lax.conv_general_dilated(
        xr, w_f, window_strides=(s, s), padding=[(p, p), (p, p)],
        dimension_numbers=("NCHW", "OIHW", "NCHW"),
        precision=lax.Precision.HIGHEST)
    y = y + bias[None, :, None, None]
    return y * jnp.clip(y + 3.0, 0.0, 6.0) / 6.0


if __name__ == "__main__":
    key = jax.random.PRNGKey(0)
    k1, k2, k3, k4, k5 = jax.random.split(key, 5)

    # Conv(c1=4, c2=8, k=3, s=1)  -> autopad(3) = 1
    N, C1, H, W = 2, 4, 16, 16
    C2, K, S = 8, 3, 1
    P = autopad(K)

    x = jax.random.normal(k1, (N, C1, H, W), dtype=jnp.float32)
    weight = 0.1 * jax.random.normal(k2, (C2, C1, K, K), dtype=jnp.float32)
    gamma = 1.0 + 0.1 * jax.random.normal(k3, (C2,), dtype=jnp.float32)
    beta = 0.1 * jax.random.normal(k4, (C2,), dtype=jnp.float32)
    running_mean = 0.1 * jax.random.normal(k5, (C2,), dtype=jnp.float32)
    running_var = jnp.ones((C2,), dtype=jnp.float32)

    out = conv_bn_hswish_pallas(x, weight, gamma, beta, running_mean, running_var,
                                k=K, s=S, p=P)
    out = jax.block_until_ready(out)
    assert out.shape == (N, C2, H, W), out.shape

    # strict check: reference with the same bf16 operand quantization (only summation order differs)
    ref_q = conv_bn_hswish_ref(x, weight, gamma, beta, running_mean, running_var,
                               k=K, s=S, p=P, quantize_bf16=True)
    err_q = float(jnp.max(jnp.abs(out - ref_q)))
    assert err_q < 2e-3, err_q

    # sanity check vs. the full-f32 reference (bounded by bf16 operand quantization error)
    ref_f = conv_bn_hswish_ref(x, weight, gamma, beta, running_mean, running_var,
                               k=K, s=S, p=P, quantize_bf16=False)
    err_f = float(jnp.max(jnp.abs(out - ref_f)))
    assert err_f < 1e-1, err_f

    print("KERNEL_OK")
</pallas_src>

<mosaic_0001>
module attributes {stable_mosaic.version = 11 : i64} {
  func.func @_conv_bn_hswish_kernel(%arg0: i32, %arg1: memref<1x328x8xbf16, #tpu.memory_space<vmem>>, %arg2: memref<9x8x128xbf16, #tpu.memory_space<vmem>>, %arg3: memref<1x128xf32, #tpu.memory_space<vmem>>, %arg4: memref<1x288x128xf32, #tpu.memory_space<vmem>>, %arg5: memref<288x128xf32, #tpu.memory_space<vmem>>) attributes {dimension_semantics = [#tpu.dimension_semantics<parallel>], iteration_bounds = array<i64: 2>, scalar_prefetch = 0 : i64, scratch_operands = 1 : i64, tpu.core_type = #tpu.core_type<tc>, window_params = [{transform_indices = @transform_0, window_bounds = array<i64: 1, 328, 8>}, {pipeline_mode = #tpu.pipeline_mode<synchronous>, transform_indices = @transform_1, window_bounds = array<i64: 9, 8, 128>}, {pipeline_mode = #tpu.pipeline_mode<synchronous>, transform_indices = @transform_2, window_bounds = array<i64: 1, 128>}, {transform_indices = @transform_3, window_bounds = array<i64: 1, 288, 128>}]} {
    %cst = arith.constant 0.000000e+00 : f32
    %0 = vector.broadcast %cst : f32 to vector<288x128xf32>
    %c0 = arith.constant 0 : index
    %c0_0 = arith.constant 0 : index
    %1 = vector.load %arg5[%c0, %c0_0] : memref<288x128xf32, #tpu.memory_space<vmem>>, vector<288x128xf32>
    tpu.vector_store %arg5[%c0, %c0_0], %0 {strides = array<i32>} : memref<288x128xf32, #tpu.memory_space<vmem>>, vector<288x128xf32>,
    %c0_1 = arith.constant 0 : index
    %c0_2 = arith.constant 0 : index
    %c0_3 = arith.constant 0 : index
    %2 = vector.load %arg1[%c0_1, %c0_2, %c0_3] : memref<1x328x8xbf16, #tpu.memory_space<vmem>>, vector<1x288x8xbf16>
    %3 = vector.shape_cast %2 : vector<1x288x8xbf16> to vector<288x8xbf16>
    %c0_4 = arith.constant 0 : index
    %c0_5 = arith.constant 0 : index
    %4 = vector.load %arg5[%c0_4, %c0_5] : memref<288x128xf32, #tpu.memory_space<vmem>>, vector<288x128xf32>
    %c0_6 = arith.constant 0 : index
    %c0_7 = arith.constant 0 : index
    %c0_8 = arith.constant 0 : index
    %5 = vector.load %arg2[%c0_6, %c0_7, %c0_8] : memref<9x8x128xbf16, #tpu.memory_space<vmem>>, vector<1x8x128xbf16>
    %6 = vector.shape_cast %5 : vector<1x8x128xbf16> to vector<8x128xbf16>
    %cst_9 = arith.constant dense<0.000000e+00> : vector<288x128xf32>
    %7 = tpu.matmul %3, %6, %cst_9 {dimension_numbers = #tpu.dot_dimension_numbers<[1], [0], [0], [1], [0, 0, 1, 1], [], []>} : vector<288x8xbf16>, vector<8x128xbf16>, vector<288x128xf32> -> vector<288x128xf32>
    %8 = arith.addf %4, %7 : vector<288x128xf32>
    %c0_10 = arith.constant 0 : index
    %c0_11 = arith.constant 0 : index
    %9 = vector.load %arg5[%c0_10, %c0_11] : memref<288x128xf32, #tpu.memory_space<vmem>>, vector<288x128xf32>
    tpu.vector_store %arg5[%c0_10, %c0_11], %8 {strides = array<i32>} : memref<288x128xf32, #tpu.memory_space<vmem>>, vector<288x128xf32>,
    %c0_12 = arith.constant 0 : index
    %c1 = arith.constant 1 : index
    %c0_13 = arith.constant 0 : index
    %10 = vector.load %arg1[%c0_12, %c1, %c0_13] : memref<1x328x8xbf16, #tpu.memory_space<vmem>>, vector<1x288x8xbf16>
    %11 = vector.shape_cast %10 : vector<1x288x8xbf16> to vector<288x8xbf16>
    %c0_14 = arith.constant 0 : index
    %c0_15 = arith.constant 0 : index
    %12 = vector.load %arg5[%c0_14, %c0_15] : memref<288x128xf32, #tpu.memory_space<vmem>>, vector<288x128xf32>
    %c1_16 = arith.constant 1 : index
    %c0_17 = arith.constant 0 : index
    %c0_18 = arith.constant 0 : index
    %13 = vector.load %arg2[%c1_16, %c0_17, %c0_18] : memref<9x8x128xbf16, #tpu.memory_space<vmem>>, vector<1x8x128xbf16>
    %14 = vector.shape_cast %13 : vector<1x8x128xbf16> to vector<8x128xbf16>
    %cst_19 = arith.constant dense<0.000000e+00> : vector<288x128xf32>
    %15 = tpu.matmul %11, %14, %cst_19 {dimension_numbers = #tpu.dot_dimension_numbers<[1], [0], [0], [1], [0, 0, 1, 1], [], []>} : vector<288x8xbf16>, vector<8x128xbf16>, vector<288x128xf32> -> vector<288x128xf32>
    %16 = arith.addf %12, %15 : vector<288x128xf32>
    %c0_20 = arith.constant 0 : index
    %c0_21 = arith.constant 0 : index
    %17 = vector.load %arg5[%c0_20, %c0_21] : memref<288x128xf32, #tpu.memory_space<vmem>>, vector<288x128xf32>
    tpu.vector_store %arg5[%c0_20, %c0_21], %16 {strides = array<i32>} : memref<288x128xf32, #tpu.memory_space<vmem>>, vector<288x128xf32>,
    %c0_22 = arith.constant 0 : index
    %c2 = arith.constant 2 : index
    %c0_23 = arith.constant 0 : index
    %18 = vector.load %arg1[%c0_22, %c2, %c0_23] : memref<1x328x8xbf16, #tpu.memory_space<vmem>>, vector<1x288x8xbf16>
    %19 = vector.shape_cast %18 : vector<1x288x8xbf16> to vector<288x8xbf16>
    %c0_24 = arith.constant 0 : index
    %c0_25 = arith.constant 0 : index
    %20 = vector.load %arg5[%c0_24, %c0_25] : memref<288x128xf32, #tpu.memory_space<vmem>>, vector<288x128xf32>
    %c2_26 = arith.constant 2 : index
    %c0_27 = arith.constant 0 : index
    %c0_28 = arith.constant 0 : index
    %21 = vector.load %arg2[%c2_26, %c0_27, %c0_28] : memref<9x8x128xbf16, #tpu.memory_space<vmem>>, vector<1x8x128xbf16>
    %22 = vector.shape_cast %21 : vector<1x8x128xbf16> to vector<8x128xbf16>
    %cst_29 = arith.constant dense<0.000000e+00> : vector<288x128xf32>
    %23 = tpu.matmul %19, %22, %cst_29 {dimension_numbers = #tpu.dot_dimension_numbers<[1], [0], [0], [1], [0, 0, 1, 1], [], []>} : vector<288x8xbf16>, vector<8x128xbf16>, vector<288x128xf32> -> vector<288x128xf32>
    %24 = arith.addf %20, %23 : vector<288x128xf32>
    %c0_30 = arith.constant 0 : index
    %c0_31 = arith.constant 0 : index
    %25 = vector.load %arg5[%c0_30, %c0_31] : memref<288x128xf32, #tpu.memory_space<vmem>>, vector<288x128xf32>
    tpu.vector_store %arg5[%c0_30, %c0_31], %24 {strides = array<i32>} : memref<288x128xf32, #tpu.memory_space<vmem>>, vector<288x128xf32>,
    %c0_32 = arith.constant 0 : index
    %c18 = arith.constant 18 : index
    %c0_33 = arith.constant 0 : index
    %26 = vector.load %arg1[%c0_32, %c18, %c0_33] : memref<1x328x8xbf16, #tpu.memory_space<vmem>>, vector<1x288x8xbf16>
    %27 = vector.shape_cast %26 : vector<1x288x8xbf16> to vector<288x8xbf16>
    %c0_34 = arith.constant 0 : index
    %c0_35 = arith.constant 0 : index
    %28 = vector.load %arg5[%c0_34, %c0_35] : memref<288x128xf32, #tpu.memory_space<vmem>>, vector<288x128xf32>
    %c3 = arith.constant 3 : index
    %c0_36 = arith.constant 0 : index
    %c0_37 = arith.constant 0 : index
    %29 = vector.load %arg2[%c3, %c0_36, %c0_37] : memref<9x8x128xbf16, #tpu.memory_space<vmem>>, vector<1x8x128xbf16>
    %30 = vector.shape_cast %29 : vector<1x8x128xbf16> to vector<8x128xbf16>
    %cst_38 = arith.constant dense<0.000000e+00> : vector<288x128xf32>
    %31 = tpu.matmul %27, %30, %cst_38 {dimension_numbers = #tpu.dot_dimension_numbers<[1], [0], [0], [1], [0, 0, 1, 1], [], []>} : vector<288x8xbf16>, vector<8x128xbf16>, vector<288x128xf32> -> vector<288x128xf32>
    %32 = arith.addf %28, %31 : vector<288x128xf32>
    %c0_39 = arith.constant 0 : index
    %c0_40 = arith.constant 0 : index
    %33 = vector.load %arg5[%c0_39, %c0_40] : memref<288x128xf32, #tpu.memory_space<vmem>>, vector<288x128xf32>
    tpu.vector_store %arg5[%c0_39, %c0_40], %32 {strides = array<i32>} : memref<288x128xf32, #tpu.memory_space<vmem>>, vector<288x128xf32>,
    %c0_41 = arith.constant 0 : index
    %c19 = arith.constant 19 : index
    %c0_42 = arith.constant 0 : index
    %34 = vector.load %arg1[%c0_41, %c19, %c0_42] : memref<1x328x8xbf16, #tpu.memory_space<vmem>>, vector<1x288x8xbf16>
    %35 = vector.shape_cast %34 : vector<1x288x8xbf16> to vector<288x8xbf16>
    %c0_43 = arith.constant 0 : index
    %c0_44 = arith.constant 0 : index
    %36 = vector.load %arg5[%c0_43, %c0_44] : memref<288x128xf32, #tpu.memory_space<vmem>>, vector<288x128xf32>
    %c4 = arith.constant 4 : index
    %c0_45 = arith.constant 0 : index
    %c0_46 = arith.constant 0 : index
    %37 = vector.load %arg2[%c4, %c0_45, %c0_46] : memref<9x8x128xbf16, #tpu.memory_space<vmem>>, vector<1x8x128xbf16>
    %38 = vector.shape_cast %37 : vector<1x8x128xbf16> to vector<8x128xbf16>
    %cst_47 = arith.constant dense<0.000000e+00> : vector<288x128xf32>
    %39 = tpu.matmul %35, %38, %cst_47 {dimension_numbers = #tpu.dot_dimension_numbers<[1], [0], [0], [1], [0, 0, 1, 1], [], []>} : vector<288x8xbf16>, vector<8x128xbf16>, vector<288x128xf32> -> vector<288x128xf32>
    %40 = arith.addf %36, %39 : vector<288x128xf32>
    %c0_48 = arith.constant 0 : index
    %c0_49 = arith.constant 0 : index
    %41 = vector.load %arg5[%c0_48, %c0_49] : memref<288x128xf32, #tpu.memory_space<vmem>>, vector<288x128xf32>
    tpu.vector_store %arg5[%c0_48, %c0_49], %40 {strides = array<i32>} : memref<288x128xf32, #tpu.memory_space<vmem>>, vector<288x128xf32>,
    %c0_50 = arith.constant 0 : index
    %c20 = arith.constant 20 : index
    %c0_51 = arith.constant 0 : index
    %42 = vector.load %arg1[%c0_50, %c20, %c0_51] : memref<1x328x8xbf16, #tpu.memory_space<vmem>>, vector<1x288x8xbf16>
    %43 = vector.shape_cast %42 : vector<1x288x8xbf16> to vector<288x8xbf16>
    %c0_52 = arith.constant 0 : index
    %c0_53 = arith.constant 0 : index
    %44 = vector.load %arg5[%c0_52, %c0_53] : memref<288x128xf32, #tpu.memory_space<vmem>>, vector<288x128xf32>
    %c5 = arith.constant 5 : index
    %c0_54 = arith.constant 0 : index
    %c0_55 = arith.constant 0 : index
    %45 = vector.load %arg2[%c5, %c0_54, %c0_55] : memref<9x8x128xbf16, #tpu.memory_space<vmem>>, vector<1x8x128xbf16>
    %46 = vector.shape_cast %45 : vector<1x8x128xbf16> to vector<8x128xbf16>
    %cst_56 = arith.constant dense<0.000000e+00> : vector<288x128xf32>
    %47 = tpu.matmul %43, %46, %cst_56 {dimension_numbers = #tpu.dot_dimension_numbers<[1], [0], [0], [1], [0, 0, 1, 1], [], []>} : vector<288x8xbf16>, vector<8x128xbf16>, vector<288x128xf32> -> vector<288x128xf32>
    %48 = arith.addf %44, %47 : vector<288x128xf32>
    %c0_57 = arith.constant 0 : index
    %c0_58 = arith.constant 0 : index
    %49 = vector.load %arg5[%c0_57, %c0_58] : memref<288x128xf32, #tpu.memory_space<vmem>>, vector<288x128xf32>
    tpu.vector_store %arg5[%c0_57, %c0_58], %48 {strides = array<i32>} : memref<288x128xf32, #tpu.memory_space<vmem>>, vector<288x128xf32>,
    %c0_59 = arith.constant 0 : index
    %c36 = arith.constant 36 : index
    %c0_60 = arith.constant 0 : index
    %50 = vector.load %arg1[%c0_59, %c36, %c0_60] : memref<1x328x8xbf16, #tpu.memory_space<vmem>>, vector<1x288x8xbf16>
    %51 = vector.shape_cast %50 : vector<1x288x8xbf16> to vector<288x8xbf16>
    %c0_61 = arith.constant 0 : index
    %c0_62 = arith.constant 0 : index
    %52 = vector.load %arg5[%c0_61, %c0_62] : memref<288x128xf32, #tpu.memory_space<vmem>>, vector<288x128xf32>
    %c6 = arith.constant 6 : index
    %c0_63 = arith.constant 0 : index
    %c0_64 = arith.constant 0 : index
    %53 = vector.load %arg2[%c6, %c0_63, %c0_64] : memref<9x8x128xbf16, #tpu.memory_space<vmem>>, vector<1x8x128xbf16>
    %54 = vector.shape_cast %53 : vector<1x8x128xbf16> to vector<8x128xbf16>
    %cst_65 = arith.constant dense<0.000000e+00> : vector<288x128xf32>
    %55 = tpu.matmul %51, %54, %cst_65 {dimension_numbers = #tpu.dot_dimension_numbers<[1], [0], [0], [1], [0, 0, 1, 1], [], []>} : vector<288x8xbf16>, vector<8x128xbf16>, vector<288x128xf32> -> vector<288x128xf32>
    %56 = arith.addf %52, %55 : vector<288x128xf32>
    %c0_66 = arith.constant 0 : index
    %c0_67 = arith.constant 0 : index
    %57 = vector.load %arg5[%c0_66, %c0_67] : memref<288x128xf32, #tpu.memory_space<vmem>>, vector<288x128xf32>
    tpu.vector_store %arg5[%c0_66, %c0_67], %56 {strides = array<i32>} : memref<288x128xf32, #tpu.memory_space<vmem>>, vector<288x128xf32>,
    %c0_68 = arith.constant 0 : index
    %c37 = arith.constant 37 : index
    %c0_69 = arith.constant 0 : index
    %58 = vector.load %arg1[%c0_68, %c37, %c0_69] : memref<1x328x8xbf16, #tpu.memory_space<vmem>>, vector<1x288x8xbf16>
    %59 = vector.shape_cast %58 : vector<1x288x8xbf16> to vector<288x8xbf16>
    %c0_70 = arith.constant 0 : index
    %c0_71 = arith.constant 0 : index
    %60 = vector.load %arg5[%c0_70, %c0_71] : memref<288x128xf32, #tpu.memory_space<vmem>>, vector<288x128xf32>
    %c7 = arith.constant 7 : index
    %c0_72 = arith.constant 0 : index
    %c0_73 = arith.constant 0 : index
    %61 = vector.load %arg2[%c7, %c0_72, %c0_73] : memref<9x8x128xbf16, #tpu.memory_space<vmem>>, vector<1x8x128xbf16>
    %62 = vector.shape_cast %61 : vector<1x8x128xbf16> to vector<8x128xbf16>
    %cst_74 = arith.constant dense<0.000000e+00> : vector<288x128xf32>
    %63 = tpu.matmul %59, %62, %cst_74 {dimension_numbers = #tpu.dot_dimension_numbers<[1], [0], [0], [1], [0, 0, 1, 1], [], []>} : vector<288x8xbf16>, vector<8x128xbf16>, vector<288x128xf32> -> vector<288x128xf32>
    %64 = arith.addf %60, %63 : vector<288x128xf32>
    %c0_75 = arith.constant 0 : index
    %c0_76 = arith.constant 0 : index
    %65 = vector.load %arg5[%c0_75, %c0_76] : memref<288x128xf32, #tpu.memory_space<vmem>>, vector<288x128xf32>
    tpu.vector_store %arg5[%c0_75, %c0_76], %64 {strides = array<i32>} : memref<288x128xf32, #tpu.memory_space<vmem>>, vector<288x128xf32>,
    %c0_77 = arith.constant 0 : index
    %c38 = arith.constant 38 : index
    %c0_78 = arith.constant 0 : index
    %66 = vector.load %arg1[%c0_77, %c38, %c0_78] : memref<1x328x8xbf16, #tpu.memory_space<vmem>>, vector<1x288x8xbf16>
    %67 = vector.shape_cast %66 : vector<1x288x8xbf16> to vector<288x8xbf16>
    %c0_79 = arith.constant 0 : index
    %c0_80 = arith.constant 0 : index
    %68 = vector.load %arg5[%c0_79, %c0_80] : memref<288x128xf32, #tpu.memory_space<vmem>>, vector<288x128xf32>
    %c8 = arith.constant 8 : index
    %c0_81 = arith.constant 0 : index
    %c0_82 = arith.constant 0 : index
    %69 = vector.load %arg2[%c8, %c0_81, %c0_82] : memref<9x8x128xbf16, #tpu.memory_space<vmem>>, vector<1x8x128xbf16>
    %70 = vector.shape_cast %69 : vector<1x8x128xbf16> to vector<8x128xbf16>
    %cst_83 = arith.constant dense<0.000000e+00> : vector<288x128xf32>
    %71 = tpu.matmul %67, %70, %cst_83 {dimension_numbers = #tpu.dot_dimension_numbers<[1], [0], [0], [1], [0, 0, 1, 1], [], []>} : vector<288x8xbf16>, vector<8x128xbf16>, vector<288x128xf32> -> vector<288x128xf32>
    %72 = arith.addf %68, %71 : vector<288x128xf32>
    %c0_84 = arith.constant 0 : index
    %c0_85 = arith.constant 0 : index
    %73 = vector.load %arg5[%c0_84, %c0_85] : memref<288x128xf32, #tpu.memory_space<vmem>>, vector<288x128xf32>
    tpu.vector_store %arg5[%c0_84, %c0_85], %72 {strides = array<i32>} : memref<288x128xf32, #tpu.memory_space<vmem>>, vector<288x128xf32>,
    %c0_86 = arith.constant 0 : index
    %c0_87 = arith.constant 0 : index
    %74 = vector.load %arg5[%c0_86, %c0_87] : memref<288x128xf32, #tpu.memory_space<vmem>>, vector<288x128xf32>
    %c0_88 = arith.constant 0 : index
    %c0_89 = arith.constant 0 : index
    %75 = vector.load %arg3[%c0_88, %c0_89] : memref<1x128xf32, #tpu.memory_space<vmem>>, vector<1x128xf32>
    %76 = vector.broadcast %75 : vector<1x128xf32> to vector<288x128xf32>
    %77 = arith.addf %74, %76 : vector<288x128xf32>
    %cst_90 = arith.constant 3.000000e+00 : f32
    %78 = vector.broadcast %cst_90 : f32 to vector<288x128xf32>
    %79 = arith.addf %77, %78 : vector<288x128xf32>
    %cst_91 = arith.constant 0.000000e+00 : f32
    %cst_92 = arith.constant 6.000000e+00 : f32
    %80 = vector.broadcast %cst_91 : f32 to vector<288x128xf32>
    %81 = arith.maximumf %80, %79 : vector<288x128xf32>
    %82 = vector.broadcast %cst_92 : f32 to vector<288x128xf32>
    %83 = arith.minimumf %82, %81 : vector<288x128xf32>
    %84 = arith.mulf %77, %83 : vector<288x128xf32>
    %cst_93 = arith.constant 0.166666672 : f32
    %85 = vector.broadcast %cst_93 : f32 to vector<288x128xf32>
    %86 = arith.mulf %84, %85 : vector<288x128xf32>
    %c0_94 = arith.constant 0 : index
    %c0_95 = arith.constant 0 : index
    %c0_96 = arith.constant 0 : index
    %87 = vector.load %arg4[%c0_94, %c0_95, %c0_96] : memref<1x288x128xf32, #tpu.memory_space<vmem>>, vector<1x288x128xf32>
    %88 = vector.shape_cast %87 : vector<1x288x128xf32> to vector<288x128xf32>
    %89 = vector.shape_cast %86 : vector<288x128xf32> to vector<1x288x128xf32>
    tpu.vector_store %arg4[%c0_94, %c0_95, %c0_96], %89 {strides = array<i32>} : memref<1x288x128xf32, #tpu.memory_space<vmem>>, vector<1x288x128xf32>,
    return
  }
  func.func @transform_0(%arg0: i32) -> (i32, i32, i32) {
    %c0_i32 = arith.constant 0 : i32
    %c0_i32_0 = arith.constant 0 : i32
    %c0_i32_1 = arith.constant 0 : i32
    return %arg0, %c0_i32, %c0_i32_0 : i32, i32, i32
  }
  func.func @transform_1(%arg0: i32) -> (i32, i32, i32) {
    %c0_i32 = arith.constant 0 : i32
    %c0_i32_0 = arith.constant 0 : i32
    %c0_i32_1 = arith.constant 0 : i32
    %c0_i32_2 = arith.constant 0 : i32
    return %c0_i32, %c0_i32_0, %c0_i32_1 : i32, i32, i32
  }
  func.func @transform_2(%arg0: i32) -> (i32, i32) {
    %c0_i32 = arith.constant 0 : i32
    %c0_i32_0 = arith.constant 0 : i32
    %c0_i32_1 = arith.constant 0 : i32
    return %c0_i32, %c0_i32_0 : i32, i32
  }
  func.func @transform_3(%arg0: i32) -> (i32, i32, i32) {
    %c0_i32 = arith.constant 0 : i32
    %c0_i32_0 = arith.constant 0 : i32
    %c0_i32_1 = arith.constant 0 : i32
    return %arg0, %c0_i32, %c0_i32_0 : i32, i32, i32
  }
}

</mosaic_0001>

<llo_original>
// kernel: tpu_custom_call.1
$region0: #{tpu_custom_call.1}
  #allocation0 [shape = 'u32[]', space=smem, size = 0x4, offset = 0x4, fixed_abs, tag = 'smem constant byte address 0x4 - core index']
  #allocation1 [shape = 'u32[144,128]{1,0:T(1,128)}', space=vmem, size = 0x12000, scoped, tag = 'internal scratch']
  #allocation2 [shape = 'f32[288,128]{1,0:T(8,128)}', space=vmem, size = 0x24000, scoped, tag = 'scratch operand']
  %s0 = inlined_call_operand.vmem [shape: bf16[2,328,8], index: 0, kind: input, shape index: {}]
  %s1 = inlined_call_operand.vmem [shape: bf16[9,8,128], index: 1, kind: input, shape index: {}]
  %s2 = inlined_call_operand.vmem [shape: f32[1,128], index: 2, kind: input, shape index: {}]
  %s3 = inlined_call_operand.hbm [shape: f32[2,288,128], index: 3, kind: output, shape index: {}]
  %s4 = sld [smem:[#allocation0]]
  $region45: #{tpu_custom_call.1} parent=0
    _
  %s6 = ssub.s32 1, %s4
  %s7 = scalar_select 0, %s6, %s4
  $region1: #{tpu_custom_call.1} parent=0
    #allocation3 [shape = 'u8[294912]{0}', space=vmem, size = 0x48000, scoped, tag = 'output window, operand 0']
    #allocation4 [shape = 's32[2]{0}', space=sflag, size = 0x8, scoped, tag = 'scoped memory for tpu_custom_call.1']
    %8 = vsyncpa [#allocation4], 0
    %s9 = scalar_lea.sflag [#allocation4], 1
    %10 = vsyncpa %s9, 0
    loop: start=0, step=1, limit=4
    $region2: #{tpu_custom_call.1} parent=1 // loop_pre_header
      _
    $region3: #{tpu_custom_call.1} parent=1 // loop_header
      %s12 = sphi 0, %s16
      %p13 = scmp.ge.s32.totalorder %s12, 4
      %s22 = sphi 0, %s24
      %s25 = sphi 0, %s22
      %s26 = sphi 0, %s25
      %s42 = sphi 0, %s26
      %s46 = sphi 0, %s46
      %s48 = sphi 0, %s46
      %s49 = sphi 0, %s48
      %s63 = sphi 0, %s49
      %s67 = sphi 0, %s67
      %s69 = sphi 0, %s67
      %s70 = sphi 0, %s69
      %s84 = sphi 0, %s70
      %s90 = sphi 0, %s92
      %s93 = sphi 0, %s90
      %s94 = sphi 0, %s93
      %s110 = sphi 0, %s94
    $region4: #{tpu_custom_call.1} parent=1 // loop_header_branch
      %15 = sbr.rel (%p13) target = $region8
    $region5: #{tpu_custom_call.1} parent=1 // loop_body
      %s17 = ssub.s32 %s12, 1
      %s18 = ssub.s32 %s12, 2
      %s19 = sadd.s32 %s12, 1
      %s20 = ssub.s32 %s12, %s19
      %p21 = scmp.eq.s32.totalorder %s20, 0
      %s23 = sadd.s32 %s22, 1
      %s24 = scalar_select %p21, %s22, %s23
      %p27 = pneg %p21
      %p28 = scmp.eq.s32.totalorder %s12, 1
      %p29 = por %p27, %p28
      %p30 = scmp.ne.s32.totalorder %s22, %s25
      %p31 = scmp.eq.s32.totalorder %s12, 0
      %p32 = por %p30, %p31
      %p33 = scmp.ne.s32.totalorder %s22, %s25
      %p34 = scmp.eq.s32.totalorder %s17, 1
      %p35 = por %p33, %p34
      %p36 = scmp.ne.s32.totalorder %s25, %s26
      %p37 = scmp.eq.s32.totalorder %s17, 0
      %p38 = por %p36, %p37
      %p39 = scmp.ne.s32.totalorder %s25, %s26
      %p40 = scmp.eq.s32.totalorder %s18, 1
      %p41 = por %p39, %p40
      %p43 = scmp.ne.s32.totalorder %s26, %s42
      %p44 = scmp.eq.s32.totalorder %s18, 0
      %p45 = por %p43, %p44
      %s47 = sadd.s32 %s46, 1
      %p50 = scmp.eq.s32.totalorder %s12, 1
      %p51 = scmp.ne.s32.totalorder %s46, %s48
      %p52 = scmp.eq.s32.totalorder %s12, 0
      %p53 = por %p51, %p52
      %p54 = scmp.ne.s32.totalorder %s46, %s48
      %p55 = scmp.eq.s32.totalorder %s17, 1
      %p56 = por %p54, %p55
      %p57 = scmp.ne.s32.totalorder %s48, %s49
      %p58 = scmp.eq.s32.totalorder %s17, 0
      %p59 = por %p57, %p58
      %p60 = scmp.ne.s32.totalorder %s48, %s49
      %p61 = scmp.eq.s32.totalorder %s18, 1
      %p62 = por %p60, %p61
      %p64 = scmp.ne.s32.totalorder %s49, %s63
      %p65 = scmp.eq.s32.totalorder %s18, 0
      %p66 = por %p64, %p65
      %s68 = sadd.s32 %s67, 1
      %p71 = scmp.eq.s32.totalorder %s12, 1
      %p72 = scmp.ne.s32.totalorder %s67, %s69
      %p73 = scmp.eq.s32.totalorder %s12, 0
      %p74 = por %p72, %p73
      %p75 = scmp.ne.s32.totalorder %s67, %s69
      %p76 = scmp.eq.s32.totalorder %s17, 1
      %p77 = por %p75, %p76
      %p78 = scmp.ne.s32.totalorder %s69, %s70
      %p79 = scmp.eq.s32.totalorder %s17, 0
      %p80 = por %p78, %p79
      %p81 = scmp.ne.s32.totalorder %s69, %s70
      %p82 = scmp.eq.s32.totalorder %s18, 1
      %p83 = por %p81, %p82
      %p85 = scmp.ne.s32.totalorder %s70, %s84
      %p86 = scmp.eq.s32.totalorder %s18, 0
      %p87 = por %p85, %p86
      %s88 = ssub.s32 %s12, %s19
      %p89 = scmp.eq.s32.totalorder %s88, 0
      %s91 = sadd.s32 %s90, 1
      %s92 = scalar_select %p89, %s90, %s91
      %p95 = pneg %p89
      %p96 = scmp.eq.s32.totalorder %s12, 1
      %p97 = por %p95, %p96
      %p98 = scmp.ne.s32.totalorder %s90, %s93
      %p99 = scmp.eq.s32.totalorder %s12, 0
      %p100 = por %p98, %p99
      %p101 = scmp.ne.s32.totalorder %s90, %s93
      %p102 = scmp.eq.s32.totalorder %s17, 1
      %p103 = por %p101, %p102
      %p104 = scmp.ne.s32.totalorder %s93, %s94
      %p105 = scmp.eq.s32.totalorder %s17, 0
      %p106 = por %p104, %p105
      %p107 = scmp.ne.s32.totalorder %s93, %s94
      %p108 = scmp.eq.s32.totalorder %s18, 1
      %p109 = por %p107, %p108
      %p111 = scmp.ne.s32.totalorder %s94, %s110
      %p112 = scmp.eq.s32.totalorder %s18, 0
      %p113 = por %p111, %p112
      %p114 = scmp.le.s32.totalorder 1, %s12
      %p115 = scmp.lt.s32.totalorder %s12, 3
      %p116 = pnand %p114, %p115
      %p117 = pneg %p116
      // Predicated region
      $region9: #{tpu_custom_call.1} parent=5 // pred_check
        _
      $region10: #{tpu_custom_call.1} parent=5 // pred_check_branch
        %119 = sbr.rel (%p116) target = $region12
      $region11: #{tpu_custom_call.1} parent=5 // pred_region
        %s120 = ssub.s32 %s12, 1
        // Predicated region
        $region13: #{tpu_custom_call.1} parent=11 // pred_check
          %p121 = pneg %p59
        $region14: #{tpu_custom_call.1} parent=11 // pred_check_branch
          %123 = sbr.rel (%p121) target = $region16
        $region15: #{tpu_custom_call.1} parent=11 // pred_region
          _
        $region16: #{tpu_custom_call.1} parent=11 // pred_fallthru
          _
        // Predicated region
        $region17: #{tpu_custom_call.1} parent=11 // pred_check
          %p124 = pneg %p80
        $region18: #{tpu_custom_call.1} parent=11 // pred_check_branch
          %126 = sbr.rel (%p124) target = $region20
        $region19: #{tpu_custom_call.1} parent=11 // pred_region
          _
        $region20: #{tpu_custom_call.1} parent=11 // pred_fallthru
          _
      $region12: #{tpu_custom_call.1} parent=5 // pred_fallthru
        _
      %p127 = scmp.lt.s32.totalorder %s12, 2
      // Predicated region
      $region21: #{tpu_custom_call.1} parent=5 // pred_check
        %p128 = pneg %p127
      $region22: #{tpu_custom_call.1} parent=5 // pred_check_branch
        %130 = sbr.rel (%p128) target = $region24
      $region23: #{tpu_custom_call.1} parent=5 // pred_region
        // Predicated region
        $region25: #{tpu_custom_call.1} parent=23 // pred_check
          %p131 = pneg %p32
        $region26: #{tpu_custom_call.1} parent=23 // pred_check_branch
          %133 = sbr.rel (%p131) target = $region28
        $region27: #{tpu_custom_call.1} parent=23 // pred_region
          %p134 = scmp.lt.s32.totalorder %s12, 1
          %s135 = scalar_select %p134, %s12, 1
          %s136 = smul.addr %s135, 41
          %s137 = smul.addr %s136, 4
          %s138 = scalar_lea.vmem %s0, %s137
        $region28: #{tpu_custom_call.1} parent=23 // pred_fallthru
          _
      $region24: #{tpu_custom_call.1} parent=5 // pred_fallthru
        _
      %p139 = scmp.le.s32.totalorder 1, %s12
      %p140 = scmp.lt.s32.totalorder %s12, 3
      %p141 = pnand %p139, %p140
      %p142 = pneg %p141
      // Predicated region
      $region29: #{tpu_custom_call.1} parent=5 // pred_check
        _
      $region30: #{tpu_custom_call.1} parent=5 // pred_check_branch
        %144 = sbr.rel (%p141) target = $region32
      $region31: #{tpu_custom_call.1} parent=5 // pred_region
        %s145 = ssub.s32 %s12, 1
        %p146 = scmp.lt.s32.totalorder %s17, 1
        %s147 = scalar_select %p146, %s17, 1
        %s148 = smul.addr %s147, 41
        %s149 = smul.addr %s148, 4
        %s150 = scalar_lea.vmem %s0, %s149
        %p151 = pneg %p38
        %p152 = pneg %p35
        %p153 = pneg %p59
        %p154 = pneg %p56
        %p155 = pneg %p80
        %p156 = pneg %p77
        %p157 = pneg %p106
        %p158 = pneg %p103
        %s159 = sand.u32 %s93, 1
        %s160 = scalar_lea.sflag [#allocation4], %s159
        %s161 = sand.u32 %s93, 1
        %s162 = smul.addr %s161, 288
        %s163 = scalar_lea.vmem [#allocation3], %s162
        %p164 = scmp.lt.s32.totalorder %s17, 1
        %s165 = scalar_select %p164, %s17, 1
        %s166 = smul.addr %s165, 41
        %s167 = smul.addr %s166, 4
        %s168 = scalar_lea.vmem %s0, %s167
        %170 = vst [vmem:[#allocation2] sm:$0xff] 0.0
        %171 = vst [vmem:[#allocation2 + $0x8] sm:$0xff] 0.0
        %172 = vst [vmem:[#allocation2 + $0x10] sm:$0xff] 0.0
        %173 = vst [vmem:[#allocation2 + $0x18] sm:$0xff] 0.0
        %174 = vst [vmem:[#allocation2 + $0x20] sm:$0xff] 0.0
        %175 = vst [vmem:[#allocation2 + $0x28] sm:$0xff] 0.0
        %176 = vst [vmem:[#allocation2 + $0x30] sm:$0xff] 0.0
        %177 = vst [vmem:[#allocation2 + $0x38] sm:$0xff] 0.0
        %178 = vst [vmem:[#allocation2 + $0x40] sm:$0xff] 0.0
        %179 = vst [vmem:[#allocation2 + $0x48] sm:$0xff] 0.0
        %180 = vst [vmem:[#allocation2 + $0x50] sm:$0xff] 0.0
        %181 = vst [vmem:[#allocation2 + $0x58] sm:$0xff] 0.0
        %182 = vst [vmem:[#allocation2 + $0x60] sm:$0xff] 0.0
        %183 = vst [vmem:[#allocation2 + $0x68] sm:$0xff] 0.0
        %184 = vst [vmem:[#allocation2 + $0x70] sm:$0xff] 0.0
        %185 = vst [vmem:[#allocation2 + $0x78] sm:$0xff] 0.0
        %186 = vst [vmem:[#allocation2 + $0x80] sm:$0xff] 0.0
        %187 = vst [vmem:[#allocation2 + $0x88] sm:$0xff] 0.0
        %188 = vst [vmem:[#allocation2 + $0x90] sm:$0xff] 0.0
        %189 = vst [vmem:[#allocation2 + $0x98] sm:$0xff] 0.0
        %190 = vst [vmem:[#allocation2 + $0xa0] sm:$0xff] 0.0
        %191 = vst [vmem:[#allocation2 + $0xa8] sm:$0xff] 0.0
        %192 = vst [vmem:[#allocation2 + $0xb0] sm:$0xff] 0.0
        %193 = vst [vmem:[#allocation2 + $0xb8] sm:$0xff] 0.0
        %194 = vst [vmem:[#allocation2 + $0xc0] sm:$0xff] 0.0
        %195 = vst [vmem:[#allocation2 + $0xc8] sm:$0xff] 0.0
        %196 = vst [vmem:[#allocation2 + $0xd0] sm:$0xff] 0.0
        %197 = vst [vmem:[#allocation2 + $0xd8] sm:$0xff] 0.0
        %198 = vst [vmem:[#allocation2 + $0xe0] sm:$0xff] 0.0
        %199 = vst [vmem:[#allocation2 + $0xe8] sm:$0xff] 0.0
        %200 = vst [vmem:[#allocation2 + $0xf0] sm:$0xff] 0.0
        %201 = vst [vmem:[#allocation2 + $0xf8] sm:$0xff] 0.0
        %202 = vst [vmem:[#allocation2 + $0x100] sm:$0xff] 0.0
        %203 = vst [vmem:[#allocation2 + $0x108] sm:$0xff] 0.0
        %204 = vst [vmem:[#allocation2 + $0x110] sm:$0xff] 0.0
        %205 = vst [vmem:[#allocation2 + $0x118] sm:$0xff] 0.0
        %v206 = vld [vmem:[%s168] sm:$0xf]
        %v207 = vld [vmem:[%s168 + $0x4] sm:$0xf]
        %v208 = vld [vmem:[%s168 + $0x8] sm:$0xf]
        %v209 = vld [vmem:[%s168 + $0xc] sm:$0xf]
        %v210 = vld [vmem:[%s168 + $0x10] sm:$0xf]
        %v211 = vld [vmem:[%s168 + $0x14] sm:$0xf]
        %v212 = vld [vmem:[%s168 + $0x18] sm:$0xf]
        %v213 = vld [vmem:[%s168 + $0x1c] sm:$0xf]
        %v214 = vld [vmem:[%s168 + $0x20] sm:$0xf]
        %v215 = vld [vmem:[%s168 + $0x24] sm:$0xf]
        %v216 = vld [vmem:[%s168 + $0x28] sm:$0xf]
        %v217 = vld [vmem:[%s168 + $0x2c] sm:$0xf]
        %v218 = vld [vmem:[%s168 + $0x30] sm:$0xf]
        %v219 = vld [vmem:[%s168 + $0x34] sm:$0xf]
        %v220 = vld [vmem:[%s168 + $0x38] sm:$0xf]
        %v221 = vld [vmem:[%s168 + $0x3c] sm:$0xf]
        %v222 = vld [vmem:[%s168 + $0x40] sm:$0xf]
        %v223 = vld [vmem:[%s168 + $0x44] sm:$0xf]
        %v224 = vld [vmem:[%s168 + $0x48] sm:$0xf]
        %v225 = vld [vmem:[%s168 + $0x4c] sm:$0xf]
        %v226 = vld [vmem:[%s168 + $0x50] sm:$0xf]
        %v227 = vld [vmem:[%s168 + $0x54] sm:$0xf]
        %v228 = vld [vmem:[%s168 + $0x58] sm:$0xf]
        %v229 = vld [vmem:[%s168 + $0x5c] sm:$0xf]
        %v230 = vld [vmem:[%s168 + $0x60] sm:$0xf]
        %v231 = vld [vmem:[%s168 + $0x64] sm:$0xf]
        %v232 = vld [vmem:[%s168 + $0x68] sm:$0xf]
        %v233 = vld [vmem:[%s168 + $0x6c] sm:$0xf]
        %v234 = vld [vmem:[%s168 + $0x70] sm:$0xf]
        %v235 = vld [vmem:[%s168 + $0x74] sm:$0xf]
        %v236 = vld [vmem:[%s168 + $0x78] sm:$0xf]
        %v237 = vld [vmem:[%s168 + $0x7c] sm:$0xf]
        %v238 = vld [vmem:[%s168 + $0x80] sm:$0xf]
        %v239 = vld [vmem:[%s168 + $0x84] sm:$0xf]
        %v240 = vld [vmem:[%s168 + $0x88] sm:$0xf]
        %v241 = vld [vmem:[%s168 + $0x8c] sm:$0xf]
        %v242 = vld [vmem:[#allocation2] sm:$0xff]
        %v243 = vld [vmem:[#allocation2 + $0x8] sm:$0xff]
        %v244 = vld [vmem:[#allocation2 + $0x10] sm:$0xff]
        %v245 = vld [vmem:[#allocation2 + $0x18] sm:$0xff]
        %v246 = vld [vmem:[#allocation2 + $0x20] sm:$0xff]
        %v247 = vld [vmem:[#allocation2 + $0x28] sm:$0xff]
        %v248 = vld [vmem:[#allocation2 + $0x30] sm:$0xff]
        %v249 = vld [vmem:[#allocation2 + $0x38] sm:$0xff]
        %v250 = vld [vmem:[#allocation2 + $0x40] sm:$0xff]
        %v251 = vld [vmem:[#allocation2 + $0x48] sm:$0xff]
        %v252 = vld [vmem:[#allocation2 + $0x50] sm:$0xff]
        %v253 = vld [vmem:[#allocation2 + $0x58] sm:$0xff]
        %v254 = vld [vmem:[#allocation2 + $0x60] sm:$0xff]
        %v255 = vld [vmem:[#allocation2 + $0x68] sm:$0xff]
        %v256 = vld [vmem:[#allocation2 + $0x70] sm:$0xff]
        %v257 = vld [vmem:[#allocation2 + $0x78] sm:$0xff]
        %v258 = vld [vmem:[#allocation2 + $0x80] sm:$0xff]
        %v259 = vld [vmem:[#allocation2 + $0x88] sm:$0xff]
        %v260 = vld [vmem:[#allocation2 + $0x90] sm:$0xff]
        %v261 = vld [vmem:[#allocation2 + $0x98] sm:$0xff]
        %v262 = vld [vmem:[#allocation2 + $0xa0] sm:$0xff]
        %v263 = vld [vmem:[#allocation2 + $0xa8] sm:$0xff]
        %v264 = vld [vmem:[#allocation2 + $0xb0] sm:$0xff]
        %v265 = vld [vmem:[#allocation2 + $0xb8] sm:$0xff]
        %v266 = vld [vmem:[#allocation2 + $0xc0] sm:$0xff]
        %v267 = vld [vmem:[#allocation2 + $0xc8] sm:$0xff]
        %v268 = vld [vmem:[#allocation2 + $0xd0] sm:$0xff]
        %v269 = vld [vmem:[#allocation2 + $0xd8] sm:$0xff]
        %v270 = vld [vmem:[#allocation2 + $0xe0] sm:$0xff]
        %v271 = vld [vmem:[#allocation2 + $0xe8] sm:$0xff]
        %v272 = vld [vmem:[#allocation2 + $0xf0] sm:$0xff]
        %v273 = vld [vmem:[#allocation2 + $0xf8] sm:$0xff]
        %v274 = vld [vmem:[#allocation2 + $0x100] sm:$0xff]
        %v275 = vld [vmem:[#allocation2 + $0x108] sm:$0xff]
        %v276 = vld [vmem:[#allocation2 + $0x110] sm:$0xff]
        %v277 = vld [vmem:[#allocation2 + $0x118] sm:$0xff]
        %v278 = vld [vmem:[%s1] sm:$0xf]
        %v315 = vunpack.c.l.b16 %v206
        %v316 = vunpack.c.l.b16 %v207
        %v317 = vunpack.c.l.b16 %v208
        %v318 = vunpack.c.l.b16 %v209
        %v319 = vunpack.c.l.b16 %v210
        %v320 = vunpack.c.l.b16 %v211
        %v321 = vunpack.c.l.b16 %v212
        %v322 = vunpack.c.l.b16 %v213
        %v323 = vunpack.c.l.b16 %v214
        %v324 = vunpack.c.l.b16 %v215
        %v325 = vunpack.c.l.b16 %v216
        %v326 = vunpack.c.l.b16 %v217
        %v327 = vunpack.c.l.b16 %v218
        %v328 = vunpack.c.l.b16 %v219
        %v329 = vunpack.c.l.b16 %v220
        %v330 = vunpack.c.l.b16 %v221
        %v331 = vunpack.c.l.b16 %v222
        %v332 = vunpack.c.l.b16 %v223
        %v333 = vunpack.c.l.b16 %v224
        %v334 = vunpack.c.l.b16 %v225
        %v335 = vunpack.c.l.b16 %v226
        %v336 = vunpack.c.l.b16 %v227
        %v337 = vunpack.c.l.b16 %v228
        %v338 = vunpack.c.l.b16 %v229
        %v339 = vunpack.c.l.b16 %v230
        %v340 = vunpack.c.l.b16 %v231
        %v341 = vunpack.c.l.b16 %v232
        %v342 = vunpack.c.l.b16 %v233
        %v343 = vunpack.c.l.b16 %v234
        %v344 = vunpack.c.l.b16 %v235
        %v345 = vunpack.c.l.b16 %v236
        %v346 = vunpack.c.l.b16 %v237
        %v347 = vunpack.c.l.b16 %v238
        %v348 = vunpack.c.l.b16 %v239
        %v349 = vunpack.c.l.b16 %v240
        %v350 = vunpack.c.l.b16 %v241
        %v351 = vpack.c.b16 %v316, %v315
        %v352 = vpack.c.b16 %v318, %v317
        %v353 = vpack.c.b16 %v320, %v319
        %v354 = vpack.c.b16 %v322, %v321
        %v355 = vpack.c.b16 %v324, %v323
        %v356 = vpack.c.b16 %v326, %v325
        %v357 = vpack.c.b16 %v328, %v327
        %v358 = vpack.c.b16 %v330, %v329
        %v359 = vpack.c.b16 %v332, %v331
        %v360 = vpack.c.b16 %v334, %v333
        %v361 = vpack.c.b16 %v336, %v335
        %v362 = vpack.c.b16 %v338, %v337
        %v363 = vpack.c.b16 %v340, %v339
        %v364 = vpack.c.b16 %v342, %v341
        %v365 = vpack.c.b16 %v344, %v343
        %v366 = vpack.c.b16 %v346, %v345
        %v367 = vpack.c.b16 %v348, %v347
        %v368 = vpack.c.b16 %v350, %v349
        %vm369 = vcmask 64512
        %v371 = vsel %vm369, %v351, 0
        %v374 = vsel %vm369, %v352, 0
        %v377 = vsel %vm369, %v353, 0
        %v380 = vsel %vm369, %v354, 0
        %v383 = vsel %vm369, %v355, 0
        %v386 = vsel %vm369, %v356, 0
        %v389 = vsel %vm369, %v357, 0
        %v392 = vsel %vm369, %v358, 0
        %v395 = vsel %vm369, %v359, 0
        %v398 = vsel %vm369, %v360, 0
        %v401 = vsel %vm369, %v361, 0
        %v404 = vsel %vm369, %v362, 0
        %v407 = vsel %vm369, %v363, 0
        %v410 = vsel %vm369, %v364, 0
        %v413 = vsel %vm369, %v365, 0
        %v416 = vsel %vm369, %v366, 0
        %v419 = vsel %vm369, %v367, 0
        %v422 = vsel %vm369, %v368, 0
        %vm424 = vcmask 1043456
        %v426 = vsel %vm424, %v278, 0
        %428 = vmatprep.subr.bf16.mxu0 0
        %429 = vmatpush1.bf16.msra.mxu0 %v426
        %430 = vmatprep.subr.bf16.mxu0 0
        %431 = vmatpush1.bf16.msra.mxu0 0
        %432 = vmatprep.subr.bf16.mxu0 0
        %433 = vmatpush1.bf16.msra.mxu0 0
        %434 = vmatprep.subr.bf16.mxu0 0
        %435 = vmatpush1.bf16.msra.mxu0 0
        %436 = vmatprep.subr.bf16.mxu0 0
        %437 = vmatpush1.bf16.msra.mxu0 0
        %438 = vmatprep.subr.bf16.mxu0 0
        %439 = vmatpush1.bf16.msra.mxu0 0
        %440 = vmatprep.subr.bf16.mxu0 0
        %441 = vmatpush1.bf16.msra.mxu0 0
        %442 = vmatprep.subr.bf16.mxu0 0
        %443 = vmatpush1.bf16.msra.mxu0 0
        %444 = vmatprep.subr.bf16.mxu0 0
        %445 = vmatpush1.bf16.msra.mxu0 0
        %446 = vmatprep.subr.bf16.mxu0 0
        %447 = vmatpush1.bf16.msra.mxu0 0
        %448 = vmatprep.subr.bf16.mxu0 0
        %449 = vmatpush1.bf16.msra.mxu0 0
        %450 = vmatprep.subr.bf16.mxu0 0
        %451 = vmatpush1.bf16.msra.mxu0 0
        %452 = vmatprep.subr.bf16.mxu0 0
        %453 = vmatpush1.bf16.msra.mxu0 0
        %454 = vmatprep.subr.bf16.mxu0 0
        %455 = vmatpush1.bf16.msra.mxu0 0
        %456 = vmatprep.subr.bf16.mxu0 0
        %457 = vmatpush1.bf16.msra.mxu0 0
        %458 = vmatprep.subr.bf16.mxu0 0
        %459 = vmatpush1.bf16.msra.mxu0 0
        %460 = vmatprep.mubr.bf16.mxu0 0
        %461 = vmatmul.mubr.bf16.gmra.mrb[0].mxu0 %v371
        %v462 = vpop.f32.mrb[0].mxu0
        %v463 = vadd.f32 0.0, %v462
        %v464 = vpop.f32.mrb[0].mxu0
        %v465 = vpop.f32.mrb[0].mxu0
        %v466 = vadd.f32 0.0, %v465
        %v467 = vpop.f32.mrb[0].mxu0
        %468 = vmatprep.mubr.bf16.mxu0 0
        %469 = vmatmul.mubr.bf16.gmra.mrb[0].mxu0 %v374
        %v470 = vpop.f32.mrb[0].mxu0
        %v471 = vadd.f32 0.0, %v470
        %v472 = vpop.f32.mrb[0].mxu0
        %v473 = vpop.f32.mrb[0].mxu0
        %v474 = vadd.f32 0.0, %v473
        %v475 = vpop.f32.mrb[0].mxu0
        %476 = vmatprep.mubr.bf16.mxu0 0
        %477 = vmatmul.mubr.bf16.gmra.mrb[0].mxu0 %v377
        %v478 = vpop.f32.mrb[0].mxu0
        %v479 = vadd.f32 0.0, %v478
        %v480 = vpop.f32.mrb[0].mxu0
        %v481 = vpop.f32.mrb[0].mxu0
        %v482 = vadd.f32 0.0, %v481
        %v483 = vpop.f32.mrb[0].mxu0
        %484 = vmatprep.mubr.bf16.mxu0 0
        %485 = vmatmul.mubr.bf16.gmra.mrb[0].mxu0 %v380
        %v486 = vpop.f32.mrb[0].mxu0
        %v487 = vadd.f32 0.0, %v486
        %v488 = vpop.f32.mrb[0].mxu0
        %v489 = vpop.f32.mrb[0].mxu0
        %v490 = vadd.f32 0.0, %v489
        %v491 = vpop.f32.mrb[0].mxu0
        %492 = vmatprep.mubr.bf16.mxu0 0
        %493 = vmatmul.mubr.bf16.gmra.mrb[0].mxu0 %v383
        %v494 = vpop.f32.mrb[0].mxu0
        %v495 = vadd.f32 0.0, %v494
        %v496 = vpop.f32.mrb[0].mxu0
        %v497 = vpop.f32.mrb[0].mxu0
        %v498 = vadd.f32 0.0, %v497
        %v499 = vpop.f32.mrb[0].mxu0
        %500 = vmatprep.mubr.bf16.mxu0 0
        %501 = vmatmul.mubr.bf16.gmra.mrb[0].mxu0 %v386
        %v502 = vpop.f32.mrb[0].mxu0
        %v503 = vadd.f32 0.0, %v502
        %v504 = vpop.f32.mrb[0].mxu0
        %v505 = vpop.f32.mrb[0].mxu0
        %v506 = vadd.f32 0.0, %v505
        %v507 = vpop.f32.mrb[0].mxu0
        %508 = vmatprep.mubr.bf16.mxu0 0
        %509 = vmatmul.mubr.bf16.gmra.mrb[0].mxu0 %v389
        %v510 = vpop.f32.mrb[0].mxu0
        %v511 = vadd.f32 0.0, %v510
        %v512 = vpop.f32.mrb[0].mxu0
        %v513 = vpop.f32.mrb[0].mxu0
        %v514 = vadd.f32 0.0, %v513
        %v515 = vpop.f32.mrb[0].mxu0
        %516 = vmatprep.mubr.bf16.mxu0 0
        %517 = vmatmul.mubr.bf16.gmra.mrb[0].mxu0 %v392
        %v518 = vpop.f32.mrb[0].mxu0
        %v519 = vadd.f32 0.0, %v518
        %v520 = vpop.f32.mrb[0].mxu0
        %v521 = vpop.f32.mrb[0].mxu0
        %v522 = vadd.f32 0.0, %v521
        %v523 = vpop.f32.mrb[0].mxu0
        %524 = vmatprep.mubr.bf16.mxu0 0
        %525 = vmatmul.mubr.bf16.gmra.mrb[0].mxu0 %v395
        %v526 = vpop.f32.mrb[0].mxu0
        %v527 = vadd.f32 0.0, %v526
        %v528 = vpop.f32.mrb[0].mxu0
        %v529 = vpop.f32.mrb[0].mxu0
        %v530 = vadd.f32 0.0, %v529
        %v531 = vpop.f32.mrb[0].mxu0
        %532 = vmatprep.mubr.bf16.mxu0 0
        %533 = vmatmul.mubr.bf16.gmra.mrb[0].mxu0 %v398
        %v534 = vpop.f32.mrb[0].mxu0
        %v535 = vadd.f32 0.0, %v534
        %v536 = vpop.f32.mrb[0].mxu0
        %v537 = vpop.f32.mrb[0].mxu0
        %v538 = vadd.f32 0.0, %v537
        %v539 = vpop.f32.mrb[0].mxu0
        %540 = vmatprep.mubr.bf16.mxu0 0
        %541 = vmatmul.mubr.bf16.gmra.mrb[0].mxu0 %v401
        %v542 = vpop.f32.mrb[0].mxu0
        %v543 = vadd.f32 0.0, %v542
        %v544 = vpop.f32.mrb[0].mxu0
        %v545 = vpop.f32.mrb[0].mxu0
        %v546 = vadd.f32 0.0, %v545
        %v547 = vpop.f32.mrb[0].mxu0
        %548 = vmatprep.mubr.bf16.mxu0 0
        %549 = vmatmul.mubr.bf16.gmra.mrb[0].mxu0 %v404
        %v550 = vpop.f32.mrb[0].mxu0
        %v551 = vadd.f32 0.0, %v550
        %v552 = vpop.f32.mrb[0].mxu0
        %v553 = vpop.f32.mrb[0].mxu0
        %v554 = vadd.f32 0.0, %v553
        %v555 = vpop.f32.mrb[0].mxu0
        %556 = vmatprep.mubr.bf16.mxu0 0
        %557 = vmatmul.mubr.bf16.gmra.mrb[0].mxu0 %v407
        %v558 = vpop.f32.mrb[0].mxu0
        %v559 = vadd.f32 0.0, %v558
        %v560 = vpop.f32.mrb[0].mxu0
        %v561 = vpop.f32.mrb[0].mxu0
        %v562 = vadd.f32 0.0, %v561
        %v563 = vpop.f32.mrb[0].mxu0
        %564 = vmatprep.mubr.bf16.mxu0 0
        %565 = vmatmul.mubr.bf16.gmra.mrb[0].mxu0 %v410
        %v566 = vpop.f32.mrb[0].mxu0
        %v567 = vadd.f32 0.0, %v566
        %v568 = vpop.f32.mrb[0].mxu0
        %v569 = vpop.f32.mrb[0].mxu0
        %v570 = vadd.f32 0.0, %v569
        %v571 = vpop.f32.mrb[0].mxu0
        %572 = vmatprep.mubr.bf16.mxu0 0
        %573 = vmatmul.mubr.bf16.gmra.mrb[0].mxu0 %v413
        %v574 = vpop.f32.mrb[0].mxu0
        %v575 = vadd.f32 0.0, %v574
        %v576 = vpop.f32.mrb[0].mxu0
        %v577 = vpop.f32.mrb[0].mxu0
        %v578 = vadd.f32 0.0, %v577
        %v579 = vpop.f32.mrb[0].mxu0
        %580 = vmatprep.mubr.bf16.mxu0 0
        %581 = vmatmul.mubr.bf16.gmra.mrb[0].mxu0 %v416
        %v582 = vpop.f32.mrb[0].mxu0
        %v583 = vadd.f32 0.0, %v582
        %v584 = vpop.f32.mrb[0].mxu0
        %v585 = vpop.f32.mrb[0].mxu0
        %v586 = vadd.f32 0.0, %v585
        %v587 = vpop.f32.mrb[0].mxu0
        %588 = vmatprep.mubr.bf16.mxu0 0
        %589 = vmatmul.mubr.bf16.gmra.mrb[0].mxu0 %v419
        %v590 = vpop.f32.mrb[0].mxu0
        %v591 = vadd.f32 0.0, %v590
        %v592 = vpop.f32.mrb[0].mxu0
        %v593 = vpop.f32.mrb[0].mxu0
        %v594 = vadd.f32 0.0, %v593
        %v595 = vpop.f32.mrb[0].mxu0
        %596 = vmatprep.mubr.bf16.mxu0 0
        %597 = vmatmul.mubr.bf16.gmra.mrb[0].mxu0 %v422
        %v598 = vpop.f32.mrb[0].mxu0
        %v599 = vadd.f32 0.0, %v598
        %v600 = vpop.f32.mrb[0].mxu0
        %v601 = vpop.f32.mrb[0].mxu0
        %v602 = vadd.f32 0.0, %v601
        %v603 = vpop.f32.mrb[0].mxu0
        %604 = vdwg.mxu0
        %v605 = vadd.f32 %v242, %v463
        %v606 = vadd.f32 %v243, %v466
        %v607 = vadd.f32 %v244, %v471
        %v608 = vadd.f32 %v245, %v474
        %v609 = vadd.f32 %v246, %v479
        %v610 = vadd.f32 %v247, %v482
        %v611 = vadd.f32 %v248, %v487
        %v612 = vadd.f32 %v249, %v490
        %v613 = vadd.f32 %v250, %v495
        %v614 = vadd.f32 %v251, %v498
        %v615 = vadd.f32 %v252, %v503
        %v616 = vadd.f32 %v253, %v506
        %v617 = vadd.f32 %v254, %v511
        %v618 = vadd.f32 %v255, %v514
        %v619 = vadd.f32 %v256, %v519
        %v620 = vadd.f32 %v257, %v522
        %v621 = vadd.f32 %v258, %v527
        %v622 = vadd.f32 %v259, %v530
        %v623 = vadd.f32 %v260, %v535
        %v624 = vadd.f32 %v261, %v538
        %v625 = vadd.f32 %v262, %v543
        %v626 = vadd.f32 %v263, %v546
        %v627 = vadd.f32 %v264, %v551
        %v628 = vadd.f32 %v265, %v554
        %v629 = vadd.f32 %v266, %v559
        %v630 = vadd.f32 %v267, %v562
        %v631 = vadd.f32 %v268, %v567
        %v632 = vadd.f32 %v269, %v570
        %v633 = vadd.f32 %v270, %v575
        %v634 = vadd.f32 %v271, %v578
        %v635 = vadd.f32 %v272, %v583
        %v636 = vadd.f32 %v273, %v586
        %v637 = vadd.f32 %v274, %v591
        %v638 = vadd.f32 %v275, %v594
        %v639 = vadd.f32 %v276, %v599
        %v640 = vadd.f32 %v277, %v602
        %641 = vst [vmem:[#allocation2] sm:$0xff] %v605
        %642 = vst [vmem:[#allocation2 + $0x8] sm:$0xff] %v606
        %643 = vst [vmem:[#allocation2 + $0x10] sm:$0xff] %v607
        %644 = vst [vmem:[#allocation2 + $0x18] sm:$0xff] %v608
        %645 = vst [vmem:[#allocation2 + $0x20] sm:$0xff] %v609
        %646 = vst [vmem:[#allocation2 + $0x28] sm:$0xff] %v610
        %647 = vst [vmem:[#allocation2 + $0x30] sm:$0xff] %v611
        %648 = vst [vmem:[#allocation2 + $0x38] sm:$0xff] %v612
        %649 = vst [vmem:[#allocation2 + $0x40] sm:$0xff] %v613
        %650 = vst [vmem:[#allocation2 + $0x48] sm:$0xff] %v614
        %651 = vst [vmem:[#allocation2 + $0x50] sm:$0xff] %v615
        %652 = vst [vmem:[#allocation2 + $0x58] sm:$0xff] %v616
        %653 = vst [vmem:[#allocation2 + $0x60] sm:$0xff] %v617
        %654 = vst [vmem:[#allocation2 + $0x68] sm:$0xff] %v618
        %655 = vst [vmem:[#allocation2 + $0x70] sm:$0xff] %v619
        %656 = vst [vmem:[#allocation2 + $0x78] sm:$0xff] %v620
        %657 = vst [vmem:[#allocation2 + $0x80] sm:$0xff] %v621
        %658 = vst [vmem:[#allocation2 + $0x88] sm:$0xff] %v622
        %659 = vst [vmem:[#allocation2 + $0x90] sm:$0xff] %v623
        %660 = vst [vmem:[#allocation2 + $0x98] sm:$0xff] %v624
        %661 = vst [vmem:[#allocation2 + $0xa0] sm:$0xff] %v625
        %662 = vst [vmem:[#allocation2 + $0xa8] sm:$0xff] %v626
        %663 = vst [vmem:[#allocation2 + $0xb0] sm:$0xff] %v627
        %664 = vst [vmem:[#allocation2 + $0xb8] sm:$0xff] %v628
        %665 = vst [vmem:[#allocation2 + $0xc0] sm:$0xff] %v629
        %666 = vst [vmem:[#allocation2 + $0xc8] sm:$0xff] %v630
        %667 = vst [vmem:[#allocation2 + $0xd0] sm:$0xff] %v631
        %668 = vst [vmem:[#allocation2 + $0xd8] sm:$0xff] %v632
        %669 = vst [vmem:[#allocation2 + $0xe0] sm:$0xff] %v633
        %670 = vst [vmem:[#allocation2 + $0xe8] sm:$0xff] %v634
        %671 = vst [vmem:[#allocation2 + $0xf0] sm:$0xff] %v635
        %672 = vst [vmem:[#allocation2 + $0xf8] sm:$0xff] %v636
        %673 = vst [vmem:[#allocation2 + $0x100] sm:$0xff] %v637
        %674 = vst [vmem:[#allocation2 + $0x108] sm:$0xff] %v638
        %675 = vst [vmem:[#allocation2 + $0x110] sm:$0xff] %v639
        %676 = vst [vmem:[#allocation2 + $0x118] sm:$0xff] %v640
        %v677 = vld [vmem:[%s168] sm:$0xf]
        %v678 = vld [vmem:[%s168 + $0x4] sm:$0xf]
        %v679 = vld [vmem:[%s168 + $0x8] sm:$0xf]
        %v680 = vld [vmem:[%s168 + $0xc] sm:$0xf]
        %v681 = vld [vmem:[%s168 + $0x10] sm:$0xf]
        %v682 = vld [vmem:[%s168 + $0x14] sm:$0xf]
        %v683 = vld [vmem:[%s168 + $0x18] sm:$0xf]
        %v684 = vld [vmem:[%s168 + $0x1c] sm:$0xf]
        %v685 = vld [vmem:[%s168 + $0x20] sm:$0xf]
        %v686 = vld [vmem:[%s168 + $0x24] sm:$0xf]
        %v687 = vld [vmem:[%s168 + $0x28] sm:$0xf]
        %v688 = vld [vmem:[%s168 + $0x2c] sm:$0xf]
        %v689 = vld [vmem:[%s168 + $0x30] sm:$0xf]
        %v690 = vld [vmem:[%s168 + $0x34] sm:$0xf]
        %v691 = vld [vmem:[%s168 + $0x38] sm:$0xf]
        %v692 = vld [vmem:[%s168 + $0x3c] sm:$0xf]
        %v693 = vld [vmem:[%s168 + $0x40] sm:$0xf]
        %v694 = vld [vmem:[%s168 + $0x44] sm:$0xf]
        %v695 = vld [vmem:[%s168 + $0x48] sm:$0xf]
        %v696 = vld [vmem:[%s168 + $0x4c] sm:$0xf]
        %v697 = vld [vmem:[%s168 + $0x50] sm:$0xf]
        %v698 = vld [vmem:[%s168 + $0x54] sm:$0xf]
        %v699 = vld [vmem:[%s168 + $0x58] sm:$0xf]
        %v700 = vld [vmem:[%s168 + $0x5c] sm:$0xf]
        %v701 = vld [vmem:[%s168 + $0x60] sm:$0xf]
        %v702 = vld [vmem:[%s168 + $0x64] sm:$0xf]
        %v703 = vld [vmem:[%s168 + $0x68] sm:$0xf]
        %v704 = vld [vmem:[%s168 + $0x6c] sm:$0xf]
        %v705 = vld [vmem:[%s168 + $0x70] sm:$0xf]
        %v706 = vld [vmem:[%s168 + $0x74] sm:$0xf]
        %v707 = vld [vmem:[%s168 + $0x78] sm:$0xf]
        %v708 = vld [vmem:[%s168 + $0x7c] sm:$0xf]
        %v709 = vld [vmem:[%s168 + $0x80] sm:$0xf]
        %v710 = vld [vmem:[%s168 + $0x84] sm:$0xf]
        %v711 = vld [vmem:[%s168 + $0x88] sm:$0xf]
        %v712 = vld [vmem:[%s168 + $0x8c] sm:$0xf]
        %v713 = vld [vmem:[%s168 + $0x90] sm:$0x1]
        %v714 = vld [vmem:[#allocation2] sm:$0xff]
        %v715 = vld [vmem:[#allocation2 + $0x8] sm:$0xff]
        %v716 = vld [vmem:[#allocation2 + $0x10] sm:$0xff]
        %v717 = vld [vmem:[#allocation2 + $0x18] sm:$0xff]
        %v718 = vld [vmem:[#allocation2 + $0x20] sm:$0xff]
        %v719 = vld [vmem:[#allocation2 + $0x28] sm:$0xff]
        %v720 = vld [vmem:[#allocation2 + $0x30] sm:$0xff]
        %v721 = vld [vmem:[#allocation2 + $0x38] sm:$0xff]
        %v722 = vld [vmem:[#allocation2 + $0x40] sm:$0xff]
        %v723 = vld [vmem:[#allocation2 + $0x48] sm:$0xff]
        %v724 = vld [vmem:[#allocation2 + $0x50] sm:$0xff]
        %v725 = vld [vmem:[#allocation2 + $0x58] sm:$0xff]
        %v726 = vld [vmem:[#allocation2 + $0x60] sm:$0xff]
        %v727 = vld [vmem:[#allocation2 + $0x68] sm:$0xff]
        %v728 = vld [vmem:[#allocation2 + $0x70] sm:$0xff]
        %v729 = vld [vmem:[#allocation2 + $0x78] sm:$0xff]
        %v730 = vld [vmem:[#allocation2 + $0x80] sm:$0xff]
        %v731 = vld [vmem:[#allocation2 + $0x88] sm:$0xff]
        %v732 = vld [vmem:[#allocation2 + $0x90] sm:$0xff]
        %v733 = vld [vmem:[#allocation2 + $0x98] sm:$0xff]
        %v734 = vld [vmem:[#allocation2 + $0xa0] sm:$0xff]
        %v735 = vld [vmem:[#allocation2 + $0xa8] sm:$0xff]
        %v736 = vld [vmem:[#allocation2 + $0xb0] sm:$0xff]
        %v737 = vld [vmem:[#allocation2 + $0xb8] sm:$0xff]
        %v738 = vld [vmem:[#allocation2 + $0xc0] sm:$0xff]
        %v739 = vld [vmem:[#allocation2 + $0xc8] sm:$0xff]
        %v740 = vld [vmem:[#allocation2 + $0xd0] sm:$0xff]
        %v741 = vld [vmem:[#allocation2 + $0xd8] sm:$0xff]
        %v742 = vld [vmem:[#allocation2 + $0xe0] sm:$0xff]
        %v743 = vld [vmem:[#allocation2 + $0xe8] sm:$0xff]
        %v744 = vld [vmem:[#allocation2 + $0xf0] sm:$0xff]
        %v745 = vld [vmem:[#allocation2 + $0xf8] sm:$0xff]
        %v746 = vld [vmem:[#allocation2 + $0x100] sm:$0xff]
        %v747 = vld [vmem:[#allocation2 + $0x108] sm:$0xff]
        %v748 = vld [vmem:[#allocation2 + $0x110] sm:$0xff]
        %v749 = vld [vmem:[#allocation2 + $0x118] sm:$0xff]
        %s750 = scalar_lea.vmem %s1, 4
        %v751 = vld [vmem:[%s750] sm:$0xf]
        %v789 = vunpack.c.l.b16 %v677
        %v790 = vunpack.c.l.b16 %v678
        %v791 = vunpack.c.l.b16 %v679
        %v792 = vunpack.c.l.b16 %v680
        %v793 = vunpack.c.l.b16 %v681
        %v794 = vunpack.c.l.b16 %v682
        %v795 = vunpack.c.l.b16 %v683
        %v796 = vunpack.c.l.b16 %v684
        %v797 = vunpack.c.l.b16 %v685
        %v798 = vunpack.c.l.b16 %v686
        %v799 = vunpack.c.l.b16 %v687
        %v800 = vunpack.c.l.b16 %v688
        %v801 = vunpack.c.l.b16 %v689
        %v802 = vunpack.c.l.b16 %v690
        %v803 = vunpack.c.l.b16 %v691
        %v804 = vunpack.c.l.b16 %v692
        %v805 = vunpack.c.l.b16 %v693
        %v806 = vunpack.c.l.b16 %v694
        %v807 = vunpack.c.l.b16 %v695
        %v808 = vunpack.c.l.b16 %v696
        %v809 = vunpack.c.l.b16 %v697
        %v810 = vunpack.c.l.b16 %v698
        %v811 = vunpack.c.l.b16 %v699
        %v812 = vunpack.c.l.b16 %v700
        %v813 = vunpack.c.l.b16 %v701
        %v814 = vunpack.c.l.b16 %v702
        %v815 = vunpack.c.l.b16 %v703
        %v816 = vunpack.c.l.b16 %v704
        %v817 = vunpack.c.l.b16 %v705
        %v818 = vunpack.c.l.b16 %v706
        %v819 = vunpack.c.l.b16 %v707
        %v820 = vunpack.c.l.b16 %v708
        %v821 = vunpack.c.l.b16 %v709
        %v822 = vunpack.c.l.b16 %v710
        %v823 = vunpack.c.l.b16 %v711
        %v824 = vunpack.c.l.b16 %v712
        %v825 = vunpack.c.l.b16 %v713
        %v826 = vpack.c.b16 %v790, %v789
        %v827 = vpack.c.b16 %v792, %v791
        %v828 = vpack.c.b16 %v794, %v793
        %v829 = vpack.c.b16 %v796, %v795
        %v830 = vpack.c.b16 %v798, %v797
        %v831 = vpack.c.b16 %v800, %v799
        %v832 = vpack.c.b16 %v802, %v801
        %v833 = vpack.c.b16 %v804, %v803
        %v834 = vpack.c.b16 %v806, %v805
        %v835 = vpack.c.b16 %v808, %v807
        %v836 = vpack.c.b16 %v810, %v809
        %v837 = vpack.c.b16 %v812, %v811
        %v838 = vpack.c.b16 %v814, %v813
        %v839 = vpack.c.b16 %v816, %v815
        %v840 = vpack.c.b16 %v818, %v817
        %v841 = vpack.c.b16 %v820, %v819
        %v842 = vpack.c.b16 %v822, %v821
        %v843 = vpack.c.b16 %v824, %v823
        %v844 = vpack.c.b16 %v825, %v825
        %vm845 = vsmask.f32 7424
        %v847 = vshrl.u32 %v826, 16
        %v849 = vshll.u32 %v826, 16
        %v851 = vrot.slane %v849, 1
        %v852 = vor.u32 %v847, %v851
        %v854 = vshll.u32 %v827, 16
        %v856 = vrot.slane %v854, 1
        %v857 = vsel %vm845, %v852, %v856
        %v858 = vshrl.u32 %v827, 16
        %v860 = vor.u32 %v858, %v856
        %v862 = vshll.u32 %v828, 16
        %v864 = vrot.slane %v862, 1
        %v865 = vsel %vm845, %v860, %v864
        %v866 = vshrl.u32 %v828, 16
        %v868 = vor.u32 %v866, %v864
        %v870 = vshll.u32 %v829, 16
        %v872 = vrot.slane %v870, 1
        %v873 = vsel %vm845, %v868, %v872
        %v874 = vshrl.u32 %v829, 16
        %v876 = vor.u32 %v874, %v872
        %v878 = vshll.u32 %v830, 16
        %v880 = vrot.slane %v878, 1
        %v881 = vsel %vm845, %v876, %v880
        %v882 = vshrl.u32 %v830, 16
        %v884 = vor.u32 %v882, %v880
        %v886 = vshll.u32 %v831, 16
        %v888 = vrot.slane %v886, 1
        %v889 = vsel %vm845, %v884, %v888
        %v890 = vshrl.u32 %v831, 16
        %v892 = vor.u32 %v890, %v888
        %v894 = vshll.u32 %v832, 16
        %v896 = vrot.slane %v894, 1
        %v897 = vsel %vm845, %v892, %v896
        %v898 = vshrl.u32 %v832, 16
        %v900 = vor.u32 %v898, %v896
        %v902 = vshll.u32 %v833, 16
        %v904 = vrot.slane %v902, 1
        %v905 = vsel %vm845, %v900, %v904
        %v906 = vshrl.u32 %v833, 16
        %v908 = vor.u32 %v906, %v904
        %v910 = vshll.u32 %v834, 16
        %v912 = vrot.slane %v910, 1
        %v913 = vsel %vm845, %v908, %v912
        %v914 = vshrl.u32 %v834, 16
        %v916 = vor.u32 %v914, %v912
        %v918 = vshll.u32 %v835, 16
        %v920 = vrot.slane %v918, 1
        %v921 = vsel %vm845, %v916, %v920
        %v922 = vshrl.u32 %v835, 16
        %v924 = vor.u32 %v922, %v920
        %v926 = vshll.u32 %v836, 16
        %v928 = vrot.slane %v926, 1
        %v929 = vsel %vm845, %v924, %v928
        %v930 = vshrl.u32 %v836, 16
        %v932 = vor.u32 %v930, %v928
        %v934 = vshll.u32 %v837, 16
        %v936 = vrot.slane %v934, 1
        %v937 = vsel %vm845, %v932, %v936
        %v938 = vshrl.u32 %v837, 16
        %v940 = vor.u32 %v938, %v936
        %v942 = vshll.u32 %v838, 16
        %v944 = vrot.slane %v942, 1
        %v945 = vsel %vm845, %v940, %v944
        %v946 = vshrl.u32 %v838, 16
        %v948 = vor.u32 %v946, %v944
        %v950 = vshll.u32 %v839, 16
        %v952 = vrot.slane %v950, 1
        %v953 = vsel %vm845, %v948, %v952
        %v954 = vshrl.u32 %v839, 16
        %v956 = vor.u32 %v954, %v952
        %v958 = vshll.u32 %v840, 16
        %v960 = vrot.slane %v958, 1
        %v961 = vsel %vm845, %v956, %v960
        %v962 = vshrl.u32 %v840, 16
        %v964 = vor.u32 %v962, %v960
        %v966 = vshll.u32 %v841, 16
        %v968 = vrot.slane %v966, 1
        %v969 = vsel %vm845, %v964, %v968
        %v970 = vshrl.u32 %v841, 16
        %v972 = vor.u32 %v970, %v968
        %v974 = vshll.u32 %v842, 16
        %v976 = vrot.slane %v974, 1
        %v977 = vsel %vm845, %v972, %v976
        %v978 = vshrl.u32 %v842, 16
        %v980 = vor.u32 %v978, %v976
        %v982 = vshll.u32 %v843, 16
        %v984 = vrot.slane %v982, 1
        %v985 = vsel %vm845, %v980, %v984
        %v986 = vshrl.u32 %v843, 16
        %v988 = vor.u32 %v986, %v984
        %v990 = vshll.u32 %v844, 16
        %v992 = vrot.slane %v990, 1
        %v993 = vsel %vm845, %v988, %v992
        %v995 = vsel %vm369, %v857, 0
        %v998 = vsel %vm369, %v865, 0
        %v1001 = vsel %vm369, %v873, 0
        %v1004 = vsel %vm369, %v881, 0
        %v1007 = vsel %vm369, %v889, 0
        %v1010 = vsel %vm369, %v897, 0
        %v1013 = vsel %vm369, %v905, 0
        %v1016 = vsel %vm369, %v913, 0
        %v1019 = vsel %vm369, %v921, 0
        %v1022 = vsel %vm369, %v929, 0
        %v1025 = vsel %vm369, %v937, 0
        %v1028 = vsel %vm369, %v945, 0
        %v1031 = vsel %vm369, %v953, 0
        %v1034 = vsel %vm369, %v961, 0
        %v1037 = vsel %vm369, %v969, 0
        %v1040 = vsel %vm369, %v977, 0
        %v1043 = vsel %vm369, %v985, 0
        %v1046 = vsel %vm369, %v993, 0
        %v1049 = vsel %vm424, %v751, 0
        %1051 = vmatprep.subr.bf16.mxu0 0
        %1052 = vmatpush1.bf16.msra.mxu0 %v1049
        %1053 = vmatprep.subr.bf16.mxu0 0
        %1054 = vmatpush1.bf16.msra.mxu0 0
        %1055 = vmatprep.subr.bf16.mxu0 0
        %1056 = vmatpush1.bf16.msra.mxu0 0
        %1057 = vmatprep.subr.bf16.mxu0 0
        %1058 = vmatpush1.bf16.msra.mxu0 0
        %1059 = vmatprep.subr.bf16.mxu0 0
        %1060 = vmatpush1.bf16.msra.mxu0 0
        %1061 = vmatprep.subr.bf16.mxu0 0
        %1062 = vmatpush1.bf16.msra.mxu0 0
        %1063 = vmatprep.subr.bf16.mxu0 0
        %1064 = vmatpush1.bf16.msra.mxu0 0
        %1065 = vmatprep.subr.bf16.mxu0 0
        %1066 = vmatpush1.bf16.msra.mxu0 0
        %1067 = vmatprep.subr.bf16.mxu0 0
        %1068 = vmatpush1.bf16.msra.mxu0 0
        %1069 = vmatprep.subr.bf16.mxu0 0
        %1070 = vmatpush1.bf16.msra.mxu0 0
        %1071 = vmatprep.subr.bf16.mxu0 0
        %1072 = vmatpush1.bf16.msra.mxu0 0
        %1073 = vmatprep.subr.bf16.mxu0 0
        %1074 = vmatpush1.bf16.msra.mxu0 0
        %1075 = vmatprep.subr.bf16.mxu0 0
        %1076 = vmatpush1.bf16.msra.mxu0 0
        %1077 = vmatprep.subr.bf16.mxu0 0
        %1078 = vmatpush1.bf16.msra.mxu0 0
        %1079 = vmatprep.subr.bf16.mxu0 0
        %1080 = vmatpush1.bf16.msra.mxu0 0
        %1081 = vmatprep.subr.bf16.mxu0 0
        %1082 = vmatpush1.bf16.msra.mxu0 0
        %1083 = vmatprep.mubr.bf16.mxu0 0
        %1084 = vmatmul.mubr.bf16.gmra.mrb[0].mxu0 %v995
        %v1085 = vpop.f32.mrb[0].mxu0
        %v1086 = vadd.f32 0.0, %v1085
        %v1087 = vpop.f32.mrb[0].mxu0
        %v1088 = vpop.f32.mrb[0].mxu0
        %v1089 = vadd.f32 0.0, %v1088
        %v1090 = vpop.f32.mrb[0].mxu0
        %1091 = vmatprep.mubr.bf16.mxu0 0
        %1092 = vmatmul.mubr.bf16.gmra.mrb[0].mxu0 %v998
        %v1093 = vpop.f32.mrb[0].mxu0
        %v1094 = vadd.f32 0.0, %v1093
        %v1095 = vpop.f32.mrb[0].mxu0
        %v1096 = vpop.f32.mrb[0].mxu0
        %v1097 = vadd.f32 0.0, %v1096
        %v1098 = vpop.f32.mrb[0].mxu0
        %1099 = vmatprep.mubr.bf16.mxu0 0
        %1100 = vmatmul.mubr.bf16.gmra.mrb[0].mxu0 %v1001
        %v1101 = vpop.f32.mrb[0].mxu0
        %v1102 = vadd.f32 0.0, %v1101
        %v1103 = vpop.f32.mrb[0].mxu0
        %v1104 = vpop.f32.mrb[0].mxu0
        %v1105 = vadd.f32 0.0, %v1104
        %v1106 = vpop.f32.mrb[0].mxu0
        %1107 = vmatprep.mubr.bf16.mxu0 0
        %1108 = vmatmul.mubr.bf16.gmra.mrb[0].mxu0 %v1004
        %v1109 = vpop.f32.mrb[0].mxu0
        %v1110 = vadd.f32 0.0, %v1109
        %v1111 = vpop.f32.mrb[0].mxu0
        %v1112 = vpop.f32.mrb[0].mxu0
        %v1113 = vadd.f32 0.0, %v1112
        %v1114 = vpop.f32.mrb[0].mxu0
        %1115 = vmatprep.mubr.bf16.mxu0 0
        %1116 = vmatmul.mubr.bf16.gmra.mrb[0].mxu0 %v1007
        %v1117 = vpop.f32.mrb[0].mxu0
        %v1118 = vadd.f32 0.0, %v1117
        %v1119 = vpop.f32.mrb[0].mxu0
        %v1120 = vpop.f32.mrb[0].mxu0
        %v1121 = vadd.f32 0.0, %v1120
        %v1122 = vpop.f32.mrb[0].mxu0
        %1123 = vmatprep.mubr.bf16.mxu0 0
        %1124 = vmatmul.mubr.bf16.gmra.mrb[0].mxu0 %v1010
        %v1125 = vpop.f32.mrb[0].mxu0
        %v1126 = vadd.f32 0.0, %v1125
        %v1127 = vpop.f32.mrb[0].mxu0
        %v1128 = vpop.f32.mrb[0].mxu0
        %v1129 = vadd.f32 0.0, %v1128
        %v1130 = vpop.f32.mrb[0].mxu0
        %1131 = vmatprep.mubr.bf16.mxu0 0
        %1132 = vmatmul.mubr.bf16.gmra.mrb[0].mxu0 %v1013
        %v1133 = vpop.f32.mrb[0].mxu0
        %v1134 = vadd.f32 0.0, %v1133
        %v1135 = vpop.f32.mrb[0].mxu0
        %v1136 = vpop.f32.mrb[0].mxu0
        %v1137 = vadd.f32 0.0, %v1136
        %v1138 = vpop.f32.mrb[0].mxu0
        %1139 = vmatprep.mubr.bf16.mxu0 0
        %1140 = vmatmul.mubr.bf16.gmra.mrb[0].mxu0 %v1016
        %v1141 = vpop.f32.mrb[0].mxu0
        %v1142 = vadd.f32 0.0, %v1141
        %v1143 = vpop.f32.mrb[0].mxu0
        %v1144 = vpop.f32.mrb[0].mxu0
        %v1145 = vadd.f32 0.0, %v1144
        %v1146 = vpop.f32.mrb[0].mxu0
        %1147 = vmatprep.mubr.bf16.mxu0 0
        %1148 = vmatmul.mubr.bf16.gmra.mrb[0].mxu0 %v1019
        %v1149 = vpop.f32.mrb[0].mxu0
        %v1150 = vadd.f32 0.0, %v1149
        %v1151 = vpop.f32.mrb[0].mxu0
        %v1152 = vpop.f32.mrb[0].mxu0
        %v1153 = vadd.f32 0.0, %v1152
        %v1154 = vpop.f32.mrb[0].mxu0
        %1155 = vmatprep.mubr.bf16.mxu0 0
        %1156 = vmatmul.mubr.bf16.gmra.mrb[0].mxu0 %v1022
        %v1157 = vpop.f32.mrb[0].mxu0
        %v1158 = vadd.f32 0.0, %v1157
        %v1159 = vpop.f32.mrb[0].mxu0
        %v1160 = vpop.f32.mrb[0].mxu0
        %v1161 = vadd.f32 0.0, %v1160
        %v1162 = vpop.f32.mrb[0].mxu0
        %1163 = vmatprep.mubr.bf16.mxu0 0
        %1164 = vmatmul.mubr.bf16.gmra.mrb[0].mxu0 %v1025
        %v1165 = vpop.f32.mrb[0].mxu0
        %v1166 = vadd.f32 0.0, %v1165
        %v1167 = vpop.f32.mrb[0].mxu0
        %v1168 = vpop.f32.mrb[0].mxu0
        %v1169 = vadd.f32 0.0, %v1168
        %v1170 = vpop.f32.mrb[0].mxu0
        %1171 = vmatprep.mubr.bf16.mxu0 0
        %1172 = vmatmul.mubr.bf16.gmra.mrb[0].mxu0 %v1028
        %v1173 = vpop.f32.mrb[0].mxu0
        %v1174 = vadd.f32 0.0, %v1173
        %v1175 = vpop.f32.mrb[0].mxu0
        %v1176 = vpop.f32.mrb[0].mxu0
        %v1177 = vadd.f32 0.0, %v1176
        %v1178 = vpop.f32.mrb[0].mxu0
        %1179 = vmatprep.mubr.bf16.mxu0 0
        %1180 = vmatmul.mubr.bf16.gmra.mrb[0].mxu0 %v1031
        %v1181 = vpop.f32.mrb[0].mxu0
        %v1182 = vadd.f32 0.0, %v1181
        %v1183 = vpop.f32.mrb[0].mxu0
        %v1184 = vpop.f32.mrb[0].mxu0
        %v1185 = vadd.f32 0.0, %v1184
        %v1186 = vpop.f32.mrb[0].mxu0
        %1187 = vmatprep.mubr.bf16.mxu0 0
        %1188 = vmatmul.mubr.bf16.gmra.mrb[0].mxu0 %v1034
        %v1189 = vpop.f32.mrb[0].mxu0
        %v1190 = vadd.f32 0.0, %v1189
        %v1191 = vpop.f32.mrb[0].mxu0
        %v1192 = vpop.f32.mrb[0].mxu0
        %v1193 = vadd.f32 0.0, %v1192
        %v1194 = vpop.f32.mrb[0].mxu0
        %1195 = vmatprep.mubr.bf16.mxu0 0
        %1196 = vmatmul.mubr.bf16.gmra.mrb[0].mxu0 %v1037
        %v1197 = vpop.f32.mrb[0].mxu0
        %v1198 = vadd.f32 0.0, %v1197
        %v1199 = vpop.f32.mrb[0].mxu0
        %v1200 = vpop.f32.mrb[0].mxu0
        %v1201 = vadd.f32 0.0, %v1200
        %v1202 = vpop.f32.mrb[0].mxu0
        %1203 = vmatprep.mubr.bf16.mxu0 0
        %1204 = vmatmul.mubr.bf16.gmra.mrb[0].mxu0 %v1040
        %v1205 = vpop.f32.mrb[0].mxu0
        %v1206 = vadd.f32 0.0, %v1205
        %v1207 = vpop.f32.mrb[0].mxu0
        %v1208 = vpop.f32.mrb[0].mxu0
        %v1209 = vadd.f32 0.0, %v1208
        %v1210 = vpop.f32.mrb[0].mxu0
        %1211 = vmatprep.mubr.bf16.mxu0 0
        %1212 = vmatmul.mubr.bf16.gmra.mrb[0].mxu0 %v1043
        %v1213 = vpop.f32.mrb[0].mxu0
        %v1214 = vadd.f32 0.0, %v1213
        %v1215 = vpop.f32.mrb[0].mxu0
        %v1216 = vpop.f32.mrb[0].mxu0
        %v1217 = vadd.f32 0.0, %v1216
        %v1218 = vpop.f32.mrb[0].mxu0
        %1219 = vmatprep.mubr.bf16.mxu0 0
        %1220 = vmatmul.mubr.bf16.gmra.mrb[0].mxu0 %v1046
        %v1221 = vpop.f32.mrb[0].mxu0
        %v1222 = vadd.f32 0.0, %v1221
        %v1223 = vpop.f32.mrb[0].mxu0
        %v1224 = vpop.f32.mrb[0].mxu0
        %v1225 = vadd.f32 0.0, %v1224
        %v1226 = vpop.f32.mrb[0].mxu0
        %1227 = vdwg.mxu0
        %v1228 = vadd.f32 %v714, %v1086
        %v1229 = vadd.f32 %v715, %v1089
        %v1230 = vadd.f32 %v716, %v1094
        %v1231 = vadd.f32 %v717, %v1097
        %v1232 = vadd.f32 %v718, %v1102
        %v1233 = vadd.f32 %v719, %v1105
        %v1234 = vadd.f32 %v720, %v1110
        %v1235 = vadd.f32 %v721, %v1113
        %v1236 = vadd.f32 %v722, %v1118
        %v1237 = vadd.f32 %v723, %v1121
        %v1238 = vadd.f32 %v724, %v1126
        %v1239 = vadd.f32 %v725, %v1129
        %v1240 = vadd.f32 %v726, %v1134
        %v1241 = vadd.f32 %v727, %v1137
        %v1242 = vadd.f32 %v728, %v1142
        %v1243 = vadd.f32 %v729, %v1145
        %v1244 = vadd.f32 %v730, %v1150
        %v1245 = vadd.f32 %v731, %v1153
        %v1246 = vadd.f32 %v732, %v1158
        %v1247 = vadd.f32 %v733, %v1161
        %v1248 = vadd.f32 %v734, %v1166
        %v1249 = vadd.f32 %v735, %v1169
        %v1250 = vadd.f32 %v736, %v1174
        %v1251 = vadd.f32 %v737, %v1177
        %v1252 = vadd.f32 %v738, %v1182
        %v1253 = vadd.f32 %v739, %v1185
        %v1254 = vadd.f32 %v740, %v1190
        %v1255 = vadd.f32 %v741, %v1193
        %v1256 = vadd.f32 %v742, %v1198
        %v1257 = vadd.f32 %v743, %v1201
        %v1258 = vadd.f32 %v744, %v1206
        %v1259 = vadd.f32 %v745, %v1209
        %v1260 = vadd.f32 %v746, %v1214
        %v1261 = vadd.f32 %v747, %v1217
        %v1262 = vadd.f32 %v748, %v1222
        %v1263 = vadd.f32 %v749, %v1225
        %1264 = vst [vmem:[#allocation2] sm:$0xff] %v1228
        %1265 = vst [vmem:[#allocation2 + $0x8] sm:$0xff] %v1229
        %1266 = vst [vmem:[#allocation2 + $0x10] sm:$0xff] %v1230
        %1267 = vst [vmem:[#allocation2 + $0x18] sm:$0xff] %v1231
        %1268 = vst [vmem:[#allocation2 + $0x20] sm:$0xff] %v1232
        %1269 = vst [vmem:[#allocation2 + $0x28] sm:$0xff] %v1233
        %1270 = vst [vmem:[#allocation2 + $0x30] sm:$0xff] %v1234
        %1271 = vst [vmem:[#allocation2 + $0x38] sm:$0xff] %v1235
        %1272 = vst [vmem:[#allocation2 + $0x40] sm:$0xff] %v1236
        %1273 = vst [vmem:[#allocation2 + $0x48] sm:$0xff] %v1237
        %1274 = vst [vmem:[#allocation2 + $0x50] sm:$0xff] %v1238
        %1275 = vst [vmem:[#allocation2 + $0x58] sm:$0xff] %v1239
        %1276 = vst [vmem:[#allocation2 + $0x60] sm:$0xff] %v1240
        %1277 = vst [vmem:[#allocation2 + $0x68] sm:$0xff] %v1241
        %1278 = vst [vmem:[#allocation2 + $0x70] sm:$0xff] %v1242
        %1279 = vst [vmem:[#allocation2 + $0x78] sm:$0xff] %v1243
        %1280 = vst [vmem:[#allocation2 + $0x80] sm:$0xff] %v1244
        %1281 = vst [vmem:[#allocation2 + $0x88] sm:$0xff] %v1245
        %1282 = vst [vmem:[#allocation2 + $0x90] sm:$0xff] %v1246
        %1283 = vst [vmem:[#allocation2 + $0x98] sm:$0xff] %v1247
        %1284 = vst [vmem:[#allocation2 + $0xa0] sm:$0xff] %v1248
        %1285 = vst [vmem:[#allocation2 + $0xa8] sm:$0xff] %v1249
        %1286 = vst [vmem:[#allocation2 + $0xb0] sm:$0xff] %v1250
        %1287 = vst [vmem:[#allocation2 + $0xb8] sm:$0xff] %v1251
        %1288 = vst [vmem:[#allocation2 + $0xc0] sm:$0xff] %v1252
        %1289 = vst [vmem:[#allocation2 + $0xc8] sm:$0xff] %v1253
        %1290 = vst [vmem:[#allocation2 + $0xd0] sm:$0xff] %v1254
        %1291 = vst [vmem:[#allocation2 + $0xd8] sm:$0xff] %v1255
        %1292 = vst [vmem:[#allocation2 + $0xe0] sm:$0xff] %v1256
        %1293 = vst [vmem:[#allocation2 + $0xe8] sm:$0xff] %v1257
        %1294 = vst [vmem:[#allocation2 + $0xf0] sm:$0xff] %v1258
        %1295 = vst [vmem:[#allocation2 + $0xf8] sm:$0xff] %v1259
        %1296 = vst [vmem:[#allocation2 + $0x100] sm:$0xff] %v1260
        %1297 = vst [vmem:[#allocation2 + $0x108] sm:$0xff] %v1261
        %1298 = vst [vmem:[#allocation2 + $0x110] sm:$0xff] %v1262
        %1299 = vst [vmem:[#allocation2 + $0x118] sm:$0xff] %v1263
        %v1300 = vld [vmem:[%s168] sm:$0xe]
        %v1301 = vld [vmem:[%s168 + $0x4] sm:$0xf]
        %v1302 = vld [vmem:[%s168 + $0x8] sm:$0xf]
        %v1303 = vld [vmem:[%s168 + $0xc] sm:$0xf]
        %v1304 = vld [vmem:[%s168 + $0x10] sm:$0xf]
        %v1305 = vld [vmem:[%s168 + $0x14] sm:$0xf]
        %v1306 = vld [vmem:[%s168 + $0x18] sm:$0xf]
        %v1307 = vld [vmem:[%s168 + $0x1c] sm:$0xf]
        %v1308 = vld [vmem:[%s168 + $0x20] sm:$0xf]
        %v1309 = vld [vmem:[%s168 + $0x24] sm:$0xf]
        %v1310 = vld [vmem:[%s168 + $0x28] sm:$0xf]
        %v1311 = vld [vmem:[%s168 + $0x2c] sm:$0xf]
        %v1312 = vld [vmem:[%s168 + $0x30] sm:$0xf]
        %v1313 = vld [vmem:[%s168 + $0x34] sm:$0xf]
        %v1314 = vld [vmem:[%s168 + $0x38] sm:$0xf]
        %v1315 = vld [vmem:[%s168 + $0x3c] sm:$0xf]
        %v1316 = vld [vmem:[%s168 + $0x40] sm:$0xf]
        %v1317 = vld [vmem:[%s168 + $0x44] sm:$0xf]
        %v1318 = vld [vmem:[%s168 + $0x48] sm:$0xf]
        %v1319 = vld [vmem:[%s168 + $0x4c] sm:$0xf]
        %v1320 = vld [vmem:[%s168 + $0x50] sm:$0xf]
        %v1321 = vld [vmem:[%s168 + $0x54] sm:$0xf]
        %v1322 = vld [vmem:[%s168 + $0x58] sm:$0xf]
        %v1323 = vld [vmem:[%s168 + $0x5c] sm:$0xf]
        %v1324 = vld [vmem:[%s168 + $0x60] sm:$0xf]
        %v1325 = vld [vmem:[%s168 + $0x64] sm:$0xf]
        %v1326 = vld [vmem:[%s168 + $0x68] sm:$0xf]
        %v1327 = vld [vmem:[%s168 + $0x6c] sm:$0xf]
        %v1328 = vld [vmem:[%s168 + $0x70] sm:$0xf]
        %v1329 = vld [vmem:[%s168 + $0x74] sm:$0xf]
        %v1330 = vld [vmem:[%s168 + $0x78] sm:$0xf]
        %v1331 = vld [vmem:[%s168 + $0x7c] sm:$0xf]
        %v1332 = vld [vmem:[%s168 + $0x80] sm:$0xf]
        %v1333 = vld [vmem:[%s168 + $0x84] sm:$0xf]
        %v1334 = vld [vmem:[%s168 + $0x88] sm:$0xf]
        %v1335 = vld [vmem:[%s168 + $0x8c] sm:$0xf]
        %v1336 = vld [vmem:[%s168 + $0x90] sm:$0x1]
        %v1337 = vld [vmem:[#allocation2] sm:$0xff]
        %v1338 = vld [vmem:[#allocation2 + $0x8] sm:$0xff]
        %v1339 = vld [vmem:[#allocation2 + $0x10] sm:$0xff]
        %v1340 = vld [vmem:[#allocation2 + $0x18] sm:$0xff]
        %v1341 = vld [vmem:[#allocation2 + $0x20] sm:$0xff]
        %v1342 = vld [vmem:[#allocation2 + $0x28] sm:$0xff]
        %v1343 = vld [vmem:[#allocation2 + $0x30] sm:$0xff]
        %v1344 = vld [vmem:[#allocation2 + $0x38] sm:$0xff]
        %v1345 = vld [vmem:[#allocation2 + $0x40] sm:$0xff]
        %v1346 = vld [vmem:[#allocation2 + $0x48] sm:$0xff]
        %v1347 = vld [vmem:[#allocation2 + $0x50] sm:$0xff]
        %v1348 = vld [vmem:[#allocation2 + $0x58] sm:$0xff]
        %v1349 = vld [vmem:[#allocation2 + $0x60] sm:$0xff]
        %v1350 = vld [vmem:[#allocation2 + $0x68] sm:$0xff]
        %v1351 = vld [vmem:[#allocation2 + $0x70] sm:$0xff]
        %v1352 = vld [vmem:[#allocation2 + $0x78] sm:$0xff]
        %v1353 = vld [vmem:[#allocation2 + $0x80] sm:$0xff]
        %v1354 = vld [vmem:[#allocation2 + $0x88] sm:$0xff]
        %v1355 = vld [vmem:[#allocation2 + $0x90] sm:$0xff]
        %v1356 = vld [vmem:[#allocation2 + $0x98] sm:$0xff]
        %v1357 = vld [vmem:[#allocation2 + $0xa0] sm:$0xff]
        %v1358 = vld [vmem:[#allocation2 + $0xa8] sm:$0xff]
        %v1359 = vld [vmem:[#allocation2 + $0xb0] sm:$0xff]
        %v1360 = vld [vmem:[#allocation2 + $0xb8] sm:$0xff]
        %v1361 = vld [vmem:[#allocation2 + $0xc0] sm:$0xff]
        %v1362 = vld [vmem:[#allocation2 + $0xc8] sm:$0xff]
        %v1363 = vld [vmem:[#allocation2 + $0xd0] sm:$0xff]
        %v1364 = vld [vmem:[#allocation2 + $0xd8] sm:$0xff]
        %v1365 = vld [vmem:[#allocation2 + $0xe0] sm:$0xff]
        %v1366 = vld [vmem:[#allocation2 + $0xe8] sm:$0xff]
        %v1367 = vld [vmem:[#allocation2 + $0xf0] sm:$0xff]
        %v1368 = vld [vmem:[#allocation2 + $0xf8] sm:$0xff]
        %v1369 = vld [vmem:[#allocation2 + $0x100] sm:$0xff]
        %v1370 = vld [vmem:[#allocation2 + $0x108] sm:$0xff]
        %v1371 = vld [vmem:[#allocation2 + $0x110] sm:$0xff]
        %v1372 = vld [vmem:[#allocation2 + $0x118] sm:$0xff]
        %s1373 = scalar_lea.vmem %s1, 8
        %v1374 = vld [vmem:[%s1373] sm:$0xf]
        %v1412 = vunpack.c.l.b16 %v1300
        %v1413 = vunpack.c.l.b16 %v1301
        %v1414 = vunpack.c.l.b16 %v1302
        %v1415 = vunpack.c.l.b16 %v1303
        %v1416 = vunpack.c.l.b16 %v1304
        %v1417 = vunpack.c.l.b16 %v1305
        %v1418 = vunpack.c.l.b16 %v1306
        %v1419 = vunpack.c.l.b16 %v1307
        %v1420 = vunpack.c.l.b16 %v1308
        %v1421 = vunpack.c.l.b16 %v1309
        %v1422 = vunpack.c.l.b16 %v1310
        %v1423 = vunpack.c.l.b16 %v1311
        %v1424 = vunpack.c.l.b16 %v1312
        %v1425 = vunpack.c.l.b16 %v1313
        %v1426 = vunpack.c.l.b16 %v1314
        %v1427 = vunpack.c.l.b16 %v1315
        %v1428 = vunpack.c.l.b16 %v1316
        %v1429 = vunpack.c.l.b16 %v1317
        %v1430 = vunpack.c.l.b16 %v1318
        %v1431 = vunpack.c.l.b16 %v1319
        %v1432 = vunpack.c.l.b16 %v1320
        %v1433 = vunpack.c.l.b16 %v1321
        %v1434 = vunpack.c.l.b16 %v1322
        %v1435 = vunpack.c.l.b16 %v1323
        %v1436 = vunpack.c.l.b16 %v1324
        %v1437 = vunpack.c.l.b16 %v1325
        %v1438 = vunpack.c.l.b16 %v1326
        %v1439 = vunpack.c.l.b16 %v1327
        %v1440 = vunpack.c.l.b16 %v1328
        %v1441 = vunpack.c.l.b16 %v1329
        %v1442 = vunpack.c.l.b16 %v1330
        %v1443 = vunpack.c.l.b16 %v1331
        %v1444 = vunpack.c.l.b16 %v1332
        %v1445 = vunpack.c.l.b16 %v1333
        %v1446 = vunpack.c.l.b16 %v1334
        %v1447 = vunpack.c.l.b16 %v1335
        %v1448 = vunpack.c.l.b16 %v1336
        %v1449 = vpack.c.b16 %v1413, %v1412
        %v1450 = vpack.c.b16 %v1415, %v1414
        %v1451 = vpack.c.b16 %v1417, %v1416
        %v1452 = vpack.c.b16 %v1419, %v1418
        %v1453 = vpack.c.b16 %v1421, %v1420
        %v1454 = vpack.c.b16 %v1423, %v1422
        %v1455 = vpack.c.b16 %v1425, %v1424
        %v1456 = vpack.c.b16 %v1427, %v1426
        %v1457 = vpack.c.b16 %v1429, %v1428
        %v1458 = vpack.c.b16 %v1431, %v1430
        %v1459 = vpack.c.b16 %v1433, %v1432
        %v1460 = vpack.c.b16 %v1435, %v1434
        %v1461 = vpack.c.b16 %v1437, %v1436
        %v1462 = vpack.c.b16 %v1439, %v1438
        %v1463 = vpack.c.b16 %v1441, %v1440
        %v1464 = vpack.c.b16 %v1443, %v1442
        %v1465 = vpack.c.b16 %v1445, %v1444
        %v1466 = vpack.c.b16 %v1447, %v1446
        %v1467 = vpack.c.b16 %v1448, %v1448
        %vm1468 = vcmask 1046528
        %v1469 = vrot.slane %v1449, 1
        %v1470 = vrot.slane %v1450, 1
        %v1471 = vsel %vm1468, %v1469, %v1470
        %v1472 = vrot.slane %v1451, 1
        %v1473 = vsel %vm1468, %v1470, %v1472
        %v1474 = vrot.slane %v1452, 1
        %v1475 = vsel %vm1468, %v1472, %v1474
        %v1476 = vrot.slane %v1453, 1
        %v1477 = vsel %vm1468, %v1474, %v1476
        %v1478 = vrot.slane %v1454, 1
        %v1479 = vsel %vm1468, %v1476, %v1478
        %v1480 = vrot.slane %v1455, 1
        %v1481 = vsel %vm1468, %v1478, %v1480
        %v1482 = vrot.slane %v1456, 1
        %v1483 = vsel %vm1468, %v1480, %v1482
        %v1484 = vrot.slane %v1457, 1
        %v1485 = vsel %vm1468, %v1482, %v1484
        %v1486 = vrot.slane %v1458, 1
        %v1487 = vsel %vm1468, %v1484, %v1486
        %v1488 = vrot.slane %v1459, 1
        %v1489 = vsel %vm1468, %v1486, %v1488
        %v1490 = vrot.slane %v1460, 1
        %v1491 = vsel %vm1468, %v1488, %v1490
        %v1492 = vrot.slane %v1461, 1
        %v1493 = vsel %vm1468, %v1490, %v1492
        %v1494 = vrot.slane %v1462, 1
        %v1495 = vsel %vm1468, %v1492, %v1494
        %v1496 = vrot.slane %v1463, 1
        %v1497 = vsel %vm1468, %v1494, %v1496
        %v1498 = vrot.slane %v1464, 1
        %v1499 = vsel %vm1468, %v1496, %v1498
        %v1500 = vrot.slane %v1465, 1
        %v1501 = vsel %vm1468, %v1498, %v1500
        %v1502 = vrot.slane %v1466, 1
        %v1503 = vsel %vm1468, %v1500, %v1502
        %v1504 = vrot.slane %v1467, 1
        %v1505 = vsel %vm1468, %v1502, %v1504
        %v1507 = vsel %vm369, %v1471, 0
        %v1510 = vsel %vm369, %v1473, 0
        %v1513 = vsel %vm369, %v1475, 0
        %v1516 = vsel %vm369, %v1477, 0
        %v1519 = vsel %vm369, %v1479, 0
        %v1522 = vsel %vm369, %v1481, 0
        %v1525 = vsel %vm369, %v1483, 0
        %v1528 = vsel %vm369, %v1485, 0
        %v1531 = vsel %vm369, %v1487, 0
        %v1534 = vsel %vm369, %v1489, 0
        %v1537 = vsel %vm369, %v1491, 0
        %v1540 = vsel %vm369, %v1493, 0
        %v1543 = vsel %vm369, %v1495, 0
        %v1546 = vsel %vm369, %v1497, 0
        %v1549 = vsel %vm369, %v1499, 0
        %v1552 = vsel %vm369, %v1501, 0
        %v1555 = vsel %vm369, %v1503, 0
        %v1558 = vsel %vm369, %v1505, 0
        %v1561 = vsel %vm424, %v1374, 0
        %1563 = vmatprep.subr.bf16.mxu0 0
        %1564 = vmatpush1.bf16.msra.mxu0 %v1561
        %1565 = vmatprep.subr.bf16.mxu0 0
        %1566 = vmatpush1.bf16.msra.mxu0 0
        %1567 = vmatprep.subr.bf16.mxu0 0
        %1568 = vmatpush1.bf16.msra.mxu0 0
        %1569 = vmatprep.subr.bf16.mxu0 0
        %1570 = vmatpush1.bf16.msra.mxu0 0
        %1571 = vmatprep.subr.bf16.mxu0 0
        %1572 = vmatpush1.bf16.msra.mxu0 0
        %1573 = vmatprep.subr.bf16.mxu0 0
        %1574 = vmatpush1.bf16.msra.mxu0 0
        %1575 = vmatprep.subr.bf16.mxu0 0
        %1576 = vmatpush1.bf16.msra.mxu0 0
        %1577 = vmatprep.subr.bf16.mxu0 0
        %1578 = vmatpush1.bf16.msra.mxu0 0
        %1579 = vmatprep.subr.bf16.mxu0 0
        %1580 = vmatpush1.bf16.msra.mxu0 0
        %1581 = vmatprep.subr.bf16.mxu0 0
        %1582 = vmatpush1.bf16.msra.mxu0 0
        %1583 = vmatprep.subr.bf16.mxu0 0
        %1584 = vmatpush1.bf16.msra.mxu0 0
        %1585 = vmatprep.subr.bf16.mxu0 0
        %1586 = vmatpush1.bf16.msra.mxu0 0
        %1587 = vmatprep.subr.bf16.mxu0 0
        %1588 = vmatpush1.bf16.msra.mxu0 0
        %1589 = vmatprep.subr.bf16.mxu0 0
        %1590 = vmatpush1.bf16.msra.mxu0 0
        %1591 = vmatprep.subr.bf16.mxu0 0
        %1592 = vmatpush1.bf16.msra.mxu0 0
        %1593 = vmatprep.subr.bf16.mxu0 0
        %1594 = vmatpush1.bf16.msra.mxu0 0
        %1595 = vmatprep.mubr.bf16.mxu0 0
        %1596 = vmatmul.mubr.bf16.gmra.mrb[0].mxu0 %v1507
        %v1597 = vpop.f32.mrb[0].mxu0
        %v1598 = vadd.f32 0.0, %v1597
        %v1599 = vpop.f32.mrb[0].mxu0
        %v1600 = vpop.f32.mrb[0].mxu0
        %v1601 = vadd.f32 0.0, %v1600
        %v1602 = vpop.f32.mrb[0].mxu0
        %1603 = vmatprep.mubr.bf16.mxu0 0
        %1604 = vmatmul.mubr.bf16.gmra.mrb[0].mxu0 %v1510
        %v1605 = vpop.f32.mrb[0].mxu0
        %v1606 = vadd.f32 0.0, %v1605
        %v1607 = vpop.f32.mrb[0].mxu0
        %v1608 = vpop.f32.mrb[0].mxu0
        %v1609 = vadd.f32 0.0, %v1608
        %v1610 = vpop.f32.mrb[0].mxu0
        %1611 = vmatprep.mubr.bf16.mxu0 0
        %1612 = vmatmul.mubr.bf16.gmra.mrb[0].mxu0 %v1513
        %v1613 = vpop.f32.mrb[0].mxu0
        %v1614 = vadd.f32 0.0, %v1613
        %v1615 = vpop.f32.mrb[0].mxu0
        %v1616 = vpop.f32.mrb[0].mxu0
        %v1617 = vadd.f32 0.0, %v1616
        %v1618 = vpop.f32.mrb[0].mxu0
        %1619 = vmatprep.mubr.bf16.mxu0 0
        %1620 = vmatmul.mubr.bf16.gmra.mrb[0].mxu0 %v1516
        %v1621 = vpop.f32.mrb[0].mxu0
        %v1622 = vadd.f32 0.0, %v1621
        %v1623 = vpop.f32.mrb[0].mxu0
        %v1624 = vpop.f32.mrb[0].mxu0
        %v1625 = vadd.f32 0.0, %v1624
        %v1626 = vpop.f32.mrb[0].mxu0
        %1627 = vmatprep.mubr.bf16.mxu0 0
        %1628 = vmatmul.mubr.bf16.gmra.mrb[0].mxu0 %v1519
        %v1629 = vpop.f32.mrb[0].mxu0
        %v1630 = vadd.f32 0.0, %v1629
        %v1631 = vpop.f32.mrb[0].mxu0
        %v1632 = vpop.f32.mrb[0].mxu0
        %v1633 = vadd.f32 0.0, %v1632
        %v1634 = vpop.f32.mrb[0].mxu0
        %1635 = vmatprep.mubr.bf16.mxu0 0
        %1636 = vmatmul.mubr.bf16.gmra.mrb[0].mxu0 %v1522
        %v1637 = vpop.f32.mrb[0].mxu0
        %v1638 = vadd.f32 0.0, %v1637
        %v1639 = vpop.f32.mrb[0].mxu0
        %v1640 = vpop.f32.mrb[0].mxu0
        %v1641 = vadd.f32 0.0, %v1640
        %v1642 = vpop.f32.mrb[0].mxu0
        %1643 = vmatprep.mubr.bf16.mxu0 0
        %1644 = vmatmul.mubr.bf16.gmra.mrb[0].mxu0 %v1525
        %v1645 = vpop.f32.mrb[0].mxu0
        %v1646 = vadd.f32 0.0, %v1645
        %v1647 = vpop.f32.mrb[0].mxu0
        %v1648 = vpop.f32.mrb[0].mxu0
        %v1649 = vadd.f32 0.0, %v1648
        %v1650 = vpop.f32.mrb[0].mxu0
        %1651 = vmatprep.mubr.bf16.mxu0 0
        %1652 = vmatmul.mubr.bf16.gmra.mrb[0].mxu0 %v1528
        %v1653 = vpop.f32.mrb[0].mxu0
        %v1654 = vadd.f32 0.0, %v1653
        %v1655 = vpop.f32.mrb[0].mxu0
        %v1656 = vpop.f32.mrb[0].mxu0
        %v1657 = vadd.f32 0.0, %v1656
        %v1658 = vpop.f32.mrb[0].mxu0
        %1659 = vmatprep.mubr.bf16.mxu0 0
        %1660 = vmatmul.mubr.bf16.gmra.mrb[0].mxu0 %v1531
        %v1661 = vpop.f32.mrb[0].mxu0
        %v1662 = vadd.f32 0.0, %v1661
        %v1663 = vpop.f32.mrb[0].mxu0
        %v1664 = vpop.f32.mrb[0].mxu0
        %v1665 = vadd.f32 0.0, %v1664
        %v1666 = vpop.f32.mrb[0].mxu0
        %1667 = vmatprep.mubr.bf16.mxu0 0
        %1668 = vmatmul.mubr.bf16.gmra.mrb[0].mxu0 %v1534
        %v1669 = vpop.f32.mrb[0].mxu0
        %v1670 = vadd.f32 0.0, %v1669
        %v1671 = vpop.f32.mrb[0].mxu0
        %v1672 = vpop.f32.mrb[0].mxu0
        %v1673 = vadd.f32 0.0, %v1672
        %v1674 = vpop.f32.mrb[0].mxu0
        %1675 = vmatprep.mubr.bf16.mxu0 0
        %1676 = vmatmul.mubr.bf16.gmra.mrb[0].mxu0 %v1537
        %v1677 = vpop.f32.mrb[0].mxu0
        %v1678 = vadd.f32 0.0, %v1677
        %v1679 = vpop.f32.mrb[0].mxu0
        %v1680 = vpop.f32.mrb[0].mxu0
        %v1681 = vadd.f32 0.0, %v1680
        %v1682 = vpop.f32.mrb[0].mxu0
        %1683 = vmatprep.mubr.bf16.mxu0 0
        %1684 = vmatmul.mubr.bf16.gmra.mrb[0].mxu0 %v1540
        %v1685 = vpop.f32.mrb[0].mxu0
        %v1686 = vadd.f32 0.0, %v1685
        %v1687 = vpop.f32.mrb[0].mxu0
        %v1688 = vpop.f32.mrb[0].mxu0
        %v1689 = vadd.f32 0.0, %v1688
        %v1690 = vpop.f32.mrb[0].mxu0
        %1691 = vmatprep.mubr.bf16.mxu0 0
        %1692 = vmatmul.mubr.bf16.gmra.mrb[0].mxu0 %v1543
        %v1693 = vpop.f32.mrb[0].mxu0
        %v1694 = vadd.f32 0.0, %v1693
        %v1695 = vpop.f32.mrb[0].mxu0
        %v1696 = vpop.f32.mrb[0].mxu0
        %v1697 = vadd.f32 0.0, %v1696
        %v1698 = vpop.f32.mrb[0].mxu0
        %1699 = vmatprep.mubr.bf16.mxu0 0
        %1700 = vmatmul.mubr.bf16.gmra.mrb[0].mxu0 %v1546
        %v1701 = vpop.f32.mrb[0].mxu0
        %v1702 = vadd.f32 0.0, %v1701
        %v1703 = vpop.f32.mrb[0].mxu0
        %v1704 = vpop.f32.mrb[0].mxu0
        %v1705 = vadd.f32 0.0, %v1704
        %v1706 = vpop.f32.mrb[0].mxu0
        %1707 = vmatprep.mubr.bf16.mxu0 0
        %1708 = vmatmul.mubr.bf16.gmra.mrb[0].mxu0 %v1549
        %v1709 = vpop.f32.mrb[0].mxu0
        %v1710 = vadd.f32 0.0, %v1709
        %v1711 = vpop.f32.mrb[0].mxu0
        %v1712 = vpop.f32.mrb[0].mxu0
        %v1713 = vadd.f32 0.0, %v1712
        %v1714 = vpop.f32.mrb[0].mxu0
        %1715 = vmatprep.mubr.bf16.mxu0 0
        %1716 = vmatmul.mubr.bf16.gmra.mrb[0].mxu0 %v1552
        %v1717 = vpop.f32.mrb[0].mxu0
        %v1718 = vadd.f32 0.0, %v1717
        %v1719 = vpop.f32.mrb[0].mxu0
        %v1720 = vpop.f32.mrb[0].mxu0
        %v1721 = vadd.f32 0.0, %v1720
        %v1722 = vpop.f32.mrb[0].mxu0
        %1723 = vmatprep.mubr.bf16.mxu0 0
        %1724 = vmatmul.mubr.bf16.gmra.mrb[0].mxu0 %v1555
        %v1725 = vpop.f32.mrb[0].mxu0
        %v1726 = vadd.f32 0.0, %v1725
        %v1727 = vpop.f32.mrb[0].mxu0
        %v1728 = vpop.f32.mrb[0].mxu0
        %v1729 = vadd.f32 0.0, %v1728
        %v1730 = vpop.f32.mrb[0].mxu0
        %1731 = vmatprep.mubr.bf16.mxu0 0
        %1732 = vmatmul.mubr.bf16.gmra.mrb[0].mxu0 %v1558
        %v1733 = vpop.f32.mrb[0].mxu0
        %v1734 = vadd.f32 0.0, %v1733
        %v1735 = vpop.f32.mrb[0].mxu0
        %v1736 = vpop.f32.mrb[0].mxu0
        %v1737 = vadd.f32 0.0, %v1736
        %v1738 = vpop.f32.mrb[0].mxu0
        %1739 = vdwg.mxu0
        %v1740 = vadd.f32 %v1337, %v1598
        %v1741 = vadd.f32 %v1338, %v1601
        %v1742 = vadd.f32 %v1339, %v1606
        %v1743 = vadd.f32 %v1340, %v1609
        %v1744 = vadd.f32 %v1341, %v1614
        %v1745 = vadd.f32 %v1342, %v1617
        %v1746 = vadd.f32 %v1343, %v1622
        %v1747 = vadd.f32 %v1344, %v1625
        %v1748 = vadd.f32 %v1345, %v1630
        %v1749 = vadd.f32 %v1346, %v1633
        %v1750 = vadd.f32 %v1347, %v1638
        %v1751 = vadd.f32 %v1348, %v1641
        %v1752 = vadd.f32 %v1349, %v1646
        %v1753 = vadd.f32 %v1350, %v1649
        %v1754 = vadd.f32 %v1351, %v1654
        %v1755 = vadd.f32 %v1352, %v1657
        %v1756 = vadd.f32 %v1353, %v1662
        %v1757 = vadd.f32 %v1354, %v1665
        %v1758 = vadd.f32 %v1355, %v1670
        %v1759 = vadd.f32 %v1356, %v1673
        %v1760 = vadd.f32 %v1357, %v1678
        %v1761 = vadd.f32 %v1358, %v1681
        %v1762 = vadd.f32 %v1359, %v1686
        %v1763 = vadd.f32 %v1360, %v1689
        %v1764 = vadd.f32 %v1361, %v1694
        %v1765 = vadd.f32 %v1362, %v1697
        %v1766 = vadd.f32 %v1363, %v1702
        %v1767 = vadd.f32 %v1364, %v1705
        %v1768 = vadd.f32 %v1365, %v1710
        %v1769 = vadd.f32 %v1366, %v1713
        %v1770 = vadd.f32 %v1367, %v1718
        %v1771 = vadd.f32 %v1368, %v1721
        %v1772 = vadd.f32 %v1369, %v1726
        %v1773 = vadd.f32 %v1370, %v1729
        %v1774 = vadd.f32 %v1371, %v1734
        %v1775 = vadd.f32 %v1372, %v1737
        %1776 = vst [vmem:[#allocation2] sm:$0xff] %v1740
        %1777 = vst [vmem:[#allocation2 + $0x8] sm:$0xff] %v1741
        %1778 = vst [vmem:[#allocation2 + $0x10] sm:$0xff] %v1742
        %1779 = vst [vmem:[#allocation2 + $0x18] sm:$0xff] %v1743
        %1780 = vst [vmem:[#allocation2 + $0x20] sm:$0xff] %v1744
        %1781 = vst [vmem:[#allocation2 + $0x28] sm:$0xff] %v1745
        %1782 = vst [vmem:[#allocation2 + $0x30] sm:$0xff] %v1746
        %1783 = vst [vmem:[#allocation2 + $0x38] sm:$0xff] %v1747
        %1784 = vst [vmem:[#allocation2 + $0x40] sm:$0xff] %v1748
        %1785 = vst [vmem:[#allocation2 + $0x48] sm:$0xff] %v1749
        %1786 = vst [vmem:[#allocation2 + $0x50] sm:$0xff] %v1750
        %1787 = vst [vmem:[#allocation2 + $0x58] sm:$0xff] %v1751
        %1788 = vst [vmem:[#allocation2 + $0x60] sm:$0xff] %v1752
        %1789 = vst [vmem:[#allocation2 + $0x68] sm:$0xff] %v1753
        %1790 = vst [vmem:[#allocation2 + $0x70] sm:$0xff] %v1754
        %1791 = vst [vmem:[#allocation2 + $0x78] sm:$0xff] %v1755
        %1792 = vst [vmem:[#allocation2 + $0x80] sm:$0xff] %v1756
        %1793 = vst [vmem:[#allocation2 + $0x88] sm:$0xff] %v1757
        %1794 = vst [vmem:[#allocation2 + $0x90] sm:$0xff] %v1758
        %1795 = vst [vmem:[#allocation2 + $0x98] sm:$0xff] %v1759
        %1796 = vst [vmem:[#allocation2 + $0xa0] sm:$0xff] %v1760
        %1797 = vst [vmem:[#allocation2 + $0xa8] sm:$0xff] %v1761
        %1798 = vst [vmem:[#allocation2 + $0xb0] sm:$0xff] %v1762
        %1799 = vst [vmem:[#allocation2 + $0xb8] sm:$0xff] %v1763
        %1800 = vst [vmem:[#allocation2 + $0xc0] sm:$0xff] %v1764
        %1801 = vst [vmem:[#allocation2 + $0xc8] sm:$0xff] %v1765
        %1802 = vst [vmem:[#allocation2 + $0xd0] sm:$0xff] %v1766
        %1803 = vst [vmem:[#allocation2 + $0xd8] sm:$0xff] %v1767
        %1804 = vst [vmem:[#allocation2 + $0xe0] sm:$0xff] %v1768
        %1805 = vst [vmem:[#allocation2 + $0xe8] sm:$0xff] %v1769
        %1806 = vst [vmem:[#allocation2 + $0xf0] sm:$0xff] %v1770
        %1807 = vst [vmem:[#allocation2 + $0xf8] sm:$0xff] %v1771
        %1808 = vst [vmem:[#allocation2 + $0x100] sm:$0xff] %v1772
        %1809 = vst [vmem:[#allocation2 + $0x108] sm:$0xff] %v1773
        %1810 = vst [vmem:[#allocation2 + $0x110] sm:$0xff] %v1774
        %1811 = vst [vmem:[#allocation2 + $0x118] sm:$0xff] %v1775
        %v1812 = vld [vmem:[%s168 + $0x8] sm:$0xe]
        %v1813 = vld [vmem:[%s168 + $0xc] sm:$0xf]
        %v1814 = vld [vmem:[%s168 + $0x10] sm:$0xf]
        %v1815 = vld [vmem:[%s168 + $0x14] sm:$0xf]
        %v1816 = vld [vmem:[%s168 + $0x18] sm:$0xf]
        %v1817 = vld [vmem:[%s168 + $0x1c] sm:$0xf]
        %v1818 = vld [vmem:[%s168 + $0x20] sm:$0xf]
        %v1819 = vld [vmem:[%s168 + $0x24] sm:$0xf]
        %v1820 = vld [vmem:[%s168 + $0x28] sm:$0xf]
        %v1821 = vld [vmem:[%s168 + $0x2c] sm:$0xf]
        %v1822 = vld [vmem:[%s168 + $0x30] sm:$0xf]
        %v1823 = vld [vmem:[%s168 + $0x34] sm:$0xf]
        %v1824 = vld [vmem:[%s168 + $0x38] sm:$0xf]
        %v1825 = vld [vmem:[%s168 + $0x3c] sm:$0xf]
        %v1826 = vld [vmem:[%s168 + $0x40] sm:$0xf]
        %v1827 = vld [vmem:[%s168 + $0x44] sm:$0xf]
        %v1828 = vld [vmem:[%s168 + $0x48] sm:$0xf]
        %v1829 = vld [vmem:[%s168 + $0x4c] sm:$0xf]
        %v1830 = vld [vmem:[%s168 + $0x50] sm:$0xf]
        %v1831 = vld [vmem:[%s168 + $0x54] sm:$0xf]
        %v1832 = vld [vmem:[%s168 + $0x58] sm:$0xf]
        %v1833 = vld [vmem:[%s168 + $0x5c] sm:$0xf]
        %v1834 = vld [vmem:[%s168 + $0x60] sm:$0xf]
        %v1835 = vld [vmem:[%s168 + $0x64] sm:$0xf]
        %v1836 = vld [vmem:[%s168 + $0x68] sm:$0xf]
        %v1837 = vld [vmem:[%s168 + $0x6c] sm:$0xf]
        %v1838 = vld [vmem:[%s168 + $0x70] sm:$0xf]
        %v1839 = vld [vmem:[%s168 + $0x74] sm:$0xf]
        %v1840 = vld [vmem:[%s168 + $0x78] sm:$0xf]
        %v1841 = vld [vmem:[%s168 + $0x7c] sm:$0xf]
        %v1842 = vld [vmem:[%s168 + $0x80] sm:$0xf]
        %v1843 = vld [vmem:[%s168 + $0x84] sm:$0xf]
        %v1844 = vld [vmem:[%s168 + $0x88] sm:$0xf]
        %v1845 = vld [vmem:[%s168 + $0x8c] sm:$0xf]
        %v1846 = vld [vmem:[%s168 + $0x90] sm:$0xf]
        %v1847 = vld [vmem:[%s168 + $0x94] sm:$0xf]
        %v1848 = vld [vmem:[%s168 + $0x98] sm:$0x1]
        %v1849 = vld [vmem:[#allocation2] sm:$0xff]
        %v1850 = vld [vmem:[#allocation2 + $0x8] sm:$0xff]
        %v1851 = vld [vmem:[#allocation2 + $0x10] sm:$0xff]
        %v1852 = vld [vmem:[#allocation2 + $0x18] sm:$0xff]
        %v1853 = vld [vmem:[#allocation2 + $0x20] sm:$0xff]
        %v1854 = vld [vmem:[#allocation2 + $0x28] sm:$0xff]
        %v1855 = vld [vmem:[#allocation2 + $0x30] sm:$0xff]
        %v1856 = vld [vmem:[#allocation2 + $0x38] sm:$0xff]
        %v1857 = vld [vmem:[#allocation2 + $0x40] sm:$0xff]
        %v1858 = vld [vmem:[#allocation2 + $0x48] sm:$0xff]
        %v1859 = vld [vmem:[#allocation2 + $0x50] sm:$0xff]
        %v1860 = vld [vmem:[#allocation2 + $0x58] sm:$0xff]
        %v1861 = vld [vmem:[#allocation2 + $0x60] sm:$0xff]
        %v1862 = vld [vmem:[#allocation2 + $0x68] sm:$0xff]
        %v1863 = vld [vmem:[#allocation2 + $0x70] sm:$0xff]
        %v1864 = vld [vmem:[#allocation2 + $0x78] sm:$0xff]
        %v1865 = vld [vmem:[#allocation2 + $0x80] sm:$0xff]
        %v1866 = vld [vmem:[#allocation2 + $0x88] sm:$0xff]
        %v1867 = vld [vmem:[#allocation2 + $0x90] sm:$0xff]
        %v1868 = vld [vmem:[#allocation2 + $0x98] sm:$0xff]
        %v1869 = vld [vmem:[#allocation2 + $0xa0] sm:$0xff]
        %v1870 = vld [vmem:[#allocation2 + $0xa8] sm:$0xff]
        %v1871 = vld [vmem:[#allocation2 + $0xb0] sm:$0xff]
        %v1872 = vld [vmem:[#allocation2 + $0xb8] sm:$0xff]
        %v1873 = vld [vmem:[#allocation2 + $0xc0] sm:$0xff]
        %v1874 = vld [vmem:[#allocation2 + $0xc8] sm:$0xff]
        %v1875 = vld [vmem:[#allocation2 + $0xd0] sm:$0xff]
        %v1876 = vld [vmem:[#allocation2 + $0xd8] sm:$0xff]
        %v1877 = vld [vmem:[#allocation2 + $0xe0] sm:$0xff]
        %v1878 = vld [vmem:[#allocation2 + $0xe8] sm:$0xff]
        %v1879 = vld [vmem:[#allocation2 + $0xf0] sm:$0xff]
        %v1880 = vld [vmem:[#allocation2 + $0xf8] sm:$0xff]
        %v1881 = vld [vmem:[#allocation2 + $0x100] sm:$0xff]
        %v1882 = vld [vmem:[#allocation2 + $0x108] sm:$0xff]
        %v1883 = vld [vmem:[#allocation2 + $0x110] sm:$0xff]
        %v1884 = vld [vmem:[#allocation2 + $0x118] sm:$0xff]
        %s1885 = scalar_lea.vmem %s1, 12
        %v1886 = vld [vmem:[%s1885] sm:$0xf]
        %v1924 = vunpack.c.l.b16 %v1812
        %v1925 = vunpack.c.l.b16 %v1813
        %v1926 = vunpack.c.l.b16 %v1814
        %v1927 = vunpack.c.l.b16 %v1815
        %v1928 = vunpack.c.l.b16 %v1816
        %v1929 = vunpack.c.l.b16 %v1817
        %v1930 = vunpack.c.l.b16 %v1818
        %v1931 = vunpack.c.l.b16 %v1819
        %v1932 = vunpack.c.l.b16 %v1820
        %v1933 = vunpack.c.l.b16 %v1821
        %v1934 = vunpack.c.l.b16 %v1822
        %v1935 = vunpack.c.l.b16 %v1823
        %v1936 = vunpack.c.l.b16 %v1824
        %v1937 = vunpack.c.l.b16 %v1825
        %v1938 = vunpack.c.l.b16 %v1826
        %v1939 = vunpack.c.l.b16 %v1827
        %v1940 = vunpack.c.l.b16 %v1828
        %v1941 = vunpack.c.l.b16 %v1829
        %v1942 = vunpack.c.l.b16 %v1830
        %v1943 = vunpack.c.l.b16 %v1831
        %v1944 = vunpack.c.l.b16 %v1832
        %v1945 = vunpack.c.l.b16 %v1833
        %v1946 = vunpack.c.l.b16 %v1834
        %v1947 = vunpack.c.l.b16 %v1835
        %v1948 = vunpack.c.l.b16 %v1836
        %v1949 = vunpack.c.l.b16 %v1837
        %v1950 = vunpack.c.l.b16 %v1838
        %v1951 = vunpack.c.l.b16 %v1839
        %v1952 = vunpack.c.l.b16 %v1840
        %v1953 = vunpack.c.l.b16 %v1841
        %v1954 = vunpack.c.l.b16 %v1842
        %v1955 = vunpack.c.l.b16 %v1843
        %v1956 = vunpack.c.l.b16 %v1844
        %v1957 = vunpack.c.l.b16 %v1845
        %v1958 = vunpack.c.l.b16 %v1846
        %v1959 = vunpack.c.l.b16 %v1847
        %v1960 = vunpack.c.l.b16 %v1848
        %v1961 = vpack.c.b16 %v1925, %v1924
        %v1962 = vpack.c.b16 %v1927, %v1926
        %v1963 = vpack.c.b16 %v1929, %v1928
        %v1964 = vpack.c.b16 %v1931, %v1930
        %v1965 = vpack.c.b16 %v1933, %v1932
        %v1966 = vpack.c.b16 %v1935, %v1934
        %v1967 = vpack.c.b16 %v1937, %v1936
        %v1968 = vpack.c.b16 %v1939, %v1938
        %v1969 = vpack.c.b16 %v1941, %v1940
        %v1970 = vpack.c.b16 %v1943, %v1942
        %v1971 = vpack.c.b16 %v1945, %v1944
        %v1972 = vpack.c.b16 %v1947, %v1946
        %v1973 = vpack.c.b16 %v1949, %v1948
        %v1974 = vpack.c.b16 %v1951, %v1950
        %v1975 = vpack.c.b16 %v1953, %v1952
        %v1976 = vpack.c.b16 %v1955, %v1954
        %v1977 = vpack.c.b16 %v1957, %v1956
        %v1978 = vpack.c.b16 %v1959, %v1958
        %v1979 = vpack.c.b16 %v1960, %v1960
        %v1980 = vrot.slane %v1961, 1
        %v1981 = vrot.slane %v1962, 1
        %v1982 = vsel %vm1468, %v1980, %v1981
        %v1983 = vrot.slane %v1963, 1
        %v1984 = vsel %vm1468, %v1981, %v1983
        %v1985 = vrot.slane %v1964, 1
        %v1986 = vsel %vm1468, %v1983, %v1985
        %v1987 = vrot.slane %v1965, 1
        %v1988 = vsel %vm1468, %v1985, %v1987
        %v1989 = vrot.slane %v1966, 1
        %v1990 = vsel %vm1468, %v1987, %v1989
        %v1991 = vrot.slane %v1967, 1
        %v1992 = vsel %vm1468, %v1989, %v1991
        %v1993 = vrot.slane %v1968, 1
        %v1994 = vsel %vm1468, %v1991, %v1993
        %v1995 = vrot.slane %v1969, 1
        %v1996 = vsel %vm1468, %v1993, %v1995
        %v1997 = vrot.slane %v1970, 1
        %v1998 = vsel %vm1468, %v1995, %v1997
        %v1999 = vrot.slane %v1971, 1
        %v2000 = vsel %vm1468, %v1997, %v1999
        %v2001 = vrot.slane %v1972, 1
        %v2002 = vsel %vm1468, %v1999, %v2001
        %v2003 = vrot.slane %v1973, 1
        %v2004 = vsel %vm1468, %v2001, %v2003
        %v2005 = vrot.slane %v1974, 1
        %v2006 = vsel %vm1468, %v2003, %v2005
        %v2007 = vrot.slane %v1975, 1
        %v2008 = vsel %vm1468, %v2005, %v2007
        %v2009 = vrot.slane %v1976, 1
        %v2010 = vsel %vm1468, %v2007, %v2009
        %v2011 = vrot.slane %v1977, 1
        %v2012 = vsel %vm1468, %v2009, %v2011
        %v2013 = vrot.slane %v1978, 1
        %v2014 = vsel %vm1468, %v2011, %v2013
        %v2015 = vrot.slane %v1979, 1
        %v2016 = vsel %vm1468, %v2013, %v2015
        %v2018 = vsel %vm369, %v1982, 0
        %v2021 = vsel %vm369, %v1984, 0
        %v2024 = vsel %vm369, %v1986, 0
        %v2027 = vsel %vm369, %v1988, 0
        %v2030 = vsel %vm369, %v1990, 0
        %v2033 = vsel %vm369, %v1992, 0
        %v2036 = vsel %vm369, %v1994, 0
        %v2039 = vsel %vm369, %v1996, 0
        %v2042 = vsel %vm369, %v1998, 0
        %v2045 = vsel %vm369, %v2000, 0
        %v2048 = vsel %vm369, %v2002, 0
        %v2051 = vsel %vm369, %v2004, 0
        %v2054 = vsel %vm369, %v2006, 0
        %v2057 = vsel %vm369, %v2008, 0
        %v2060 = vsel %vm369, %v2010, 0
        %v2063 = vsel %vm369, %v2012, 0
        %v2066 = vsel %vm369, %v2014, 0
        %v2069 = vsel %vm369, %v2016, 0
        %v2072 = vsel %vm424, %v1886, 0
        %2074 = vmatprep.subr.bf16.mxu0 0
        %2075 = vmatpush1.bf16.msra.mxu0 %v2072
        %2076 = vmatprep.subr.bf16.mxu0 0
        %2077 = vmatpush1.bf16.msra.mxu0 0
        %2078 = vmatprep.subr.bf16.mxu0 0
        %2079 = vmatpush1.bf16.msra.mxu0 0
        %2080 = vmatprep.subr.bf16.mxu0 0
        %2081 = vmatpush1.bf16.msra.mxu0 0
        %2082 = vmatprep.subr.bf16.mxu0 0
        %2083 = vmatpush1.bf16.msra.mxu0 0
        %2084 = vmatprep.subr.bf16.mxu0 0
        %2085 = vmatpush1.bf16.msra.mxu0 0
        %2086 = vmatprep.subr.bf16.mxu0 0
        %2087 = vmatpush1.bf16.msra.mxu0 0
        %2088 = vmatprep.subr.bf16.mxu0 0
        %2089 = vmatpush1.bf16.msra.mxu0 0
        %2090 = vmatprep.subr.bf16.mxu0 0
        %2091 = vmatpush1.bf16.msra.mxu0 0
        %2092 = vmatprep.subr.bf16.mxu0 0
        %2093 = vmatpush1.bf16.msra.mxu0 0
        %2094 = vmatprep.subr.bf16.mxu0 0
        %2095 = vmatpush1.bf16.msra.mxu0 0
        %2096 = vmatprep.subr.bf16.mxu0 0
        %2097 = vmatpush1.bf16.msra.mxu0 0
        %2098 = vmatprep.subr.bf16.mxu0 0
        %2099 = vmatpush1.bf16.msra.mxu0 0
        %2100 = vmatprep.subr.bf16.mxu0 0
        %2101 = vmatpush1.bf16.msra.mxu0 0
        %2102 = vmatprep.subr.bf16.mxu0 0
        %2103 = vmatpush1.bf16.msra.mxu0 0
        %2104 = vmatprep.subr.bf16.mxu0 0
        %2105 = vmatpush1.bf16.msra.mxu0 0
        %2106 = vmatprep.mubr.bf16.mxu0 0
        %2107 = vmatmul.mubr.bf16.gmra.mrb[0].mxu0 %v2018
        %v2108 = vpop.f32.mrb[0].mxu0
        %v2109 = vadd.f32 0.0, %v2108
        %v2110 = vpop.f32.mrb[0].mxu0
        %v2111 = vpop.f32.mrb[0].mxu0
        %v2112 = vadd.f32 0.0, %v2111
        %v2113 = vpop.f32.mrb[0].mxu0
        %2114 = vmatprep.mubr.bf16.mxu0 0
        %2115 = vmatmul.mubr.bf16.gmra.mrb[0].mxu0 %v2021
        %v2116 = vpop.f32.mrb[0].mxu0
        %v2117 = vadd.f32 0.0, %v2116
        %v2118 = vpop.f32.mrb[0].mxu0
        %v2119 = vpop.f32.mrb[0].mxu0
        %v2120 = vadd.f32 0.0, %v2119
        %v2121 = vpop.f32.mrb[0].mxu0
        %2122 = vmatprep.mubr.bf16.mxu0 0
        %2123 = vmatmul.mubr.bf16.gmra.mrb[0].mxu0 %v2024
        %v2124 = vpop.f32.mrb[0].mxu0
        %v2125 = vadd.f32 0.0, %v2124
        %v2126 = vpop.f32.mrb[0].mxu0
        %v2127 = vpop.f32.mrb[0].mxu0
        %v2128 = vadd.f32 0.0, %v2127
        %v2129 = vpop.f32.mrb[0].mxu0
        %2130 = vmatprep.mubr.bf16.mxu0 0
        %2131 = vmatmul.mubr.bf16.gmra.mrb[0].mxu0 %v2027
        %v2132 = vpop.f32.mrb[0].mxu0
        %v2133 = vadd.f32 0.0, %v2132
        %v2134 = vpop.f32.mrb[0].mxu0
        %v2135 = vpop.f32.mrb[0].mxu0
        %v2136 = vadd.f32 0.0, %v2135
        %v2137 = vpop.f32.mrb[0].mxu0
        %2138 = vmatprep.mubr.bf16.mxu0 0
        %2139 = vmatmul.mubr.bf16.gmra.mrb[0].mxu0 %v2030
        %v2140 = vpop.f32.mrb[0].mxu0
        %v2141 = vadd.f32 0.0, %v2140
        %v2142 = vpop.f32.mrb[0].mxu0
        %v2143 = vpop.f32.mrb[0].mxu0
        %v2144 = vadd.f32 0.0, %v2143
        %v2145 = vpop.f32.mrb[0].mxu0
        %2146 = vmatprep.mubr.bf16.mxu0 0
        %2147 = vmatmul.mubr.bf16.gmra.mrb[0].mxu0 %v2033
        %v2148 = vpop.f32.mrb[0].mxu0
        %v2149 = vadd.f32 0.0, %v2148
        %v2150 = vpop.f32.mrb[0].mxu0
        %v2151 = vpop.f32.mrb[0].mxu0
        %v2152 = vadd.f32 0.0, %v2151
        %v2153 = vpop.f32.mrb[0].mxu0
        %2154 = vmatprep.mubr.bf16.mxu0 0
        %2155 = vmatmul.mubr.bf16.gmra.mrb[0].mxu0 %v2036
        %v2156 = vpop.f32.mrb[0].mxu0
        %v2157 = vadd.f32 0.0, %v2156
        %v2158 = vpop.f32.mrb[0].mxu0
        %v2159 = vpop.f32.mrb[0].mxu0
        %v2160 = vadd.f32 0.0, %v2159
        %v2161 = vpop.f32.mrb[0].mxu0
        %2162 = vmatprep.mubr.bf16.mxu0 0
        %2163 = vmatmul.mubr.bf16.gmra.mrb[0].mxu0 %v2039
        %v2164 = vpop.f32.mrb[0].mxu0
        %v2165 = vadd.f32 0.0, %v2164
        %v2166 = vpop.f32.mrb[0].mxu0
        %v2167 = vpop.f32.mrb[0].mxu0
        %v2168 = vadd.f32 0.0, %v2167
        %v2169 = vpop.f32.mrb[0].mxu0
        %2170 = vmatprep.mubr.bf16.mxu0 0
        %2171 = vmatmul.mubr.bf16.gmra.mrb[0].mxu0 %v2042
        %v2172 = vpop.f32.mrb[0].mxu0
        %v2173 = vadd.f32 0.0, %v2172
        %v2174 = vpop.f32.mrb[0].mxu0
        %v2175 = vpop.f32.mrb[0].mxu0
        %v2176 = vadd.f32 0.0, %v2175
        %v2177 = vpop.f32.mrb[0].mxu0
        %2178 = vmatprep.mubr.bf16.mxu0 0
        %2179 = vmatmul.mubr.bf16.gmra.mrb[0].mxu0 %v2045
        %v2180 = vpop.f32.mrb[0].mxu0
        %v2181 = vadd.f32 0.0, %v2180
        %v2182 = vpop.f32.mrb[0].mxu0
        %v2183 = vpop.f32.mrb[0].mxu0
        %v2184 = vadd.f32 0.0, %v2183
        %v2185 = vpop.f32.mrb[0].mxu0
        %2186 = vmatprep.mubr.bf16.mxu0 0
        %2187 = vmatmul.mubr.bf16.gmra.mrb[0].mxu0 %v2048
        %v2188 = vpop.f32.mrb[0].mxu0
        %v2189 = vadd.f32 0.0, %v2188
        %v2190 = vpop.f32.mrb[0].mxu0
        %v2191 = vpop.f32.mrb[0].mxu0
        %v2192 = vadd.f32 0.0, %v2191
        %v2193 = vpop.f32.mrb[0].mxu0
        %2194 = vmatprep.mubr.bf16.mxu0 0
        %2195 = vmatmul.mubr.bf16.gmra.mrb[0].mxu0 %v2051
        %v2196 = vpop.f32.mrb[0].mxu0
        %v2197 = vadd.f32 0.0, %v2196
        %v2198 = vpop.f32.mrb[0].mxu0
        %v2199 = vpop.f32.mrb[0].mxu0
        %v2200 = vadd.f32 0.0, %v2199
        %v2201 = vpop.f32.mrb[0].mxu0
        %2202 = vmatprep.mubr.bf16.mxu0 0
        %2203 = vmatmul.mubr.bf16.gmra.mrb[0].mxu0 %v2054
        %v2204 = vpop.f32.mrb[0].mxu0
        %v2205 = vadd.f32 0.0, %v2204
        %v2206 = vpop.f32.mrb[0].mxu0
        %v2207 = vpop.f32.mrb[0].mxu0
        %v2208 = vadd.f32 0.0, %v2207
        %v2209 = vpop.f32.mrb[0].mxu0
        %2210 = vmatprep.mubr.bf16.mxu0 0
        %2211 = vmatmul.mubr.bf16.gmra.mrb[0].mxu0 %v2057
        %v2212 = vpop.f32.mrb[0].mxu0
        %v2213 = vadd.f32 0.0, %v2212
        %v2214 = vpop.f32.mrb[0].mxu0
        %v2215 = vpop.f32.mrb[0].mxu0
        %v2216 = vadd.f32 0.0, %v2215
        %v2217 = vpop.f32.mrb[0].mxu0
        %2218 = vmatprep.mubr.bf16.mxu0 0
        %2219 = vmatmul.mubr.bf16.gmra.mrb[0].mxu0 %v2060
        %v2220 = vpop.f32.mrb[0].mxu0
        %v2221 = vadd.f32 0.0, %v2220
        %v2222 = vpop.f32.mrb[0].mxu0
        %v2223 = vpop.f32.mrb[0].mxu0
        %v2224 = vadd.f32 0.0, %v2223
        %v2225 = vpop.f32.mrb[0].mxu0
        %2226 = vmatprep.mubr.bf16.mxu0 0
        %2227 = vmatmul.mubr.bf16.gmra.mrb[0].mxu0 %v2063
        %v2228 = vpop.f32.mrb[0].mxu0
        %v2229 = vadd.f32 0.0, %v2228
        %v2230 = vpop.f32.mrb[0].mxu0
        %v2231 = vpop.f32.mrb[0].mxu0
        %v2232 = vadd.f32 0.0, %v2231
        %v2233 = vpop.f32.mrb[0].mxu0
        %2234 = vmatprep.mubr.bf16.mxu0 0
        %2235 = vmatmul.mubr.bf16.gmra.mrb[0].mxu0 %v2066
        %v2236 = vpop.f32.mrb[0].mxu0
        %v2237 = vadd.f32 0.0, %v2236
        %v2238 = vpop.f32.mrb[0].mxu0
        %v2239 = vpop.f32.mrb[0].mxu0
        %v2240 = vadd.f32 0.0, %v2239
        %v2241 = vpop.f32.mrb[0].mxu0
        %2242 = vmatprep.mubr.bf16.mxu0 0
        %2243 = vmatmul.mubr.bf16.gmra.mrb[0].mxu0 %v2069
        %v2244 = vpop.f32.mrb[0].mxu0
        %v2245 = vadd.f32 0.0, %v2244
        %v2246 = vpop.f32.mrb[0].mxu0
        %v2247 = vpop.f32.mrb[0].mxu0
        %v2248 = vadd.f32 0.0, %v2247
        %v2249 = vpop.f32.mrb[0].mxu0
        %2250 = vdwg.mxu0
        %v2251 = vadd.f32 %v1849, %v2109
        %v2252 = vadd.f32 %v1850, %v2112
        %v2253 = vadd.f32 %v1851, %v2117
        %v2254 = vadd.f32 %v1852, %v2120
        %v2255 = vadd.f32 %v1853, %v2125
        %v2256 = vadd.f32 %v1854, %v2128
        %v2257 = vadd.f32 %v1855, %v2133
        %v2258 = vadd.f32 %v1856, %v2136
        %v2259 = vadd.f32 %v1857, %v2141
        %v2260 = vadd.f32 %v1858, %v2144
        %v2261 = vadd.f32 %v1859, %v2149
        %v2262 = vadd.f32 %v1860, %v2152
        %v2263 = vadd.f32 %v1861, %v2157
        %v2264 = vadd.f32 %v1862, %v2160
        %v2265 = vadd.f32 %v1863, %v2165
        %v2266 = vadd.f32 %v1864, %v2168
        %v2267 = vadd.f32 %v1865, %v2173
        %v2268 = vadd.f32 %v1866, %v2176
        %v2269 = vadd.f32 %v1867, %v2181
        %v2270 = vadd.f32 %v1868, %v2184
        %v2271 = vadd.f32 %v1869, %v2189
        %v2272 = vadd.f32 %v1870, %v2192
        %v2273 = vadd.f32 %v1871, %v2197
        %v2274 = vadd.f32 %v1872, %v2200
        %v2275 = vadd.f32 %v1873, %v2205
        %v2276 = vadd.f32 %v1874, %v2208
        %v2277 = vadd.f32 %v1875, %v2213
        %v2278 = vadd.f32 %v1876, %v2216
        %v2279 = vadd.f32 %v1877, %v2221
        %v2280 = vadd.f32 %v1878, %v2224
        %v2281 = vadd.f32 %v1879, %v2229
        %v2282 = vadd.f32 %v1880, %v2232
        %v2283 = vadd.f32 %v1881, %v2237
        %v2284 = vadd.f32 %v1882, %v2240
        %v2285 = vadd.f32 %v1883, %v2245
        %v2286 = vadd.f32 %v1884, %v2248
        %2287 = vst [vmem:[#allocation2] sm:$0xff] %v2251
        %2288 = vst [vmem:[#allocation2 + $0x8] sm:$0xff] %v2252
        %2289 = vst [vmem:[#allocation2 + $0x10] sm:$0xff] %v2253
        %2290 = vst [vmem:[#allocation2 + $0x18] sm:$0xff] %v2254
        %2291 = vst [vmem:[#allocation2 + $0x20] sm:$0xff] %v2255
        %2292 = vst [vmem:[#allocation2 + $0x28] sm:$0xff] %v2256
        %2293 = vst [vmem:[#allocation2 + $0x30] sm:$0xff] %v2257
        %2294 = vst [vmem:[#allocation2 + $0x38] sm:$0xff] %v2258
        %2295 = vst [vmem:[#allocation2 + $0x40] sm:$0xff] %v2259
        %2296 = vst [vmem:[#allocation2 + $0x48] sm:$0xff] %v2260
        %2297 = vst [vmem:[#allocation2 + $0x50] sm:$0xff] %v2261
        %2298 = vst [vmem:[#allocation2 + $0x58] sm:$0xff] %v2262
        %2299 = vst [vmem:[#allocation2 + $0x60] sm:$0xff] %v2263
        %2300 = vst [vmem:[#allocation2 + $0x68] sm:$0xff] %v2264
        %2301 = vst [vmem:[#allocation2 + $0x70] sm:$0xff] %v2265
        %2302 = vst [vmem:[#allocation2 + $0x78] sm:$0xff] %v2266
        %2303 = vst [vmem:[#allocation2 + $0x80] sm:$0xff] %v2267
        %2304 = vst [vmem:[#allocation2 + $0x88] sm:$0xff] %v2268
        %2305 = vst [vmem:[#allocation2 + $0x90] sm:$0xff] %v2269
        %2306 = vst [vmem:[#allocation2 + $0x98] sm:$0xff] %v2270
        %2307 = vst [vmem:[#allocation2 + $0xa0] sm:$0xff] %v2271
        %2308 = vst [vmem:[#allocation2 + $0xa8] sm:$0xff] %v2272
        %2309 = vst [vmem:[#allocation2 + $0xb0] sm:$0xff] %v2273
        %2310 = vst [vmem:[#allocation2 + $0xb8] sm:$0xff] %v2274
        %2311 = vst [vmem:[#allocation2 + $0xc0] sm:$0xff] %v2275
        %2312 = vst [vmem:[#allocation2 + $0xc8] sm:$0xff] %v2276
        %2313 = vst [vmem:[#allocation2 + $0xd0] sm:$0xff] %v2277
        %2314 = vst [vmem:[#allocation2 + $0xd8] sm:$0xff] %v2278
        %2315 = vst [vmem:[#allocation2 + $0xe0] sm:$0xff] %v2279
        %2316 = vst [vmem:[#allocation2 + $0xe8] sm:$0xff] %v2280
        %2317 = vst [vmem:[#allocation2 + $0xf0] sm:$0xff] %v2281
        %2318 = vst [vmem:[#allocation2 + $0xf8] sm:$0xff] %v2282
        %2319 = vst [vmem:[#allocation2 + $0x100] sm:$0xff] %v2283
        %2320 = vst [vmem:[#allocation2 + $0x108] sm:$0xff] %v2284
        %2321 = vst [vmem:[#allocation2 + $0x110] sm:$0xff] %v2285
        %2322 = vst [vmem:[#allocation2 + $0x118] sm:$0xff] %v2286
        %v2323 = vld [vmem:[%s168 + $0x8] sm:$0xe]
        %v2324 = vld [vmem:[%s168 + $0xc] sm:$0xf]
        %v2325 = vld [vmem:[%s168 + $0x10] sm:$0xf]
        %v2326 = vld [vmem:[%s168 + $0x14] sm:$0xf]
        %v2327 = vld [vmem:[%s168 + $0x18] sm:$0xf]
        %v2328 = vld [vmem:[%s168 + $0x1c] sm:$0xf]
        %v2329 = vld [vmem:[%s168 + $0x20] sm:$0xf]
        %v2330 = vld [vmem:[%s168 + $0x24] sm:$0xf]
        %v2331 = vld [vmem:[%s168 + $0x28] sm:$0xf]
        %v2332 = vld [vmem:[%s168 + $0x2c] sm:$0xf]
        %v2333 = vld [vmem:[%s168 + $0x30] sm:$0xf]
        %v2334 = vld [vmem:[%s168 + $0x34] sm:$0xf]
        %v2335 = vld [vmem:[%s168 + $0x38] sm:$0xf]
        %v2336 = vld [vmem:[%s168 + $0x3c] sm:$0xf]
        %v2337 = vld [vmem:[%s168 + $0x40] sm:$0xf]
        %v2338 = vld [vmem:[%s168 + $0x44] sm:$0xf]
        %v2339 = vld [vmem:[%s168 + $0x48] sm:$0xf]
        %v2340 = vld [vmem:[%s168 + $0x4c] sm:$0xf]
        %v2341 = vld [vmem:[%s168 + $0x50] sm:$0xf]
        %v2342 = vld [vmem:[%s168 + $0x54] sm:$0xf]
        %v2343 = vld [vmem:[%s168 + $0x58] sm:$0xf]
        %v2344 = vld [vmem:[%s168 + $0x5c] sm:$0xf]
        %v2345 = vld [vmem:[%s168 + $0x60] sm:$0xf]
        %v2346 = vld [vmem:[%s168 + $0x64] sm:$0xf]
        %v2347 = vld [vmem:[%s168 + $0x68] sm:$0xf]
        %v2348 = vld [vmem:[%s168 + $0x6c] sm:$0xf]
        %v2349 = vld [vmem:[%s168 + $0x70] sm:$0xf]
        %v2350 = vld [vmem:[%s168 + $0x74] sm:$0xf]
        %v2351 = vld [vmem:[%s168 + $0x78] sm:$0xf]
        %v2352 = vld [vmem:[%s168 + $0x7c] sm:$0xf]
        %v2353 = vld [vmem:[%s168 + $0x80] sm:$0xf]
        %v2354 = vld [vmem:[%s168 + $0x84] sm:$0xf]
        %v2355 = vld [vmem:[%s168 + $0x88] sm:$0xf]
        %v2356 = vld [vmem:[%s168 + $0x8c] sm:$0xf]
        %v2357 = vld [vmem:[%s168 + $0x90] sm:$0xf]
        %v2358 = vld [vmem:[%s168 + $0x94] sm:$0xf]
        %v2359 = vld [vmem:[%s168 + $0x98] sm:$0x3]
        %v2360 = vld [vmem:[#allocation2] sm:$0xff]
        %v2361 = vld [vmem:[#allocation2 + $0x8] sm:$0xff]
        %v2362 = vld [vmem:[#allocation2 + $0x10] sm:$0xff]
        %v2363 = vld [vmem:[#allocation2 + $0x18] sm:$0xff]
        %v2364 = vld [vmem:[#allocation2 + $0x20] sm:$0xff]
        %v2365 = vld [vmem:[#allocation2 + $0x28] sm:$0xff]
        %v2366 = vld [vmem:[#allocation2 + $0x30] sm:$0xff]
        %v2367 = vld [vmem:[#allocation2 + $0x38] sm:$0xff]
        %v2368 = vld [vmem:[#allocation2 + $0x40] sm:$0xff]
        %v2369 = vld [vmem:[#allocation2 + $0x48] sm:$0xff]
        %v2370 = vld [vmem:[#allocation2 + $0x50] sm:$0xff]
        %v2371 = vld [vmem:[#allocation2 + $0x58] sm:$0xff]
        %v2372 = vld [vmem:[#allocation2 + $0x60] sm:$0xff]
        %v2373 = vld [vmem:[#allocation2 + $0x68] sm:$0xff]
        %v2374 = vld [vmem:[#allocation2 + $0x70] sm:$0xff]
        %v2375 = vld [vmem:[#allocation2 + $0x78] sm:$0xff]
        %v2376 = vld [vmem:[#allocation2 + $0x80] sm:$0xff]
        %v2377 = vld [vmem:[#allocation2 + $0x88] sm:$0xff]
        %v2378 = vld [vmem:[#allocation2 + $0x90] sm:$0xff]
        %v2379 = vld [vmem:[#allocation2 + $0x98] sm:$0xff]
        %v2380 = vld [vmem:[#allocation2 + $0xa0] sm:$0xff]
        %v2381 = vld [vmem:[#allocation2 + $0xa8] sm:$0xff]
        %v2382 = vld [vmem:[#allocation2 + $0xb0] sm:$0xff]
        %v2383 = vld [vmem:[#allocation2 + $0xb8] sm:$0xff]
        %v2384 = vld [vmem:[#allocation2 + $0xc0] sm:$0xff]
        %v2385 = vld [vmem:[#allocation2 + $0xc8] sm:$0xff]
        %v2386 = vld [vmem:[#allocation2 + $0xd0] sm:$0xff]
        %v2387 = vld [vmem:[#allocation2 + $0xd8] sm:$0xff]
        %v2388 = vld [vmem:[#allocation2 + $0xe0] sm:$0xff]
        %v2389 = vld [vmem:[#allocation2 + $0xe8] sm:$0xff]
        %v2390 = vld [vmem:[#allocation2 + $0xf0] sm:$0xff]
        %v2391 = vld [vmem:[#allocation2 + $0xf8] sm:$0xff]
        %v2392 = vld [vmem:[#allocation2 + $0x100] sm:$0xff]
        %v2393 = vld [vmem:[#allocation2 + $0x108] sm:$0xff]
        %v2394 = vld [vmem:[#allocation2 + $0x110] sm:$0xff]
        %v2395 = vld [vmem:[#allocation2 + $0x118] sm:$0xff]
        %s2396 = scalar_lea.vmem %s1, 16
        %v2397 = vld [vmem:[%s2396] sm:$0xf]
        %v2435 = vunpack.c.l.b16 %v2323
        %v2436 = vunpack.c.l.b16 %v2324
        %v2437 = vunpack.c.l.b16 %v2325
        %v2438 = vunpack.c.l.b16 %v2326
        %v2439 = vunpack.c.l.b16 %v2327
        %v2440 = vunpack.c.l.b16 %v2328
        %v2441 = vunpack.c.l.b16 %v2329
        %v2442 = vunpack.c.l.b16 %v2330
        %v2443 = vunpack.c.l.b16 %v2331
        %v2444 = vunpack.c.l.b16 %v2332
        %v2445 = vunpack.c.l.b16 %v2333
        %v2446 = vunpack.c.l.b16 %v2334
        %v2447 = vunpack.c.l.b16 %v2335
        %v2448 = vunpack.c.l.b16 %v2336
        %v2449 = vunpack.c.l.b16 %v2337
        %v2450 = vunpack.c.l.b16 %v2338
        %v2451 = vunpack.c.l.b16 %v2339
        %v2452 = vunpack.c.l.b16 %v2340
        %v2453 = vunpack.c.l.b16 %v2341
        %v2454 = vunpack.c.l.b16 %v2342
        %v2455 = vunpack.c.l.b16 %v2343
        %v2456 = vunpack.c.l.b16 %v2344
        %v2457 = vunpack.c.l.b16 %v2345
        %v2458 = vunpack.c.l.b16 %v2346
        %v2459 = vunpack.c.l.b16 %v2347
        %v2460 = vunpack.c.l.b16 %v2348
        %v2461 = vunpack.c.l.b16 %v2349
        %v2462 = vunpack.c.l.b16 %v2350
        %v2463 = vunpack.c.l.b16 %v2351
        %v2464 = vunpack.c.l.b16 %v2352
        %v2465 = vunpack.c.l.b16 %v2353
        %v2466 = vunpack.c.l.b16 %v2354
        %v2467 = vunpack.c.l.b16 %v2355
        %v2468 = vunpack.c.l.b16 %v2356
        %v2469 = vunpack.c.l.b16 %v2357
        %v2470 = vunpack.c.l.b16 %v2358
        %v2471 = vunpack.c.l.b16 %v2359
        %v2472 = vpack.c.b16 %v2436, %v2435
        %v2473 = vpack.c.b16 %v2438, %v2437
        %v2474 = vpack.c.b16 %v2440, %v2439
        %v2475 = vpack.c.b16 %v2442, %v2441
        %v2476 = vpack.c.b16 %v2444, %v2443
        %v2477 = vpack.c.b16 %v2446, %v2445
        %v2478 = vpack.c.b16 %v2448, %v2447
        %v2479 = vpack.c.b16 %v2450, %v2449
        %v2480 = vpack.c.b16 %v2452, %v2451
        %v2481 = vpack.c.b16 %v2454, %v2453
        %v2482 = vpack.c.b16 %v2456, %v2455
        %v2483 = vpack.c.b16 %v2458, %v2457
        %v2484 = vpack.c.b16 %v2460, %v2459
        %v2485 = vpack.c.b16 %v2462, %v2461
        %v2486 = vpack.c.b16 %v2464, %v2463
        %v2487 = vpack.c.b16 %v2466, %v2465
        %v2488 = vpack.c.b16 %v2468, %v2467
        %v2489 = vpack.c.b16 %v2470, %v2469
        %v2490 = vpack.c.b16 %v2471, %v2471
        %vm2491 = vsmask.f32 6400
        %v2493 = vshrl.u32 %v2472, 16
        %v2495 = vrot.slane %v2493, 1
        %v2496 = vshll.u32 %v2472, 16
        %v2498 = vrot.slane %v2496, 2
        %v2499 = vor.u32 %v2495, %v2498
        %v2501 = vshrl.u32 %v2473, 16
        %v2503 = vrot.slane %v2501, 1
        %v2504 = vshll.u32 %v2473, 16
        %v2506 = vrot.slane %v2504, 2
        %v2507 = vor.u32 %v2503, %v2506
        %v2508 = vsel %vm2491, %v2499, %v2507
        %v2510 = vshrl.u32 %v2474, 16
        %v2512 = vrot.slane %v2510, 1
        %v2513 = vshll.u32 %v2474, 16
        %v2515 = vrot.slane %v2513, 2
        %v2516 = vor.u32 %v2512, %v2515
        %v2517 = vsel %vm2491, %v2507, %v2516
        %v2519 = vshrl.u32 %v2475, 16
        %v2521 = vrot.slane %v2519, 1
        %v2522 = vshll.u32 %v2475, 16
        %v2524 = vrot.slane %v2522, 2
        %v2525 = vor.u32 %v2521, %v2524
        %v2526 = vsel %vm2491, %v2516, %v2525
        %v2528 = vshrl.u32 %v2476, 16
        %v2530 = vrot.slane %v2528, 1
        %v2531 = vshll.u32 %v2476, 16
        %v2533 = vrot.slane %v2531, 2
        %v2534 = vor.u32 %v2530, %v2533
        %v2535 = vsel %vm2491, %v2525, %v2534
        %v2537 = vshrl.u32 %v2477, 16
        %v2539 = vrot.slane %v2537, 1
        %v2540 = vshll.u32 %v2477, 16
        %v2542 = vrot.slane %v2540, 2
        %v2543 = vor.u32 %v2539, %v2542
        %v2544 = vsel %vm2491, %v2534, %v2543
        %v2546 = vshrl.u32 %v2478, 16
        %v2548 = vrot.slane %v2546, 1
        %v2549 = vshll.u32 %v2478, 16
        %v2551 = vrot.slane %v2549, 2
        %v2552 = vor.u32 %v2548, %v2551
        %v2553 = vsel %vm2491, %v2543, %v2552
        %v2555 = vshrl.u32 %v2479, 16
        %v2557 = vrot.slane %v2555, 1
        %v2558 = vshll.u32 %v2479, 16
        %v2560 = vrot.slane %v2558, 2
        %v2561 = vor.u32 %v2557, %v2560
        %v2562 = vsel %vm2491, %v2552, %v2561
        %v2564 = vshrl.u32 %v2480, 16
        %v2566 = vrot.slane %v2564, 1
        %v2567 = vshll.u32 %v2480, 16
        %v2569 = vrot.slane %v2567, 2
        %v2570 = vor.u32 %v2566, %v2569
        %v2571 = vsel %vm2491, %v2561, %v2570
        %v2573 = vshrl.u32 %v2481, 16
        %v2575 = vrot.slane %v2573, 1
        %v2576 = vshll.u32 %v2481, 16
        %v2578 = vrot.slane %v2576, 2
        %v2579 = vor.u32 %v2575, %v2578
        %v2580 = vsel %vm2491, %v2570, %v2579
        %v2582 = vshrl.u32 %v2482, 16
        %v2584 = vrot.slane %v2582, 1
        %v2585 = vshll.u32 %v2482, 16
        %v2587 = vrot.slane %v2585, 2
        %v2588 = vor.u32 %v2584, %v2587
        %v2589 = vsel %vm2491, %v2579, %v2588
        %v2591 = vshrl.u32 %v2483, 16
        %v2593 = vrot.slane %v2591, 1
        %v2594 = vshll.u32 %v2483, 16
        %v2596 = vrot.slane %v2594, 2
        %v2597 = vor.u32 %v2593, %v2596
        %v2598 = vsel %vm2491, %v2588, %v2597
        %v2600 = vshrl.u32 %v2484, 16
        %v2602 = vrot.slane %v2600, 1
        %v2603 = vshll.u32 %v2484, 16
        %v2605 = vrot.slane %v2603, 2
        %v2606 = vor.u32 %v2602, %v2605
        %v2607 = vsel %vm2491, %v2597, %v2606
        %v2609 = vshrl.u32 %v2485, 16
        %v2611 = vrot.slane %v2609, 1
        %v2612 = vshll.u32 %v2485, 16
        %v2614 = vrot.slane %v2612, 2
        %v2615 = vor.u32 %v2611, %v2614
        %v2616 = vsel %vm2491, %v2606, %v2615
        %v2618 = vshrl.u32 %v2486, 16
        %v2620 = vrot.slane %v2618, 1
        %v2621 = vshll.u32 %v2486, 16
        %v2623 = vrot.slane %v2621, 2
        %v2624 = vor.u32 %v2620, %v2623
        %v2625 = vsel %vm2491, %v2615, %v2624
        %v2627 = vshrl.u32 %v2487, 16
        %v2629 = vrot.slane %v2627, 1
        %v2630 = vshll.u32 %v2487, 16
        %v2632 = vrot.slane %v2630, 2
        %v2633 = vor.u32 %v2629, %v2632
        %v2634 = vsel %vm2491, %v2624, %v2633
        %v2636 = vshrl.u32 %v2488, 16
        %v2638 = vrot.slane %v2636, 1
        %v2639 = vshll.u32 %v2488, 16
        %v2641 = vrot.slane %v2639, 2
        %v2642 = vor.u32 %v2638, %v2641
        %v2643 = vsel %vm2491, %v2633, %v2642
        %v2645 = vshrl.u32 %v2489, 16
        %v2647 = vrot.slane %v2645, 1
        %v2648 = vshll.u32 %v2489, 16
        %v2650 = vrot.slane %v2648, 2
        %v2651 = vor.u32 %v2647, %v2650
        %v2652 = vsel %vm2491, %v2642, %v2651
        %v2654 = vshrl.u32 %v2490, 16
        %v2656 = vrot.slane %v2654, 1
        %v2657 = vshll.u32 %v2490, 16
        %v2659 = vrot.slane %v2657, 2
        %v2660 = vor.u32 %v2656, %v2659
        %v2661 = vsel %vm2491, %v2651, %v2660
        %v2663 = vsel %vm369, %v2508, 0
        %v2666 = vsel %vm369, %v2517, 0
        %v2669 = vsel %vm369, %v2526, 0
        %v2672 = vsel %vm369, %v2535, 0
        %v2675 = vsel %vm369, %v2544, 0
        %v2678 = vsel %vm369, %v2553, 0
        %v2681 = vsel %vm369, %v2562, 0
        %v2684 = vsel %vm369, %v2571, 0
        %v2687 = vsel %vm369, %v2580, 0
        %v2690 = vsel %vm369, %v2589, 0
        %v2693 = vsel %vm369, %v2598, 0
        %v2696 = vsel %vm369, %v2607, 0
        %v2699 = vsel %vm369, %v2616, 0
        %v2702 = vsel %vm369, %v2625, 0
        %v2705 = vsel %vm369, %v2634, 0
        %v2708 = vsel %vm369, %v2643, 0
        %v2711 = vsel %vm369, %v2652, 0
        %v2714 = vsel %vm369, %v2661, 0
        %v2717 = vsel %vm424, %v2397, 0
        %2719 = vmatprep.subr.bf16.mxu0 0
        %2720 = vmatpush1.bf16.msra.mxu0 %v2717
        %2721 = vmatprep.subr.bf16.mxu0 0
        %2722 = vmatpush1.bf16.msra.mxu0 0
        %2723 = vmatprep.subr.bf16.mxu0 0
        %2724 = vmatpush1.bf16.msra.mxu0 0
        %2725 = vmatprep.subr.bf16.mxu0 0
        %2726 = vmatpush1.bf16.msra.mxu0 0
        %2727 = vmatprep.subr.bf16.mxu0 0
        %2728 = vmatpush1.bf16.msra.mxu0 0
        %2729 = vmatprep.subr.bf16.mxu0 0
        %2730 = vmatpush1.bf16.msra.mxu0 0
        %2731 = vmatprep.subr.bf16.mxu0 0
        %2732 = vmatpush1.bf16.msra.mxu0 0
        %2733 = vmatprep.subr.bf16.mxu0 0
        %2734 = vmatpush1.bf16.msra.mxu0 0
        %2735 = vmatprep.subr.bf16.mxu0 0
        %2736 = vmatpush1.bf16.msra.mxu0 0
        %2737 = vmatprep.subr.bf16.mxu0 0
        %2738 = vmatpush1.bf16.msra.mxu0 0
        %2739 = vmatprep.subr.bf16.mxu0 0
        %2740 = vmatpush1.bf16.msra.mxu0 0
        %2741 = vmatprep.subr.bf16.mxu0 0
        %2742 = vmatpush1.bf16.msra.mxu0 0
        %2743 = vmatprep.subr.bf16.mxu0 0
        %2744 = vmatpush1.bf16.msra.mxu0 0
        %2745 = vmatprep.subr.bf16.mxu0 0
        %2746 = vmatpush1.bf16.msra.mxu0 0
        %2747 = vmatprep.subr.bf16.mxu0 0
        %2748 = vmatpush1.bf16.msra.mxu0 0
        %2749 = vmatprep.subr.bf16.mxu0 0
        %2750 = vmatpush1.bf16.msra.mxu0 0
        %2751 = vmatprep.mubr.bf16.mxu0 0
        %2752 = vmatmul.mubr.bf16.gmra.mrb[0].mxu0 %v2663
        %v2753 = vpop.f32.mrb[0].mxu0
        %v2754 = vadd.f32 0.0, %v2753
        %v2755 = vpop.f32.mrb[0].mxu0
        %v2756 = vpop.f32.mrb[0].mxu0
        %v2757 = vadd.f32 0.0, %v2756
        %v2758 = vpop.f32.mrb[0].mxu0
        %2759 = vmatprep.mubr.bf16.mxu0 0
        %2760 = vmatmul.mubr.bf16.gmra.mrb[0].mxu0 %v2666
        %v2761 = vpop.f32.mrb[0].mxu0
        %v2762 = vadd.f32 0.0, %v2761
        %v2763 = vpop.f32.mrb[0].mxu0
        %v2764 = vpop.f32.mrb[0].mxu0
        %v2765 = vadd.f32 0.0, %v2764
        %v2766 = vpop.f32.mrb[0].mxu0
        %2767 = vmatprep.mubr.bf16.mxu0 0
        %2768 = vmatmul.mubr.bf16.gmra.mrb[0].mxu0 %v2669
        %v2769 = vpop.f32.mrb[0].mxu0
        %v2770 = vadd.f32 0.0, %v2769
        %v2771 = vpop.f32.mrb[0].mxu0
        %v2772 = vpop.f32.mrb[0].mxu0
        %v2773 = vadd.f32 0.0, %v2772
        %v2774 = vpop.f32.mrb[0].mxu0
        %2775 = vmatprep.mubr.bf16.mxu0 0
        %2776 = vmatmul.mubr.bf16.gmra.mrb[0].mxu0 %v2672
        %v2777 = vpop.f32.mrb[0].mxu0
        %v2778 = vadd.f32 0.0, %v2777
        %v2779 = vpop.f32.mrb[0].mxu0
        %v2780 = vpop.f32.mrb[0].mxu0
        %v2781 = vadd.f32 0.0, %v2780
        %v2782 = vpop.f32.mrb[0].mxu0
        %2783 = vmatprep.mubr.bf16.mxu0 0
        %2784 = vmatmul.mubr.bf16.gmra.mrb[0].mxu0 %v2675
        %v2785 = vpop.f32.mrb[0].mxu0
        %v2786 = vadd.f32 0.0, %v2785
        %v2787 = vpop.f32.mrb[0].mxu0
        %v2788 = vpop.f32.mrb[0].mxu0
        %v2789 = vadd.f32 0.0, %v2788
        %v2790 = vpop.f32.mrb[0].mxu0
        %2791 = vmatprep.mubr.bf16.mxu0 0
        %2792 = vmatmul.mubr.bf16.gmra.mrb[0].mxu0 %v2678
        %v2793 = vpop.f32.mrb[0].mxu0
        %v2794 = vadd.f32 0.0, %v2793
        %v2795 = vpop.f32.mrb[0].mxu0
        %v2796 = vpop.f32.mrb[0].mxu0
        %v2797 = vadd.f32 0.0, %v2796
        %v2798 = vpop.f32.mrb[0].mxu0
        %2799 = vmatprep.mubr.bf16.mxu0 0
        %2800 = vmatmul.mubr.bf16.gmra.mrb[0].mxu0 %v2681
        %v2801 = vpop.f32.mrb[0].mxu0
        %v2802 = vadd.f32 0.0, %v2801
        %v2803 = vpop.f32.mrb[0].mxu0
        %v2804 = vpop.f32.mrb[0].mxu0
        %v2805 = vadd.f32 0.0, %v2804
        %v2806 = vpop.f32.mrb[0].mxu0
        %2807 = vmatprep.mubr.bf16.mxu0 0
        %2808 = vmatmul.mubr.bf16.gmra.mrb[0].mxu0 %v2684
        %v2809 = vpop.f32.mrb[0].mxu0
        %v2810 = vadd.f32 0.0, %v2809
        %v2811 = vpop.f32.mrb[0].mxu0
        %v2812 = vpop.f32.mrb[0].mxu0
        %v2813 = vadd.f32 0.0, %v2812
        %v2814 = vpop.f32.mrb[0].mxu0
        %2815 = vmatprep.mubr.bf16.mxu0 0
        %2816 = vmatmul.mubr.bf16.gmra.mrb[0].mxu0 %v2687
        %v2817 = vpop.f32.mrb[0].mxu0
        %v2818 = vadd.f32 0.0, %v2817
        %v2819 = vpop.f32.mrb[0].mxu0
        %v2820 = vpop.f32.mrb[0].mxu0
        %v2821 = vadd.f32 0.0, %v2820
        %v2822 = vpop.f32.mrb[0].mxu0
        %2823 = vmatprep.mubr.bf16.mxu0 0
        %2824 = vmatmul.mubr.bf16.gmra.mrb[0].mxu0 %v2690
        %v2825 = vpop.f32.mrb[0].mxu0
        %v2826 = vadd.f32 0.0, %v2825
        %v2827 = vpop.f32.mrb[0].mxu0
        %v2828 = vpop.f32.mrb[0].mxu0
        %v2829 = vadd.f32 0.0, %v2828
        %v2830 = vpop.f32.mrb[0].mxu0
        %2831 = vmatprep.mubr.bf16.mxu0 0
        %2832 = vmatmul.mubr.bf16.gmra.mrb[0].mxu0 %v2693
        %v2833 = vpop.f32.mrb[0].mxu0
        %v2834 = vadd.f32 0.0, %v2833
        %v2835 = vpop.f32.mrb[0].mxu0
        %v2836 = vpop.f32.mrb[0].mxu0
        %v2837 = vadd.f32 0.0, %v2836
        %v2838 = vpop.f32.mrb[0].mxu0
        %2839 = vmatprep.mubr.bf16.mxu0 0
        %2840 = vmatmul.mubr.bf16.gmra.mrb[0].mxu0 %v2696
        %v2841 = vpop.f32.mrb[0].mxu0
        %v2842 = vadd.f32 0.0, %v2841
        %v2843 = vpop.f32.mrb[0].mxu0
        %v2844 = vpop.f32.mrb[0].mxu0
        %v2845 = vadd.f32 0.0, %v2844
        %v2846 = vpop.f32.mrb[0].mxu0
        %2847 = vmatprep.mubr.bf16.mxu0 0
        %2848 = vmatmul.mubr.bf16.gmra.mrb[0].mxu0 %v2699
        %v2849 = vpop.f32.mrb[0].mxu0
        %v2850 = vadd.f32 0.0, %v2849
        %v2851 = vpop.f32.mrb[0].mxu0
        %v2852 = vpop.f32.mrb[0].mxu0
        %v2853 = vadd.f32 0.0, %v2852
        %v2854 = vpop.f32.mrb[0].mxu0
        %2855 = vmatprep.mubr.bf16.mxu0 0
        %2856 = vmatmul.mubr.bf16.gmra.mrb[0].mxu0 %v2702
        %v2857 = vpop.f32.mrb[0].mxu0
        %v2858 = vadd.f32 0.0, %v2857
        %v2859 = vpop.f32.mrb[0].mxu0
        %v2860 = vpop.f32.mrb[0].mxu0
        %v2861 = vadd.f32 0.0, %v2860
        %v2862 = vpop.f32.mrb[0].mxu0
        %2863 = vmatprep.mubr.bf16.mxu0 0
        %2864 = vmatmul.mubr.bf16.gmra.mrb[0].mxu0 %v2705
        %v2865 = vpop.f32.mrb[0].mxu0
        %v2866 = vadd.f32 0.0, %v2865
        %v2867 = vpop.f32.mrb[0].mxu0
        %v2868 = vpop.f32.mrb[0].mxu0
        %v2869 = vadd.f32 0.0, %v2868
        %v2870 = vpop.f32.mrb[0].mxu0
        %2871 = vmatprep.mubr.bf16.mxu0 0
        %2872 = vmatmul.mubr.bf16.gmra.mrb[0].mxu0 %v2708
        %v2873 = vpop.f32.mrb[0].mxu0
        %v2874 = vadd.f32 0.0, %v2873
        %v2875 = vpop.f32.mrb[0].mxu0
        %v2876 = vpop.f32.mrb[0].mxu0
        %v2877 = vadd.f32 0.0, %v2876
        %v2878 = vpop.f32.mrb[0].mxu0
        %2879 = vmatprep.mubr.bf16.mxu0 0
        %2880 = vmatmul.mubr.bf16.gmra.mrb[0].mxu0 %v2711
        %v2881 = vpop.f32.mrb[0].mxu0
        %v2882 = vadd.f32 0.0, %v2881
        %v2883 = vpop.f32.mrb[0].mxu0
        %v2884 = vpop.f32.mrb[0].mxu0
        %v2885 = vadd.f32 0.0, %v2884
        %v2886 = vpop.f32.mrb[0].mxu0
        %2887 = vmatprep.mubr.bf16.mxu0 0
        %2888 = vmatmul.mubr.bf16.gmra.mrb[0].mxu0 %v2714
        %v2889 = vpop.f32.mrb[0].mxu0
        %v2890 = vadd.f32 0.0, %v2889
        %v2891 = vpop.f32.mrb[0].mxu0
        %v2892 = vpop.f32.mrb[0].mxu0
        %v2893 = vadd.f32 0.0, %v2892
        %v2894 = vpop.f32.mrb[0].mxu0
        %2895 = vdwg.mxu0
        %v2896 = vadd.f32 %v2360, %v2754
        %v2897 = vadd.f32 %v2361, %v2757
        %v2898 = vadd.f32 %v2362, %v2762
        %v2899 = vadd.f32 %v2363, %v2765
        %v2900 = vadd.f32 %v2364, %v2770
        %v2901 = vadd.f32 %v2365, %v2773
        %v2902 = vadd.f32 %v2366, %v2778
        %v2903 = vadd.f32 %v2367, %v2781
        %v2904 = vadd.f32 %v2368, %v2786
        %v2905 = vadd.f32 %v2369, %v2789
        %v2906 = vadd.f32 %v2370, %v2794
        %v2907 = vadd.f32 %v2371, %v2797
        %v2908 = vadd.f32 %v2372, %v2802
        %v2909 = vadd.f32 %v2373, %v2805
        %v2910 = vadd.f32 %v2374, %v2810
        %v2911 = vadd.f32 %v2375, %v2813
        %v2912 = vadd.f32 %v2376, %v2818
        %v2913 = vadd.f32 %v2377, %v2821
        %v2914 = vadd.f32 %v2378, %v2826
        %v2915 = vadd.f32 %v2379, %v2829
        %v2916 = vadd.f32 %v2380, %v2834
        %v2917 = vadd.f32 %v2381, %v2837
        %v2918 = vadd.f32 %v2382, %v2842
        %v2919 = vadd.f32 %v2383, %v2845
        %v2920 = vadd.f32 %v2384, %v2850
        %v2921 = vadd.f32 %v2385, %v2853
        %v2922 = vadd.f32 %v2386, %v2858
        %v2923 = vadd.f32 %v2387, %v2861
        %v2924 = vadd.f32 %v2388, %v2866
        %v2925 = vadd.f32 %v2389, %v2869
        %v2926 = vadd.f32 %v2390, %v2874
        %v2927 = vadd.f32 %v2391, %v2877
        %v2928 = vadd.f32 %v2392, %v2882
        %v2929 = vadd.f32 %v2393, %v2885
        %v2930 = vadd.f32 %v2394, %v2890
        %v2931 = vadd.f32 %v2395, %v2893
        %2932 = vst [vmem:[#allocation2] sm:$0xff] %v2896
        %2933 = vst [vmem:[#allocation2 + $0x8] sm:$0xff] %v2897
        %2934 = vst [vmem:[#allocation2 + $0x10] sm:$0xff] %v2898
        %2935 = vst [vmem:[#allocation2 + $0x18] sm:$0xff] %v2899
        %2936 = vst [vmem:[#allocation2 + $0x20] sm:$0xff] %v2900
        %2937 = vst [vmem:[#allocation2 + $0x28] sm:$0xff] %v2901
        %2938 = vst [vmem:[#allocation2 + $0x30] sm:$0xff] %v2902
        %2939 = vst [vmem:[#allocation2 + $0x38] sm:$0xff] %v2903
        %2940 = vst [vmem:[#allocation2 + $0x40] sm:$0xff] %v2904
        %2941 = vst [vmem:[#allocation2 + $0x48] sm:$0xff] %v2905
        %2942 = vst [vmem:[#allocation2 + $0x50] sm:$0xff] %v2906
        %2943 = vst [vmem:[#allocation2 + $0x58] sm:$0xff] %v2907
        %2944 = vst [vmem:[#allocation2 + $0x60] sm:$0xff] %v2908
        %2945 = vst [vmem:[#allocation2 + $0x68] sm:$0xff] %v2909
        %2946 = vst [vmem:[#allocation2 + $0x70] sm:$0xff] %v2910
        %2947 = vst [vmem:[#allocation2 + $0x78] sm:$0xff] %v2911
        %2948 = vst [vmem:[#allocation2 + $0x80] sm:$0xff] %v2912
        %2949 = vst [vmem:[#allocation2 + $0x88] sm:$0xff] %v2913
        %2950 = vst [vmem:[#allocation2 + $0x90] sm:$0xff] %v2914
        %2951 = vst [vmem:[#allocation2 + $0x98] sm:$0xff] %v2915
        %2952 = vst [vmem:[#allocation2 + $0xa0] sm:$0xff] %v2916
        %2953 = vst [vmem:[#allocation2 + $0xa8] sm:$0xff] %v2917
        %2954 = vst [vmem:[#allocation2 + $0xb0] sm:$0xff] %v2918
        %2955 = vst [vmem:[#allocation2 + $0xb8] sm:$0xff] %v2919
        %2956 = vst [vmem:[#allocation2 + $0xc0] sm:$0xff] %v2920
        %2957 = vst [vmem:[#allocation2 + $0xc8] sm:$0xff] %v2921
        %2958 = vst [vmem:[#allocation2 + $0xd0] sm:$0xff] %v2922
        %2959 = vst [vmem:[#allocation2 + $0xd8] sm:$0xff] %v2923
        %2960 = vst [vmem:[#allocation2 + $0xe0] sm:$0xff] %v2924
        %2961 = vst [vmem:[#allocation2 + $0xe8] sm:$0xff] %v2925
        %2962 = vst [vmem:[#allocation2 + $0xf0] sm:$0xff] %v2926
        %2963 = vst [vmem:[#allocation2 + $0xf8] sm:$0xff] %v2927
        %2964 = vst [vmem:[#allocation2 + $0x100] sm:$0xff] %v2928
        %2965 = vst [vmem:[#allocation2 + $0x108] sm:$0xff] %v2929
        %2966 = vst [vmem:[#allocation2 + $0x110] sm:$0xff] %v2930
        %2967 = vst [vmem:[#allocation2 + $0x118] sm:$0xff] %v2931
        %v2968 = vld [vmem:[%s168 + $0x8] sm:$0xc]
        %v2969 = vld [vmem:[%s168 + $0xc] sm:$0xf]
        %v2970 = vld [vmem:[%s168 + $0x10] sm:$0xf]
        %v2971 = vld [vmem:[%s168 + $0x14] sm:$0xf]
        %v2972 = vld [vmem:[%s168 + $0x18] sm:$0xf]
        %v2973 = vld [vmem:[%s168 + $0x1c] sm:$0xf]
        %v2974 = vld [vmem:[%s168 + $0x20] sm:$0xf]
        %v2975 = vld [vmem:[%s168 + $0x24] sm:$0xf]
        %v2976 = vld [vmem:[%s168 + $0x28] sm:$0xf]
        %v2977 = vld [vmem:[%s168 + $0x2c] sm:$0xf]
        %v2978 = vld [vmem:[%s168 + $0x30] sm:$0xf]
        %v2979 = vld [vmem:[%s168 + $0x34] sm:$0xf]
        %v2980 = vld [vmem:[%s168 + $0x38] sm:$0xf]
        %v2981 = vld [vmem:[%s168 + $0x3c] sm:$0xf]
        %v2982 = vld [vmem:[%s168 + $0x40] sm:$0xf]
        %v2983 = vld [vmem:[%s168 + $0x44] sm:$0xf]
        %v2984 = vld [vmem:[%s168 + $0x48] sm:$0xf]
        %v2985 = vld [vmem:[%s168 + $0x4c] sm:$0xf]
        %v2986 = vld [vmem:[%s168 + $0x50] sm:$0xf]
        %v2987 = vld [vmem:[%s168 + $0x54] sm:$0xf]
        %v2988 = vld [vmem:[%s168 + $0x58] sm:$0xf]
        %v2989 = vld [vmem:[%s168 + $0x5c] sm:$0xf]
        %v2990 = vld [vmem:[%s168 + $0x60] sm:$0xf]
        %v2991 = vld [vmem:[%s168 + $0x64] sm:$0xf]
        %v2992 = vld [vmem:[%s168 + $0x68] sm:$0xf]
        %v2993 = vld [vmem:[%s168 + $0x6c] sm:$0xf]
        %v2994 = vld [vmem:[%s168 + $0x70] sm:$0xf]
        %v2995 = vld [vmem:[%s168 + $0x74] sm:$0xf]
        %v2996 = vld [vmem:[%s168 + $0x78] sm:$0xf]
        %v2997 = vld [vmem:[%s168 + $0x7c] sm:$0xf]
        %v2998 = vld [vmem:[%s168 + $0x80] sm:$0xf]
        %v2999 = vld [vmem:[%s168 + $0x84] sm:$0xf]
        %v3000 = vld [vmem:[%s168 + $0x88] sm:$0xf]
        %v3001 = vld [vmem:[%s168 + $0x8c] sm:$0xf]
        %v3002 = vld [vmem:[%s168 + $0x90] sm:$0xf]
        %v3003 = vld [vmem:[%s168 + $0x94] sm:$0xf]
        %v3004 = vld [vmem:[%s168 + $0x98] sm:$0x3]
        %v3005 = vld [vmem:[#allocation2] sm:$0xff]
        %v3006 = vld [vmem:[#allocation2 + $0x8] sm:$0xff]
        %v3007 = vld [vmem:[#allocation2 + $0x10] sm:$0xff]
        %v3008 = vld [vmem:[#allocation2 + $0x18] sm:$0xff]
        %v3009 = vld [vmem:[#allocation2 + $0x20] sm:$0xff]
        %v3010 = vld [vmem:[#allocation2 + $0x28] sm:$0xff]
        %v3011 = vld [vmem:[#allocation2 + $0x30] sm:$0xff]
        %v3012 = vld [vmem:[#allocation2 + $0x38] sm:$0xff]
        %v3013 = vld [vmem:[#allocation2 + $0x40] sm:$0xff]
        %v3014 = vld [vmem:[#allocation2 + $0x48] sm:$0xff]
        %v3015 = vld [vmem:[#allocation2 + $0x50] sm:$0xff]
        %v3016 = vld [vmem:[#allocation2 + $0x58] sm:$0xff]
        %v3017 = vld [vmem:[#allocation2 + $0x60] sm:$0xff]
        %v3018 = vld [vmem:[#allocation2 + $0x68] sm:$0xff]
        %v3019 = vld [vmem:[#allocation2 + $0x70] sm:$0xff]
        %v3020 = vld [vmem:[#allocation2 + $0x78] sm:$0xff]
        %v3021 = vld [vmem:[#allocation2 + $0x80] sm:$0xff]
        %v3022 = vld [vmem:[#allocation2 + $0x88] sm:$0xff]
        %v3023 = vld [vmem:[#allocation2 + $0x90] sm:$0xff]
        %v3024 = vld [vmem:[#allocation2 + $0x98] sm:$0xff]
        %v3025 = vld [vmem:[#allocation2 + $0xa0] sm:$0xff]
        %v3026 = vld [vmem:[#allocation2 + $0xa8] sm:$0xff]
        %v3027 = vld [vmem:[#allocation2 + $0xb0] sm:$0xff]
        %v3028 = vld [vmem:[#allocation2 + $0xb8] sm:$0xff]
        %v3029 = vld [vmem:[#allocation2 + $0xc0] sm:$0xff]
        %v3030 = vld [vmem:[#allocation2 + $0xc8] sm:$0xff]
        %v3031 = vld [vmem:[#allocation2 + $0xd0] sm:$0xff]
        %v3032 = vld [vmem:[#allocation2 + $0xd8] sm:$0xff]
        %v3033 = vld [vmem:[#allocation2 + $0xe0] sm:$0xff]
        %v3034 = vld [vmem:[#allocation2 + $0xe8] sm:$0xff]
        %v3035 = vld [vmem:[#allocation2 + $0xf0] sm:$0xff]
        %v3036 = vld [vmem:[#allocation2 + $0xf8] sm:$0xff]
        %v3037 = vld [vmem:[#allocation2 + $0x100] sm:$0xff]
        %v3038 = vld [vmem:[#allocation2 + $0x108] sm:$0xff]
        %v3039 = vld [vmem:[#allocation2 + $0x110] sm:$0xff]
        %v3040 = vld [vmem:[#allocation2 + $0x118] sm:$0xff]
        %s3041 = scalar_lea.vmem %s1, 20
        %v3042 = vld [vmem:[%s3041] sm:$0xf]
        %v3080 = vunpack.c.l.b16 %v2968
        %v3081 = vunpack.c.l.b16 %v2969
        %v3082 = vunpack.c.l.b16 %v2970
        %v3083 = vunpack.c.l.b16 %v2971
        %v3084 = vunpack.c.l.b16 %v2972
        %v3085 = vunpack.c.l.b16 %v2973
        %v3086 = vunpack.c.l.b16 %v2974
        %v3087 = vunpack.c.l.b16 %v2975
        %v3088 = vunpack.c.l.b16 %v2976
        %v3089 = vunpack.c.l.b16 %v2977
        %v3090 = vunpack.c.l.b16 %v2978
        %v3091 = vunpack.c.l.b16 %v2979
        %v3092 = vunpack.c.l.b16 %v2980
        %v3093 = vunpack.c.l.b16 %v2981
        %v3094 = vunpack.c.l.b16 %v2982
        %v3095 = vunpack.c.l.b16 %v2983
        %v3096 = vunpack.c.l.b16 %v2984
        %v3097 = vunpack.c.l.b16 %v2985
        %v3098 = vunpack.c.l.b16 %v2986
        %v3099 = vunpack.c.l.b16 %v2987
        %v3100 = vunpack.c.l.b16 %v2988
        %v3101 = vunpack.c.l.b16 %v2989
        %v3102 = vunpack.c.l.b16 %v2990
        %v3103 = vunpack.c.l.b16 %v2991
        %v3104 = vunpack.c.l.b16 %v2992
        %v3105 = vunpack.c.l.b16 %v2993
        %v3106 = vunpack.c.l.b16 %v2994
        %v3107 = vunpack.c.l.b16 %v2995
        %v3108 = vunpack.c.l.b16 %v2996
        %v3109 = vunpack.c.l.b16 %v2997
        %v3110 = vunpack.c.l.b16 %v2998
        %v3111 = vunpack.c.l.b16 %v2999
        %v3112 = vunpack.c.l.b16 %v3000
        %v3113 = vunpack.c.l.b16 %v3001
        %v3114 = vunpack.c.l.b16 %v3002
        %v3115 = vunpack.c.l.b16 %v3003
        %v3116 = vunpack.c.l.b16 %v3004
        %v3117 = vpack.c.b16 %v3081, %v3080
        %v3118 = vpack.c.b16 %v3083, %v3082
        %v3119 = vpack.c.b16 %v3085, %v3084
        %v3120 = vpack.c.b16 %v3087, %v3086
        %v3121 = vpack.c.b16 %v3089, %v3088
        %v3122 = vpack.c.b16 %v3091, %v3090
        %v3123 = vpack.c.b16 %v3093, %v3092
        %v3124 = vpack.c.b16 %v3095, %v3094
        %v3125 = vpack.c.b16 %v3097, %v3096
        %v3126 = vpack.c.b16 %v3099, %v3098
        %v3127 = vpack.c.b16 %v3101, %v3100
        %v3128 = vpack.c.b16 %v3103, %v3102
        %v3129 = vpack.c.b16 %v3105, %v3104
        %v3130 = vpack.c.b16 %v3107, %v3106
        %v3131 = vpack.c.b16 %v3109, %v3108
        %v3132 = vpack.c.b16 %v3111, %v3110
        %v3133 = vpack.c.b16 %v3113, %v3112
        %v3134 = vpack.c.b16 %v3115, %v3114
        %v3135 = vpack.c.b16 %v3116, %v3116
        %vm3136 = vcmask 1045504
        %v3137 = vrot.slane %v3117, 2
        %v3138 = vrot.slane %v3118, 2
        %v3139 = vsel %vm3136, %v3137, %v3138
        %v3140 = vrot.slane %v3119, 2
        %v3141 = vsel %vm3136, %v3138, %v3140
        %v3142 = vrot.slane %v3120, 2
        %v3143 = vsel %vm3136, %v3140, %v3142
        %v3144 = vrot.slane %v3121, 2
        %v3145 = vsel %vm3136, %v3142, %v3144
        %v3146 = vrot.slane %v3122, 2
        %v3147 = vsel %vm3136, %v3144, %v3146
        %v3148 = vrot.slane %v3123, 2
        %v3149 = vsel %vm3136, %v3146, %v3148
        %v3150 = vrot.slane %v3124, 2
        %v3151 = vsel %vm3136, %v3148, %v3150
        %v3152 = vrot.slane %v3125, 2
        %v3153 = vsel %vm3136, %v3150, %v3152
        %v3154 = vrot.slane %v3126, 2
        %v3155 = vsel %vm3136, %v3152, %v3154
        %v3156 = vrot.slane %v3127, 2
        %v3157 = vsel %vm3136, %v3154, %v3156
        %v3158 = vrot.slane %v3128, 2
        %v3159 = vsel %vm3136, %v3156, %v3158
        %v3160 = vrot.slane %v3129, 2
        %v3161 = vsel %vm3136, %v3158, %v3160
        %v3162 = vrot.slane %v3130, 2
        %v3163 = vsel %vm3136, %v3160, %v3162
        %v3164 = vrot.slane %v3131, 2
        %v3165 = vsel %vm3136, %v3162, %v3164
        %v3166 = vrot.slane %v3132, 2
        %v3167 = vsel %vm3136, %v3164, %v3166
        %v3168 = vrot.slane %v3133, 2
        %v3169 = vsel %vm3136, %v3166, %v3168
        %v3170 = vrot.slane %v3134, 2
        %v3171 = vsel %vm3136, %v3168, %v3170
        %v3172 = vrot.slane %v3135, 2
        %v3173 = vsel %vm3136, %v3170, %v3172
        %v3175 = vsel %vm369, %v3139, 0
        %v3178 = vsel %vm369, %v3141, 0
        %v3181 = vsel %vm369, %v3143, 0
        %v3184 = vsel %vm369, %v3145, 0
        %v3187 = vsel %vm369, %v3147, 0
        %v3190 = vsel %vm369, %v3149, 0
        %v3193 = vsel %vm369, %v3151, 0
        %v3196 = vsel %vm369, %v3153, 0
        %v3199 = vsel %vm369, %v3155, 0
        %v3202 = vsel %vm369, %v3157, 0
        %v3205 = vsel %vm369, %v3159, 0
        %v3208 = vsel %vm369, %v3161, 0
        %v3211 = vsel %vm369, %v3163, 0
        %v3214 = vsel %vm369, %v3165, 0
        %v3217 = vsel %vm369, %v3167, 0
        %v3220 = vsel %vm369, %v3169, 0
        %v3223 = vsel %vm369, %v3171, 0
        %v3226 = vsel %vm369, %v3173, 0
        %v3229 = vsel %vm424, %v3042, 0
        %3231 = vmatprep.subr.bf16.mxu0 0
        %3232 = vmatpush1.bf16.msra.mxu0 %v3229
        %3233 = vmatprep.subr.bf16.mxu0 0
        %3234 = vmatpush1.bf16.msra.mxu0 0
        %3235 = vmatprep.subr.bf16.mxu0 0
        %3236 = vmatpush1.bf16.msra.mxu0 0
        %3237 = vmatprep.subr.bf16.mxu0 0
        %3238 = vmatpush1.bf16.msra.mxu0 0
        %3239 = vmatprep.subr.bf16.mxu0 0
        %3240 = vmatpush1.bf16.msra.mxu0 0
        %3241 = vmatprep.subr.bf16.mxu0 0
        %3242 = vmatpush1.bf16.msra.mxu0 0
        %3243 = vmatprep.subr.bf16.mxu0 0
        %3244 = vmatpush1.bf16.msra.mxu0 0
        %3245 = vmatprep.subr.bf16.mxu0 0
        %3246 = vmatpush1.bf16.msra.mxu0 0
        %3247 = vmatprep.subr.bf16.mxu0 0
        %3248 = vmatpush1.bf16.msra.mxu0 0
        %3249 = vmatprep.subr.bf16.mxu0 0
        %3250 = vmatpush1.bf16.msra.mxu0 0
        %3251 = vmatprep.subr.bf16.mxu0 0
        %3252 = vmatpush1.bf16.msra.mxu0 0
        %3253 = vmatprep.subr.bf16.mxu0 0
        %3254 = vmatpush1.bf16.msra.mxu0 0
        %3255 = vmatprep.subr.bf16.mxu0 0
        %3256 = vmatpush1.bf16.msra.mxu0 0
        %3257 = vmatprep.subr.bf16.mxu0 0
        %3258 = vmatpush1.bf16.msra.mxu0 0
        %3259 = vmatprep.subr.bf16.mxu0 0
        %3260 = vmatpush1.bf16.msra.mxu0 0
        %3261 = vmatprep.subr.bf16.mxu0 0
        %3262 = vmatpush1.bf16.msra.mxu0 0
        %3263 = vmatprep.mubr.bf16.mxu0 0
        %3264 = vmatmul.mubr.bf16.gmra.mrb[0].mxu0 %v3175
        %v3265 = vpop.f32.mrb[0].mxu0
        %v3266 = vadd.f32 0.0, %v3265
        %v3267 = vpop.f32.mrb[0].mxu0
        %v3268 = vpop.f32.mrb[0].mxu0
        %v3269 = vadd.f32 0.0, %v3268
        %v3270 = vpop.f32.mrb[0].mxu0
        %3271 = vmatprep.mubr.bf16.mxu0 0
        %3272 = vmatmul.mubr.bf16.gmra.mrb[0].mxu0 %v3178
        %v3273 = vpop.f32.mrb[0].mxu0
        %v3274 = vadd.f32 0.0, %v3273
        %v3275 = vpop.f32.mrb[0].mxu0
        %v3276 = vpop.f32.mrb[0].mxu0
        %v3277 = vadd.f32 0.0, %v3276
        %v3278 = vpop.f32.mrb[0].mxu0
        %3279 = vmatprep.mubr.bf16.mxu0 0
        %3280 = vmatmul.mubr.bf16.gmra.mrb[0].mxu0 %v3181
        %v3281 = vpop.f32.mrb[0].mxu0
        %v3282 = vadd.f32 0.0, %v3281
        %v3283 = vpop.f32.mrb[0].mxu0
        %v3284 = vpop.f32.mrb[0].mxu0
        %v3285 = vadd.f32 0.0, %v3284
        %v3286 = vpop.f32.mrb[0].mxu0
        %3287 = vmatprep.mubr.bf16.mxu0 0
        %3288 = vmatmul.mubr.bf16.gmra.mrb[0].mxu0 %v3184
        %v3289 = vpop.f32.mrb[0].mxu0
        %v3290 = vadd.f32 0.0, %v3289
        %v3291 = vpop.f32.mrb[0].mxu0
        %v3292 = vpop.f32.mrb[0].mxu0
        %v3293 = vadd.f32 0.0, %v3292
        %v3294 = vpop.f32.mrb[0].mxu0
        %3295 = vmatprep.mubr.bf16.mxu0 0
        %3296 = vmatmul.mubr.bf16.gmra.mrb[0].mxu0 %v3187
        %v3297 = vpop.f32.mrb[0].mxu0
        %v3298 = vadd.f32 0.0, %v3297
        %v3299 = vpop.f32.mrb[0].mxu0
        %v3300 = vpop.f32.mrb[0].mxu0
        %v3301 = vadd.f32 0.0, %v3300
        %v3302 = vpop.f32.mrb[0].mxu0
        %3303 = vmatprep.mubr.bf16.mxu0 0
        %3304 = vmatmul.mubr.bf16.gmra.mrb[0].mxu0 %v3190
        %v3305 = vpop.f32.mrb[0].mxu0
        %v3306 = vadd.f32 0.0, %v3305
        %v3307 = vpop.f32.mrb[0].mxu0
        %v3308 = vpop.f32.mrb[0].mxu0
        %v3309 = vadd.f32 0.0, %v3308
        %v3310 = vpop.f32.mrb[0].mxu0
        %3311 = vmatprep.mubr.bf16.mxu0 0
        %3312 = vmatmul.mubr.bf16.gmra.mrb[0].mxu0 %v3193
        %v3313 = vpop.f32.mrb[0].mxu0
        %v3314 = vadd.f32 0.0, %v3313
        %v3315 = vpop.f32.mrb[0].mxu0
        %v3316 = vpop.f32.mrb[0].mxu0
        %v3317 = vadd.f32 0.0, %v3316
        %v3318 = vpop.f32.mrb[0].mxu0
        %3319 = vmatprep.mubr.bf16.mxu0 0
        %3320 = vmatmul.mubr.bf16.gmra.mrb[0].mxu0 %v3196
        %v3321 = vpop.f32.mrb[0].mxu0
        %v3322 = vadd.f32 0.0, %v3321
        %v3323 = vpop.f32.mrb[0].mxu0
        %v3324 = vpop.f32.mrb[0].mxu0
        %v3325 = vadd.f32 0.0, %v3324
        %v3326 = vpop.f32.mrb[0].mxu0
        %3327 = vmatprep.mubr.bf16.mxu0 0
        %3328 = vmatmul.mubr.bf16.gmra.mrb[0].mxu0 %v3199
        %v3329 = vpop.f32.mrb[0].mxu0
        %v3330 = vadd.f32 0.0, %v3329
        %v3331 = vpop.f32.mrb[0].mxu0
        %v3332 = vpop.f32.mrb[0].mxu0
        %v3333 = vadd.f32 0.0, %v3332
        %v3334 = vpop.f32.mrb[0].mxu0
        %3335 = vmatprep.mubr.bf16.mxu0 0
        %3336 = vmatmul.mubr.bf16.gmra.mrb[0].mxu0 %v3202
        %v3337 = vpop.f32.mrb[0].mxu0
        %v3338 = vadd.f32 0.0, %v3337
        %v3339 = vpop.f32.mrb[0].mxu0
        %v3340 = vpop.f32.mrb[0].mxu0
        %v3341 = vadd.f32 0.0, %v3340
        %v3342 = vpop.f32.mrb[0].mxu0
        %3343 = vmatprep.mubr.bf16.mxu0 0
        %3344 = vmatmul.mubr.bf16.gmra.mrb[0].mxu0 %v3205
        %v3345 = vpop.f32.mrb[0].mxu0
        %v3346 = vadd.f32 0.0, %v3345
        %v3347 = vpop.f32.mrb[0].mxu0
        %v3348 = vpop.f32.mrb[0].mxu0
        %v3349 = vadd.f32 0.0, %v3348
        %v3350 = vpop.f32.mrb[0].mxu0
        %3351 = vmatprep.mubr.bf16.mxu0 0
        %3352 = vmatmul.mubr.bf16.gmra.mrb[0].mxu0 %v3208
        %v3353 = vpop.f32.mrb[0].mxu0
        %v3354 = vadd.f32 0.0, %v3353
        %v3355 = vpop.f32.mrb[0].mxu0
        %v3356 = vpop.f32.mrb[0].mxu0
        %v3357 = vadd.f32 0.0, %v3356
        %v3358 = vpop.f32.mrb[0].mxu0
        %3359 = vmatprep.mubr.bf16.mxu0 0
        %3360 = vmatmul.mubr.bf16.gmra.mrb[0].mxu0 %v3211
        %v3361 = vpop.f32.mrb[0].mxu0
        %v3362 = vadd.f32 0.0, %v3361
        %v3363 = vpop.f32.mrb[0].mxu0
        %v3364 = vpop.f32.mrb[0].mxu0
        %v3365 = vadd.f32 0.0, %v3364
        %v3366 = vpop.f32.mrb[0].mxu0
        %3367 = vmatprep.mubr.bf16.mxu0 0
        %3368 = vmatmul.mubr.bf16.gmra.mrb[0].mxu0 %v3214
        %v3369 = vpop.f32.mrb[0].mxu0
        %v3370 = vadd.f32 0.0, %v3369
        %v3371 = vpop.f32.mrb[0].mxu0
        %v3372 = vpop.f32.mrb[0].mxu0
        %v3373 = vadd.f32 0.0, %v3372
        %v3374 = vpop.f32.mrb[0].mxu0
        %3375 = vmatprep.mubr.bf16.mxu0 0
        %3376 = vmatmul.mubr.bf16.gmra.mrb[0].mxu0 %v3217
        %v3377 = vpop.f32.mrb[0].mxu0
        %v3378 = vadd.f32 0.0, %v3377
        %v3379 = vpop.f32.mrb[0].mxu0
        %v3380 = vpop.f32.mrb[0].mxu0
        %v3381 = vadd.f32 0.0, %v3380
        %v3382 = vpop.f32.mrb[0].mxu0
        %3383 = vmatprep.mubr.bf16.mxu0 0
        %3384 = vmatmul.mubr.bf16.gmra.mrb[0].mxu0 %v3220
        %v3385 = vpop.f32.mrb[0].mxu0
        %v3386 = vadd.f32 0.0, %v3385
        %v3387 = vpop.f32.mrb[0].mxu0
        %v3388 = vpop.f32.mrb[0].mxu0
        %v3389 = vadd.f32 0.0, %v3388
        %v3390 = vpop.f32.mrb[0].mxu0
        %3391 = vmatprep.mubr.bf16.mxu0 0
        %3392 = vmatmul.mubr.bf16.gmra.mrb[0].mxu0 %v3223
        %v3393 = vpop.f32.mrb[0].mxu0
        %v3394 = vadd.f32 0.0, %v3393
        %v3395 = vpop.f32.mrb[0].mxu0
        %v3396 = vpop.f32.mrb[0].mxu0
        %v3397 = vadd.f32 0.0, %v3396
        %v3398 = vpop.f32.mrb[0].mxu0
        %3399 = vmatprep.mubr.bf16.mxu0 0
        %3400 = vmatmul.mubr.bf16.gmra.mrb[0].mxu0 %v3226
        %v3401 = vpop.f32.mrb[0].mxu0
        %v3402 = vadd.f32 0.0, %v3401
        %v3403 = vpop.f32.mrb[0].mxu0
        %v3404 = vpop.f32.mrb[0].mxu0
        %v3405 = vadd.f32 0.0, %v3404
        %v3406 = vpop.f32.mrb[0].mxu0
        %3407 = vdwg.mxu0
        %v3408 = vadd.f32 %v3005, %v3266
        %v3409 = vadd.f32 %v3006, %v3269
        %v3410 = vadd.f32 %v3007, %v3274
        %v3411 = vadd.f32 %v3008, %v3277
        %v3412 = vadd.f32 %v3009, %v3282
        %v3413 = vadd.f32 %v3010, %v3285
        %v3414 = vadd.f32 %v3011, %v3290
        %v3415 = vadd.f32 %v3012, %v3293
        %v3416 = vadd.f32 %v3013, %v3298
        %v3417 = vadd.f32 %v3014, %v3301
        %v3418 = vadd.f32 %v3015, %v3306
        %v3419 = vadd.f32 %v3016, %v3309
        %v3420 = vadd.f32 %v3017, %v3314
        %v3421 = vadd.f32 %v3018, %v3317
        %v3422 = vadd.f32 %v3019, %v3322
        %v3423 = vadd.f32 %v3020, %v3325
        %v3424 = vadd.f32 %v3021, %v3330
        %v3425 = vadd.f32 %v3022, %v3333
        %v3426 = vadd.f32 %v3023, %v3338
        %v3427 = vadd.f32 %v3024, %v3341
        %v3428 = vadd.f32 %v3025, %v3346
        %v3429 = vadd.f32 %v3026, %v3349
        %v3430 = vadd.f32 %v3027, %v3354
        %v3431 = vadd.f32 %v3028, %v3357
        %v3432 = vadd.f32 %v3029, %v3362
        %v3433 = vadd.f32 %v3030, %v3365
        %v3434 = vadd.f32 %v3031, %v3370
        %v3435 = vadd.f32 %v3032, %v3373
        %v3436 = vadd.f32 %v3033, %v3378
        %v3437 = vadd.f32 %v3034, %v3381
        %v3438 = vadd.f32 %v3035, %v3386
        %v3439 = vadd.f32 %v3036, %v3389
        %v3440 = vadd.f32 %v3037, %v3394
        %v3441 = vadd.f32 %v3038, %v3397
        %v3442 = vadd.f32 %v3039, %v3402
        %v3443 = vadd.f32 %v3040, %v3405
        %3444 = vst [vmem:[#allocation2] sm:$0xff] %v3408
        %3445 = vst [vmem:[#allocation2 + $0x8] sm:$0xff] %v3409
        %3446 = vst [vmem:[#allocation2 + $0x10] sm:$0xff] %v3410
        %3447 = vst [vmem:[#allocation2 + $0x18] sm:$0xff] %v3411
        %3448 = vst [vmem:[#allocation2 + $0x20] sm:$0xff] %v3412
        %3449 = vst [vmem:[#allocation2 + $0x28] sm:$0xff] %v3413
        %3450 = vst [vmem:[#allocation2 + $0x30] sm:$0xff] %v3414
        %3451 = vst [vmem:[#allocation2 + $0x38] sm:$0xff] %v3415
        %3452 = vst [vmem:[#allocation2 + $0x40] sm:$0xff] %v3416
        %3453 = vst [vmem:[#allocation2 + $0x48] sm:$0xff] %v3417
        %3454 = vst [vmem:[#allocation2 + $0x50] sm:$0xff] %v3418
        %3455 = vst [vmem:[#allocation2 + $0x58] sm:$0xff] %v3419
        %3456 = vst [vmem:[#allocation2 + $0x60] sm:$0xff] %v3420
        %3457 = vst [vmem:[#allocation2 + $0x68] sm:$0xff] %v3421
        %3458 = vst [vmem:[#allocation2 + $0x70] sm:$0xff] %v3422
        %3459 = vst [vmem:[#allocation2 + $0x78] sm:$0xff] %v3423
        %3460 = vst [vmem:[#allocation2 + $0x80] sm:$0xff] %v3424
        %3461 = vst [vmem:[#allocation2 + $0x88] sm:$0xff] %v3425
        %3462 = vst [vmem:[#allocation2 + $0x90] sm:$0xff] %v3426
        %3463 = vst [vmem:[#allocation2 + $0x98] sm:$0xff] %v3427
        %3464 = vst [vmem:[#allocation2 + $0xa0] sm:$0xff] %v3428
        %3465 = vst [vmem:[#allocation2 + $0xa8] sm:$0xff] %v3429
        %3466 = vst [vmem:[#allocation2 + $0xb0] sm:$0xff] %v3430
        %3467 = vst [vmem:[#allocation2 + $0xb8] sm:$0xff] %v3431
        %3468 = vst [vmem:[#allocation2 + $0xc0] sm:$0xff] %v3432
        %3469 = vst [vmem:[#allocation2 + $0xc8] sm:$0xff] %v3433
        %3470 = vst [vmem:[#allocation2 + $0xd0] sm:$0xff] %v3434
        %3471 = vst [vmem:[#allocation2 + $0xd8] sm:$0xff] %v3435
        %3472 = vst [vmem:[#allocation2 + $0xe0] sm:$0xff] %v3436
        %3473 = vst [vmem:[#allocation2 + $0xe8] sm:$0xff] %v3437
        %3474 = vst [vmem:[#allocation2 + $0xf0] sm:$0xff] %v3438
        %3475 = vst [vmem:[#allocation2 + $0xf8] sm:$0xff] %v3439
        %3476 = vst [vmem:[#allocation2 + $0x100] sm:$0xff] %v3440
        %3477 = vst [vmem:[#allocation2 + $0x108] sm:$0xff] %v3441
        %3478 = vst [vmem:[#allocation2 + $0x110] sm:$0xff] %v3442
        %3479 = vst [vmem:[#allocation2 + $0x118] sm:$0xff] %v3443
        %v3480 = vld [vmem:[%s168 + $0x10] sm:$0xc]
        %v3481 = vld [vmem:[%s168 + $0x14] sm:$0xf]
        %v3482 = vld [vmem:[%s168 + $0x18] sm:$0xf]
        %v3483 = vld [vmem:[%s168 + $0x1c] sm:$0xf]
        %v3484 = vld [vmem:[%s168 + $0x20] sm:$0xf]
        %v3485 = vld [vmem:[%s168 + $0x24] sm:$0xf]
        %v3486 = vld [vmem:[%s168 + $0x28] sm:$0xf]
        %v3487 = vld [vmem:[%s168 + $0x2c] sm:$0xf]
        %v3488 = vld [vmem:[%s168 + $0x30] sm:$0xf]
        %v3489 = vld [vmem:[%s168 + $0x34] sm:$0xf]
        %v3490 = vld [vmem:[%s168 + $0x38] sm:$0xf]
        %v3491 = vld [vmem:[%s168 + $0x3c] sm:$0xf]
        %v3492 = vld [vmem:[%s168 + $0x40] sm:$0xf]
        %v3493 = vld [vmem:[%s168 + $0x44] sm:$0xf]
        %v3494 = vld [vmem:[%s168 + $0x48] sm:$0xf]
        %v3495 = vld [vmem:[%s168 + $0x4c] sm:$0xf]
        %v3496 = vld [vmem:[%s168 + $0x50] sm:$0xf]
        %v3497 = vld [vmem:[%s168 + $0x54] sm:$0xf]
        %v3498 = vld [vmem:[%s168 + $0x58] sm:$0xf]
        %v3499 = vld [vmem:[%s168 + $0x5c] sm:$0xf]
        %v3500 = vld [vmem:[%s168 + $0x60] sm:$0xf]
        %v3501 = vld [vmem:[%s168 + $0x64] sm:$0xf]
        %v3502 = vld [vmem:[%s168 + $0x68] sm:$0xf]
        %v3503 = vld [vmem:[%s168 + $0x6c] sm:$0xf]
        %v3504 = vld [vmem:[%s168 + $0x70] sm:$0xf]
        %v3505 = vld [vmem:[%s168 + $0x74] sm:$0xf]
        %v3506 = vld [vmem:[%s168 + $0x78] sm:$0xf]
        %v3507 = vld [vmem:[%s168 + $0x7c] sm:$0xf]
        %v3508 = vld [vmem:[%s168 + $0x80] sm:$0xf]
        %v3509 = vld [vmem:[%s168 + $0x84] sm:$0xf]
        %v3510 = vld [vmem:[%s168 + $0x88] sm:$0xf]
        %v3511 = vld [vmem:[%s168 + $0x8c] sm:$0xf]
        %v3512 = vld [vmem:[%s168 + $0x90] sm:$0xf]
        %v3513 = vld [vmem:[%s168 + $0x94] sm:$0xf]
        %v3514 = vld [vmem:[%s168 + $0x98] sm:$0xf]
        %v3515 = vld [vmem:[%s168 + $0x9c] sm:$0xf]
        %v3516 = vld [vmem:[%s168 + $0xa0] sm:$0x3]
        %v3517 = vld [vmem:[#allocation2] sm:$0xff]
        %v3518 = vld [vmem:[#allocation2 + $0x8] sm:$0xff]
        %v3519 = vld [vmem:[#allocation2 + $0x10] sm:$0xff]
        %v3520 = vld [vmem:[#allocation2 + $0x18] sm:$0xff]
        %v3521 = vld [vmem:[#allocation2 + $0x20] sm:$0xff]
        %v3522 = vld [vmem:[#allocation2 + $0x28] sm:$0xff]
        %v3523 = vld [vmem:[#allocation2 + $0x30] sm:$0xff]
        %v3524 = vld [vmem:[#allocation2 + $0x38] sm:$0xff]
        %v3525 = vld [vmem:[#allocation2 + $0x40] sm:$0xff]
        %v3526 = vld [vmem:[#allocation2 + $0x48] sm:$0xff]
        %v3527 = vld [vmem:[#allocation2 + $0x50] sm:$0xff]
        %v3528 = vld [vmem:[#allocation2 + $0x58] sm:$0xff]
        %v3529 = vld [vmem:[#allocation2 + $0x60] sm:$0xff]
        %v3530 = vld [vmem:[#allocation2 + $0x68] sm:$0xff]
        %v3531 = vld [vmem:[#allocation2 + $0x70] sm:$0xff]
        %v3532 = vld [vmem:[#allocation2 + $0x78] sm:$0xff]
        %v3533 = vld [vmem:[#allocation2 + $0x80] sm:$0xff]
        %v3534 = vld [vmem:[#allocation2 + $0x88] sm:$0xff]
        %v3535 = vld [vmem:[#allocation2 + $0x90] sm:$0xff]
        %v3536 = vld [vmem:[#allocation2 + $0x98] sm:$0xff]
        %v3537 = vld [vmem:[#allocation2 + $0xa0] sm:$0xff]
        %v3538 = vld [vmem:[#allocation2 + $0xa8] sm:$0xff]
        %v3539 = vld [vmem:[#allocation2 + $0xb0] sm:$0xff]
        %v3540 = vld [vmem:[#allocation2 + $0xb8] sm:$0xff]
        %v3541 = vld [vmem:[#allocation2 + $0xc0] sm:$0xff]
        %v3542 = vld [vmem:[#allocation2 + $0xc8] sm:$0xff]
        %v3543 = vld [vmem:[#allocation2 + $0xd0] sm:$0xff]
        %v3544 = vld [vmem:[#allocation2 + $0xd8] sm:$0xff]
        %v3545 = vld [vmem:[#allocation2 + $0xe0] sm:$0xff]
        %v3546 = vld [vmem:[#allocation2 + $0xe8] sm:$0xff]
        %v3547 = vld [vmem:[#allocation2 + $0xf0] sm:$0xff]
        %v3548 = vld [vmem:[#allocation2 + $0xf8] sm:$0xff]
        %v3549 = vld [vmem:[#allocation2 + $0x100] sm:$0xff]
        %v3550 = vld [vmem:[#allocation2 + $0x108] sm:$0xff]
        %v3551 = vld [vmem:[#allocation2 + $0x110] sm:$0xff]
        %v3552 = vld [vmem:[#allocation2 + $0x118] sm:$0xff]
        %s3553 = scalar_lea.vmem %s1, 24
        %v3554 = vld [vmem:[%s3553] sm:$0xf]
        %v3592 = vunpack.c.l.b16 %v3480
        %v3593 = vunpack.c.l.b16 %v3481
        %v3594 = vunpack.c.l.b16 %v3482
        %v3595 = vunpack.c.l.b16 %v3483
        %v3596 = vunpack.c.l.b16 %v3484
        %v3597 = vunpack.c.l.b16 %v3485
        %v3598 = vunpack.c.l.b16 %v3486
        %v3599 = vunpack.c.l.b16 %v3487
        %v3600 = vunpack.c.l.b16 %v3488
        %v3601 = vunpack.c.l.b16 %v3489
        %v3602 = vunpack.c.l.b16 %v3490
        %v3603 = vunpack.c.l.b16 %v3491
        %v3604 = vunpack.c.l.b16 %v3492
        %v3605 = vunpack.c.l.b16 %v3493
        %v3606 = vunpack.c.l.b16 %v3494
        %v3607 = vunpack.c.l.b16 %v3495
        %v3608 = vunpack.c.l.b16 %v3496
        %v3609 = vunpack.c.l.b16 %v3497
        %v3610 = vunpack.c.l.b16 %v3498
        %v3611 = vunpack.c.l.b16 %v3499
        %v3612 = vunpack.c.l.b16 %v3500
        %v3613 = vunpack.c.l.b16 %v3501
        %v3614 = vunpack.c.l.b16 %v3502
        %v3615 = vunpack.c.l.b16 %v3503
        %v3616 = vunpack.c.l.b16 %v3504
        %v3617 = vunpack.c.l.b16 %v3505
        %v3618 = vunpack.c.l.b16 %v3506
        %v3619 = vunpack.c.l.b16 %v3507
        %v3620 = vunpack.c.l.b16 %v3508
        %v3621 = vunpack.c.l.b16 %v3509
        %v3622 = vunpack.c.l.b16 %v3510
        %v3623 = vunpack.c.l.b16 %v3511
        %v3624 = vunpack.c.l.b16 %v3512
        %v3625 = vunpack.c.l.b16 %v3513
        %v3626 = vunpack.c.l.b16 %v3514
        %v3627 = vunpack.c.l.b16 %v3515
        %v3628 = vunpack.c.l.b16 %v3516
        %v3629 = vpack.c.b16 %v3593, %v3592
        %v3630 = vpack.c.b16 %v3595, %v3594
        %v3631 = vpack.c.b16 %v3597, %v3596
        %v3632 = vpack.c.b16 %v3599, %v3598
        %v3633 = vpack.c.b16 %v3601, %v3600
        %v3634 = vpack.c.b16 %v3603, %v3602
        %v3635 = vpack.c.b16 %v3605, %v3604
        %v3636 = vpack.c.b16 %v3607, %v3606
        %v3637 = vpack.c.b16 %v3609, %v3608
        %v3638 = vpack.c.b16 %v3611, %v3610
        %v3639 = vpack.c.b16 %v3613, %v3612
        %v3640 = vpack.c.b16 %v3615, %v3614
        %v3641 = vpack.c.b16 %v3617, %v3616
        %v3642 = vpack.c.b16 %v3619, %v3618
        %v3643 = vpack.c.b16 %v3621, %v3620
        %v3644 = vpack.c.b16 %v3623, %v3622
        %v3645 = vpack.c.b16 %v3625, %v3624
        %v3646 = vpack.c.b16 %v3627, %v3626
        %v3647 = vpack.c.b16 %v3628, %v3628
        %v3648 = vrot.slane %v3629, 2
        %v3649 = vrot.slane %v3630, 2
        %v3650 = vsel %vm3136, %v3648, %v3649
        %v3651 = vrot.slane %v3631, 2
        %v3652 = vsel %vm3136, %v3649, %v3651
        %v3653 = vrot.slane %v3632, 2
        %v3654 = vsel %vm3136, %v3651, %v3653
        %v3655 = vrot.slane %v3633, 2
        %v3656 = vsel %vm3136, %v3653, %v3655
        %v3657 = vrot.slane %v3634, 2
        %v3658 = vsel %vm3136, %v3655, %v3657
        %v3659 = vrot.slane %v3635, 2
        %v3660 = vsel %vm3136, %v3657, %v3659
        %v3661 = vrot.slane %v3636, 2
        %v3662 = vsel %vm3136, %v3659, %v3661
        %v3663 = vrot.slane %v3637, 2
        %v3664 = vsel %vm3136, %v3661, %v3663
        %v3665 = vrot.slane %v3638, 2
        %v3666 = vsel %vm3136, %v3663, %v3665
        %v3667 = vrot.slane %v3639, 2
        %v3668 = vsel %vm3136, %v3665, %v3667
        %v3669 = vrot.slane %v3640, 2
        %v3670 = vsel %vm3136, %v3667, %v3669
        %v3671 = vrot.slane %v3641, 2
        %v3672 = vsel %vm3136, %v3669, %v3671
        %v3673 = vrot.slane %v3642, 2
        %v3674 = vsel %vm3136, %v3671, %v3673
        %v3675 = vrot.slane %v3643, 2
        %v3676 = vsel %vm3136, %v3673, %v3675
        %v3677 = vrot.slane %v3644, 2
        %v3678 = vsel %vm3136, %v3675, %v3677
        %v3679 = vrot.slane %v3645, 2
        %v3680 = vsel %vm3136, %v3677, %v3679
        %v3681 = vrot.slane %v3646, 2
        %v3682 = vsel %vm3136, %v3679, %v3681
        %v3683 = vrot.slane %v3647, 2
        %v3684 = vsel %vm3136, %v3681, %v3683
        %v3686 = vsel %vm369, %v3650, 0
        %v3689 = vsel %vm369, %v3652, 0
        %v3692 = vsel %vm369, %v3654, 0
        %v3695 = vsel %vm369, %v3656, 0
        %v3698 = vsel %vm369, %v3658, 0
        %v3701 = vsel %vm369, %v3660, 0
        %v3704 = vsel %vm369, %v3662, 0
        %v3707 = vsel %vm369, %v3664, 0
        %v3710 = vsel %vm369, %v3666, 0
        %v3713 = vsel %vm369, %v3668, 0
        %v3716 = vsel %vm369, %v3670, 0
        %v3719 = vsel %vm369, %v3672, 0
        %v3722 = vsel %vm369, %v3674, 0
        %v3725 = vsel %vm369, %v3676, 0
        %v3728 = vsel %vm369, %v3678, 0
        %v3731 = vsel %vm369, %v3680, 0
        %v3734 = vsel %vm369, %v3682, 0
        %v3737 = vsel %vm369, %v3684, 0
        %v3740 = vsel %vm424, %v3554, 0
        %3742 = vmatprep.subr.bf16.mxu0 0
        %3743 = vmatpush1.bf16.msra.mxu0 %v3740
        %3744 = vmatprep.subr.bf16.mxu0 0
        %3745 = vmatpush1.bf16.msra.mxu0 0
        %3746 = vmatprep.subr.bf16.mxu0 0
        %3747 = vmatpush1.bf16.msra.mxu0 0
        %3748 = vmatprep.subr.bf16.mxu0 0
        %3749 = vmatpush1.bf16.msra.mxu0 0
        %3750 = vmatprep.subr.bf16.mxu0 0
        %3751 = vmatpush1.bf16.msra.mxu0 0
        %3752 = vmatprep.subr.bf16.mxu0 0
        %3753 = vmatpush1.bf16.msra.mxu0 0
        %3754 = vmatprep.subr.bf16.mxu0 0
        %3755 = vmatpush1.bf16.msra.mxu0 0
        %3756 = vmatprep.subr.bf16.mxu0 0
        %3757 = vmatpush1.bf16.msra.mxu0 0
        %3758 = vmatprep.subr.bf16.mxu0 0
        %3759 = vmatpush1.bf16.msra.mxu0 0
        %3760 = vmatprep.subr.bf16.mxu0 0
        %3761 = vmatpush1.bf16.msra.mxu0 0
        %3762 = vmatprep.subr.bf16.mxu0 0
        %3763 = vmatpush1.bf16.msra.mxu0 0
        %3764 = vmatprep.subr.bf16.mxu0 0
        %3765 = vmatpush1.bf16.msra.mxu0 0
        %3766 = vmatprep.subr.bf16.mxu0 0
        %3767 = vmatpush1.bf16.msra.mxu0 0
        %3768 = vmatprep.subr.bf16.mxu0 0
        %3769 = vmatpush1.bf16.msra.mxu0 0
        %3770 = vmatprep.subr.bf16.mxu0 0
        %3771 = vmatpush1.bf16.msra.mxu0 0
        %3772 = vmatprep.subr.bf16.mxu0 0
        %3773 = vmatpush1.bf16.msra.mxu0 0
        %3774 = vmatprep.mubr.bf16.mxu0 0
        %3775 = vmatmul.mubr.bf16.gmra.mrb[0].mxu0 %v3686
        %v3776 = vpop.f32.mrb[0].mxu0
        %v3777 = vadd.f32 0.0, %v3776
        %v3778 = vpop.f32.mrb[0].mxu0
        %v3779 = vpop.f32.mrb[0].mxu0
        %v3780 = vadd.f32 0.0, %v3779
        %v3781 = vpop.f32.mrb[0].mxu0
        %3782 = vmatprep.mubr.bf16.mxu0 0
        %3783 = vmatmul.mubr.bf16.gmra.mrb[0].mxu0 %v3689
        %v3784 = vpop.f32.mrb[0].mxu0
        %v3785 = vadd.f32 0.0, %v3784
        %v3786 = vpop.f32.mrb[0].mxu0
        %v3787 = vpop.f32.mrb[0].mxu0
        %v3788 = vadd.f32 0.0, %v3787
        %v3789 = vpop.f32.mrb[0].mxu0
        %3790 = vmatprep.mubr.bf16.mxu0 0
        %3791 = vmatmul.mubr.bf16.gmra.mrb[0].mxu0 %v3692
        %v3792 = vpop.f32.mrb[0].mxu0
        %v3793 = vadd.f32 0.0, %v3792
        %v3794 = vpop.f32.mrb[0].mxu0
        %v3795 = vpop.f32.mrb[0].mxu0
        %v3796 = vadd.f32 0.0, %v3795
        %v3797 = vpop.f32.mrb[0].mxu0
        %3798 = vmatprep.mubr.bf16.mxu0 0
        %3799 = vmatmul.mubr.bf16.gmra.mrb[0].mxu0 %v3695
        %v3800 = vpop.f32.mrb[0].mxu0
        %v3801 = vadd.f32 0.0, %v3800
        %v3802 = vpop.f32.mrb[0].mxu0
        %v3803 = vpop.f32.mrb[0].mxu0
        %v3804 = vadd.f32 0.0, %v3803
        %v3805 = vpop.f32.mrb[0].mxu0
        %3806 = vmatprep.mubr.bf16.mxu0 0
        %3807 = vmatmul.mubr.bf16.gmra.mrb[0].mxu0 %v3698
        %v3808 = vpop.f32.mrb[0].mxu0
        %v3809 = vadd.f32 0.0, %v3808
        %v3810 = vpop.f32.mrb[0].mxu0
        %v3811 = vpop.f32.mrb[0].mxu0
        %v3812 = vadd.f32 0.0, %v3811
        %v3813 = vpop.f32.mrb[0].mxu0
        %3814 = vmatprep.mubr.bf16.mxu0 0
        %3815 = vmatmul.mubr.bf16.gmra.mrb[0].mxu0 %v3701
        %v3816 = vpop.f32.mrb[0].mxu0
        %v3817 = vadd.f32 0.0, %v3816
        %v3818 = vpop.f32.mrb[0].mxu0
        %v3819 = vpop.f32.mrb[0].mxu0
        %v3820 = vadd.f32 0.0, %v3819
        %v3821 = vpop.f32.mrb[0].mxu0
        %3822 = vmatprep.mubr.bf16.mxu0 0
        %3823 = vmatmul.mubr.bf16.gmra.mrb[0].mxu0 %v3704
        %v3824 = vpop.f32.mrb[0].mxu0
        %v3825 = vadd.f32 0.0, %v3824
        %v3826 = vpop.f32.mrb[0].mxu0
        %v3827 = vpop.f32.mrb[0].mxu0
        %v3828 = vadd.f32 0.0, %v3827
        %v3829 = vpop.f32.mrb[0].mxu0
        %3830 = vmatprep.mubr.bf16.mxu0 0
        %3831 = vmatmul.mubr.bf16.gmra.mrb[0].mxu0 %v3707
        %v3832 = vpop.f32.mrb[0].mxu0
        %v3833 = vadd.f32 0.0, %v3832
        %v3834 = vpop.f32.mrb[0].mxu0
        %v3835 = vpop.f32.mrb[0].mxu0
        %v3836 = vadd.f32 0.0, %v3835
        %v3837 = vpop.f32.mrb[0].mxu0
        %3838 = vmatprep.mubr.bf16.mxu0 0
        %3839 = vmatmul.mubr.bf16.gmra.mrb[0].mxu0 %v3710
        %v3840 = vpop.f32.mrb[0].mxu0
        %v3841 = vadd.f32 0.0, %v3840
        %v3842 = vpop.f32.mrb[0].mxu0
        %v3843 = vpop.f32.mrb[0].mxu0
        %v3844 = vadd.f32 0.0, %v3843
        %v3845 = vpop.f32.mrb[0].mxu0
        %3846 = vmatprep.mubr.bf16.mxu0 0
        %3847 = vmatmul.mubr.bf16.gmra.mrb[0].mxu0 %v3713
        %v3848 = vpop.f32.mrb[0].mxu0
        %v3849 = vadd.f32 0.0, %v3848
        %v3850 = vpop.f32.mrb[0].mxu0
        %v3851 = vpop.f32.mrb[0].mxu0
        %v3852 = vadd.f32 0.0, %v3851
        %v3853 = vpop.f32.mrb[0].mxu0
        %3854 = vmatprep.mubr.bf16.mxu0 0
        %3855 = vmatmul.mubr.bf16.gmra.mrb[0].mxu0 %v3716
        %v3856 = vpop.f32.mrb[0].mxu0
        %v3857 = vadd.f32 0.0, %v3856
        %v3858 = vpop.f32.mrb[0].mxu0
        %v3859 = vpop.f32.mrb[0].mxu0
        %v3860 = vadd.f32 0.0, %v3859
        %v3861 = vpop.f32.mrb[0].mxu0
        %3862 = vmatprep.mubr.bf16.mxu0 0
        %3863 = vmatmul.mubr.bf16.gmra.mrb[0].mxu0 %v3719
        %v3864 = vpop.f32.mrb[0].mxu0
        %v3865 = vadd.f32 0.0, %v3864
        %v3866 = vpop.f32.mrb[0].mxu0
        %v3867 = vpop.f32.mrb[0].mxu0
        %v3868 = vadd.f32 0.0, %v3867
        %v3869 = vpop.f32.mrb[0].mxu0
        %3870 = vmatprep.mubr.bf16.mxu0 0
        %3871 = vmatmul.mubr.bf16.gmra.mrb[0].mxu0 %v3722
        %v3872 = vpop.f32.mrb[0].mxu0
        %v3873 = vadd.f32 0.0, %v3872
        %v3874 = vpop.f32.mrb[0].mxu0
        %v3875 = vpop.f32.mrb[0].mxu0
        %v3876 = vadd.f32 0.0, %v3875
        %v3877 = vpop.f32.mrb[0].mxu0
        %3878 = vmatprep.mubr.bf16.mxu0 0
        %3879 = vmatmul.mubr.bf16.gmra.mrb[0].mxu0 %v3725
        %v3880 = vpop.f32.mrb[0].mxu0
        %v3881 = vadd.f32 0.0, %v3880
        %v3882 = vpop.f32.mrb[0].mxu0
        %v3883 = vpop.f32.mrb[0].mxu0
        %v3884 = vadd.f32 0.0, %v3883
        %v3885 = vpop.f32.mrb[0].mxu0
        %3886 = vmatprep.mubr.bf16.mxu0 0
        %3887 = vmatmul.mubr.bf16.gmra.mrb[0].mxu0 %v3728
        %v3888 = vpop.f32.mrb[0].mxu0
        %v3889 = vadd.f32 0.0, %v3888
        %v3890 = vpop.f32.mrb[0].mxu0
        %v3891 = vpop.f32.mrb[0].mxu0
        %v3892 = vadd.f32 0.0, %v3891
        %v3893 = vpop.f32.mrb[0].mxu0
        %3894 = vmatprep.mubr.bf16.mxu0 0
        %3895 = vmatmul.mubr.bf16.gmra.mrb[0].mxu0 %v3731
        %v3896 = vpop.f32.mrb[0].mxu0
        %v3897 = vadd.f32 0.0, %v3896
        %v3898 = vpop.f32.mrb[0].mxu0
        %v3899 = vpop.f32.mrb[0].mxu0
        %v3900 = vadd.f32 0.0, %v3899
        %v3901 = vpop.f32.mrb[0].mxu0
        %3902 = vmatprep.mubr.bf16.mxu0 0
        %3903 = vmatmul.mubr.bf16.gmra.mrb[0].mxu0 %v3734
        %v3904 = vpop.f32.mrb[0].mxu0
        %v3905 = vadd.f32 0.0, %v3904
        %v3906 = vpop.f32.mrb[0].mxu0
        %v3907 = vpop.f32.mrb[0].mxu0
        %v3908 = vadd.f32 0.0, %v3907
        %v3909 = vpop.f32.mrb[0].mxu0
        %3910 = vmatprep.mubr.bf16.mxu0 0
        %3911 = vmatmul.mubr.bf16.gmra.mrb[0].mxu0 %v3737
        %v3912 = vpop.f32.mrb[0].mxu0
        %v3913 = vadd.f32 0.0, %v3912
        %v3914 = vpop.f32.mrb[0].mxu0
        %v3915 = vpop.f32.mrb[0].mxu0
        %v3916 = vadd.f32 0.0, %v3915
        %v3917 = vpop.f32.mrb[0].mxu0
        %3918 = vdwg.mxu0
        %v3919 = vadd.f32 %v3517, %v3777
        %v3920 = vadd.f32 %v3518, %v3780
        %v3921 = vadd.f32 %v3519, %v3785
        %v3922 = vadd.f32 %v3520, %v3788
        %v3923 = vadd.f32 %v3521, %v3793
        %v3924 = vadd.f32 %v3522, %v3796
        %v3925 = vadd.f32 %v3523, %v3801
        %v3926 = vadd.f32 %v3524, %v3804
        %v3927 = vadd.f32 %v3525, %v3809
        %v3928 = vadd.f32 %v3526, %v3812
        %v3929 = vadd.f32 %v3527, %v3817
        %v3930 = vadd.f32 %v3528, %v3820
        %v3931 = vadd.f32 %v3529, %v3825
        %v3932 = vadd.f32 %v3530, %v3828
        %v3933 = vadd.f32 %v3531, %v3833
        %v3934 = vadd.f32 %v3532, %v3836
        %v3935 = vadd.f32 %v3533, %v3841
        %v3936 = vadd.f32 %v3534, %v3844
        %v3937 = vadd.f32 %v3535, %v3849
        %v3938 = vadd.f32 %v3536, %v3852
        %v3939 = vadd.f32 %v3537, %v3857
        %v3940 = vadd.f32 %v3538, %v3860
        %v3941 = vadd.f32 %v3539, %v3865
        %v3942 = vadd.f32 %v3540, %v3868
        %v3943 = vadd.f32 %v3541, %v3873
        %v3944 = vadd.f32 %v3542, %v3876
        %v3945 = vadd.f32 %v3543, %v3881
        %v3946 = vadd.f32 %v3544, %v3884
        %v3947 = vadd.f32 %v3545, %v3889
        %v3948 = vadd.f32 %v3546, %v3892
        %v3949 = vadd.f32 %v3547, %v3897
        %v3950 = vadd.f32 %v3548, %v3900
        %v3951 = vadd.f32 %v3549, %v3905
        %v3952 = vadd.f32 %v3550, %v3908
        %v3953 = vadd.f32 %v3551, %v3913
        %v3954 = vadd.f32 %v3552, %v3916
        %3955 = vst [vmem:[#allocation2] sm:$0xff] %v3919
        %3956 = vst [vmem:[#allocation2 + $0x8] sm:$0xff] %v3920
        %3957 = vst [vmem:[#allocation2 + $0x10] sm:$0xff] %v3921
        %3958 = vst [vmem:[#allocation2 + $0x18] sm:$0xff] %v3922
        %3959 = vst [vmem:[#allocation2 + $0x20] sm:$0xff] %v3923
        %3960 = vst [vmem:[#allocation2 + $0x28] sm:$0xff] %v3924
        %3961 = vst [vmem:[#allocation2 + $0x30] sm:$0xff] %v3925
        %3962 = vst [vmem:[#allocation2 + $0x38] sm:$0xff] %v3926
        %3963 = vst [vmem:[#allocation2 + $0x40] sm:$0xff] %v3927
        %3964 = vst [vmem:[#allocation2 + $0x48] sm:$0xff] %v3928
        %3965 = vst [vmem:[#allocation2 + $0x50] sm:$0xff] %v3929
        %3966 = vst [vmem:[#allocation2 + $0x58] sm:$0xff] %v3930
        %3967 = vst [vmem:[#allocation2 + $0x60] sm:$0xff] %v3931
        %3968 = vst [vmem:[#allocation2 + $0x68] sm:$0xff] %v3932
        %3969 = vst [vmem:[#allocation2 + $0x70] sm:$0xff] %v3933
        %3970 = vst [vmem:[#allocation2 + $0x78] sm:$0xff] %v3934
        %3971 = vst [vmem:[#allocation2 + $0x80] sm:$0xff] %v3935
        %3972 = vst [vmem:[#allocation2 + $0x88] sm:$0xff] %v3936
        %3973 = vst [vmem:[#allocation2 + $0x90] sm:$0xff] %v3937
        %3974 = vst [vmem:[#allocation2 + $0x98] sm:$0xff] %v3938
        %3975 = vst [vmem:[#allocation2 + $0xa0] sm:$0xff] %v3939
        %3976 = vst [vmem:[#allocation2 + $0xa8] sm:$0xff] %v3940
        %3977 = vst [vmem:[#allocation2 + $0xb0] sm:$0xff] %v3941
        %3978 = vst [vmem:[#allocation2 + $0xb8] sm:$0xff] %v3942
        %3979 = vst [vmem:[#allocation2 + $0xc0] sm:$0xff] %v3943
        %3980 = vst [vmem:[#allocation2 + $0xc8] sm:$0xff] %v3944
        %3981 = vst [vmem:[#allocation2 + $0xd0] sm:$0xff] %v3945
        %3982 = vst [vmem:[#allocation2 + $0xd8] sm:$0xff] %v3946
        %3983 = vst [vmem:[#allocation2 + $0xe0] sm:$0xff] %v3947
        %3984 = vst [vmem:[#allocation2 + $0xe8] sm:$0xff] %v3948
        %3985 = vst [vmem:[#allocation2 + $0xf0] sm:$0xff] %v3949
        %3986 = vst [vmem:[#allocation2 + $0xf8] sm:$0xff] %v3950
        %3987 = vst [vmem:[#allocation2 + $0x100] sm:$0xff] %v3951
        %3988 = vst [vmem:[#allocation2 + $0x108] sm:$0xff] %v3952
        %3989 = vst [vmem:[#allocation2 + $0x110] sm:$0xff] %v3953
        %3990 = vst [vmem:[#allocation2 + $0x118] sm:$0xff] %v3954
        %v3991 = vld [vmem:[%s168 + $0x10] sm:$0xc]
        %v3992 = vld [vmem:[%s168 + $0x14] sm:$0xf]
        %v3993 = vld [vmem:[%s168 + $0x18] sm:$0xf]
        %v3994 = vld [vmem:[%s168 + $0x1c] sm:$0xf]
        %v3995 = vld [vmem:[%s168 + $0x20] sm:$0xf]
        %v3996 = vld [vmem:[%s168 + $0x24] sm:$0xf]
        %v3997 = vld [vmem:[%s168 + $0x28] sm:$0xf]
        %v3998 = vld [vmem:[%s168 + $0x2c] sm:$0xf]
        %v3999 = vld [vmem:[%s168 + $0x30] sm:$0xf]
        %v4000 = vld [vmem:[%s168 + $0x34] sm:$0xf]
        %v4001 = vld [vmem:[%s168 + $0x38] sm:$0xf]
        %v4002 = vld [vmem:[%s168 + $0x3c] sm:$0xf]
        %v4003 = vld [vmem:[%s168 + $0x40] sm:$0xf]
        %v4004 = vld [vmem:[%s168 + $0x44] sm:$0xf]
        %v4005 = vld [vmem:[%s168 + $0x48] sm:$0xf]
        %v4006 = vld [vmem:[%s168 + $0x4c] sm:$0xf]
        %v4007 = vld [vmem:[%s168 + $0x50] sm:$0xf]
        %v4008 = vld [vmem:[%s168 + $0x54] sm:$0xf]
        %v4009 = vld [vmem:[%s168 + $0x58] sm:$0xf]
        %v4010 = vld [vmem:[%s168 + $0x5c] sm:$0xf]
        %v4011 = vld [vmem:[%s168 + $0x60] sm:$0xf]
        %v4012 = vld [vmem:[%s168 + $0x64] sm:$0xf]
        %v4013 = vld [vmem:[%s168 + $0x68] sm:$0xf]
        %v4014 = vld [vmem:[%s168 + $0x6c] sm:$0xf]
        %v4015 = vld [vmem:[%s168 + $0x70] sm:$0xf]
        %v4016 = vld [vmem:[%s168 + $0x74] sm:$0xf]
        %v4017 = vld [vmem:[%s168 + $0x78] sm:$0xf]
        %v4018 = vld [vmem:[%s168 + $0x7c] sm:$0xf]
        %v4019 = vld [vmem:[%s168 + $0x80] sm:$0xf]
        %v4020 = vld [vmem:[%s168 + $0x84] sm:$0xf]
        %v4021 = vld [vmem:[%s168 + $0x88] sm:$0xf]
        %v4022 = vld [vmem:[%s168 + $0x8c] sm:$0xf]
        %v4023 = vld [vmem:[%s168 + $0x90] sm:$0xf]
        %v4024 = vld [vmem:[%s168 + $0x94] sm:$0xf]
        %v4025 = vld [vmem:[%s168 + $0x98] sm:$0xf]
        %v4026 = vld [vmem:[%s168 + $0x9c] sm:$0xf]
        %v4027 = vld [vmem:[%s168 + $0xa0] sm:$0x7]
        %v4028 = vld [vmem:[#allocation2] sm:$0xff]
        %v4029 = vld [vmem:[#allocation2 + $0x8] sm:$0xff]
        %v4030 = vld [vmem:[#allocation2 + $0x10] sm:$0xff]
        %v4031 = vld [vmem:[#allocation2 + $0x18] sm:$0xff]
        %v4032 = vld [vmem:[#allocation2 + $0x20] sm:$0xff]
        %v4033 = vld [vmem:[#allocation2 + $0x28] sm:$0xff]
        %v4034 = vld [vmem:[#allocation2 + $0x30] sm:$0xff]
        %v4035 = vld [vmem:[#allocation2 + $0x38] sm:$0xff]
        %v4036 = vld [vmem:[#allocation2 + $0x40] sm:$0xff]
        %v4037 = vld [vmem:[#allocation2 + $0x48] sm:$0xff]
        %v4038 = vld [vmem:[#allocation2 + $0x50] sm:$0xff]
        %v4039 = vld [vmem:[#allocation2 + $0x58] sm:$0xff]
        %v4040 = vld [vmem:[#allocation2 + $0x60] sm:$0xff]
        %v4041 = vld [vmem:[#allocation2 + $0x68] sm:$0xff]
        %v4042 = vld [vmem:[#allocation2 + $0x70] sm:$0xff]
        %v4043 = vld [vmem:[#allocation2 + $0x78] sm:$0xff]
        %v4044 = vld [vmem:[#allocation2 + $0x80] sm:$0xff]
        %v4045 = vld [vmem:[#allocation2 + $0x88] sm:$0xff]
        %v4046 = vld [vmem:[#allocation2 + $0x90] sm:$0xff]
        %v4047 = vld [vmem:[#allocation2 + $0x98] sm:$0xff]
        %v4048 = vld [vmem:[#allocation2 + $0xa0] sm:$0xff]
        %v4049 = vld [vmem:[#allocation2 + $0xa8] sm:$0xff]
        %v4050 = vld [vmem:[#allocation2 + $0xb0] sm:$0xff]
        %v4051 = vld [vmem:[#allocation2 + $0xb8] sm:$0xff]
        %v4052 = vld [vmem:[#allocation2 + $0xc0] sm:$0xff]
        %v4053 = vld [vmem:[#allocation2 + $0xc8] sm:$0xff]
        %v4054 = vld [vmem:[#allocation2 + $0xd0] sm:$0xff]
        %v4055 = vld [vmem:[#allocation2 + $0xd8] sm:$0xff]
        %v4056 = vld [vmem:[#allocation2 + $0xe0] sm:$0xff]
        %v4057 = vld [vmem:[#allocation2 + $0xe8] sm:$0xff]
        %v4058 = vld [vmem:[#allocation2 + $0xf0] sm:$0xff]
        %v4059 = vld [vmem:[#allocation2 + $0xf8] sm:$0xff]
        %v4060 = vld [vmem:[#allocation2 + $0x100] sm:$0xff]
        %v4061 = vld [vmem:[#allocation2 + $0x108] sm:$0xff]
        %v4062 = vld [vmem:[#allocation2 + $0x110] sm:$0xff]
        %v4063 = vld [vmem:[#allocation2 + $0x118] sm:$0xff]
        %s4064 = scalar_lea.vmem %s1, 28
        %v4065 = vld [vmem:[%s4064] sm:$0xf]
        %v4103 = vunpack.c.l.b16 %v3991
        %v4104 = vunpack.c.l.b16 %v3992
        %v4105 = vunpack.c.l.b16 %v3993
        %v4106 = vunpack.c.l.b16 %v3994
        %v4107 = vunpack.c.l.b16 %v3995
        %v4108 = vunpack.c.l.b16 %v3996
        %v4109 = vunpack.c.l.b16 %v3997
        %v4110 = vunpack.c.l.b16 %v3998
        %v4111 = vunpack.c.l.b16 %v3999
        %v4112 = vunpack.c.l.b16 %v4000
        %v4113 = vunpack.c.l.b16 %v4001
        %v4114 = vunpack.c.l.b16 %v4002
        %v4115 = vunpack.c.l.b16 %v4003
        %v4116 = vunpack.c.l.b16 %v4004
        %v4117 = vunpack.c.l.b16 %v4005
        %v4118 = vunpack.c.l.b16 %v4006
        %v4119 = vunpack.c.l.b16 %v4007
        %v4120 = vunpack.c.l.b16 %v4008
        %v4121 = vunpack.c.l.b16 %v4009
        %v4122 = vunpack.c.l.b16 %v4010
        %v4123 = vunpack.c.l.b16 %v4011
        %v4124 = vunpack.c.l.b16 %v4012
        %v4125 = vunpack.c.l.b16 %v4013
        %v4126 = vunpack.c.l.b16 %v4014
        %v4127 = vunpack.c.l.b16 %v4015
        %v4128 = vunpack.c.l.b16 %v4016
        %v4129 = vunpack.c.l.b16 %v4017
        %v4130 = vunpack.c.l.b16 %v4018
        %v4131 = vunpack.c.l.b16 %v4019
        %v4132 = vunpack.c.l.b16 %v4020
        %v4133 = vunpack.c.l.b16 %v4021
        %v4134 = vunpack.c.l.b16 %v4022
        %v4135 = vunpack.c.l.b16 %v4023
        %v4136 = vunpack.c.l.b16 %v4024
        %v4137 = vunpack.c.l.b16 %v4025
        %v4138 = vunpack.c.l.b16 %v4026
        %v4139 = vunpack.c.l.b16 %v4027
        %v4140 = vpack.c.b16 %v4104, %v4103
        %v4141 = vpack.c.b16 %v4106, %v4105
        %v4142 = vpack.c.b16 %v4108, %v4107
        %v4143 = vpack.c.b16 %v4110, %v4109
        %v4144 = vpack.c.b16 %v4112, %v4111
        %v4145 = vpack.c.b16 %v4114, %v4113
        %v4146 = vpack.c.b16 %v4116, %v4115
        %v4147 = vpack.c.b16 %v4118, %v4117
        %v4148 = vpack.c.b16 %v4120, %v4119
        %v4149 = vpack.c.b16 %v4122, %v4121
        %v4150 = vpack.c.b16 %v4124, %v4123
        %v4151 = vpack.c.b16 %v4126, %v4125
        %v4152 = vpack.c.b16 %v4128, %v4127
        %v4153 = vpack.c.b16 %v4130, %v4129
        %v4154 = vpack.c.b16 %v4132, %v4131
        %v4155 = vpack.c.b16 %v4134, %v4133
        %v4156 = vpack.c.b16 %v4136, %v4135
        %v4157 = vpack.c.b16 %v4138, %v4137
        %v4158 = vpack.c.b16 %v4139, %v4139
        %vm4159 = vsmask.f32 5376
        %v4161 = vshrl.u32 %v4140, 16
        %v4163 = vrot.slane %v4161, 2
        %v4164 = vshll.u32 %v4140, 16
        %v4166 = vrot.slane %v4164, 3
        %v4167 = vor.u32 %v4163, %v4166
        %v4169 = vshrl.u32 %v4141, 16
        %v4171 = vrot.slane %v4169, 2
        %v4172 = vshll.u32 %v4141, 16
        %v4174 = vrot.slane %v4172, 3
        %v4175 = vor.u32 %v4171, %v4174
        %v4176 = vsel %vm4159, %v4167, %v4175
        %v4178 = vshrl.u32 %v4142, 16
        %v4180 = vrot.slane %v4178, 2
        %v4181 = vshll.u32 %v4142, 16
        %v4183 = vrot.slane %v4181, 3
        %v4184 = vor.u32 %v4180, %v4183
        %v4185 = vsel %vm4159, %v4175, %v4184
        %v4187 = vshrl.u32 %v4143, 16
        %v4189 = vrot.slane %v4187, 2
        %v4190 = vshll.u32 %v4143, 16
        %v4192 = vrot.slane %v4190, 3
        %v4193 = vor.u32 %v4189, %v4192
        %v4194 = vsel %vm4159, %v4184, %v4193
        %v4196 = vshrl.u32 %v4144, 16
        %v4198 = vrot.slane %v4196, 2
        %v4199 = vshll.u32 %v4144, 16
        %v4201 = vrot.slane %v4199, 3
        %v4202 = vor.u32 %v4198, %v4201
        %v4203 = vsel %vm4159, %v4193, %v4202
        %v4205 = vshrl.u32 %v4145, 16
        %v4207 = vrot.slane %v4205, 2
        %v4208 = vshll.u32 %v4145, 16
        %v4210 = vrot.slane %v4208, 3
        %v4211 = vor.u32 %v4207, %v4210
        %v4212 = vsel %vm4159, %v4202, %v4211
        %v4214 = vshrl.u32 %v4146, 16
        %v4216 = vrot.slane %v4214, 2
        %v4217 = vshll.u32 %v4146, 16
        %v4219 = vrot.slane %v4217, 3
        %v4220 = vor.u32 %v4216, %v4219
        %v4221 = vsel %vm4159, %v4211, %v4220
        %v4223 = vshrl.u32 %v4147, 16
        %v4225 = vrot.slane %v4223, 2
        %v4226 = vshll.u32 %v4147, 16
        %v4228 = vrot.slane %v4226, 3
        %v4229 = vor.u32 %v4225, %v4228
        %v4230 = vsel %vm4159, %v4220, %v4229
        %v4232 = vshrl.u32 %v4148, 16
        %v4234 = vrot.slane %v4232, 2
        %v4235 = vshll.u32 %v4148, 16
        %v4237 = vrot.slane %v4235, 3
        %v4238 = vor.u32 %v4234, %v4237
        %v4239 = vsel %vm4159, %v4229, %v4238
        %v4241 = vshrl.u32 %v4149, 16
        %v4243 = vrot.slane %v4241, 2
        %v4244 = vshll.u32 %v4149, 16
        %v4246 = vrot.slane %v4244, 3
        %v4247 = vor.u32 %v4243, %v4246
        %v4248 = vsel %vm4159, %v4238, %v4247
        %v4250 = vshrl.u32 %v4150, 16
        %v4252 = vrot.slane %v4250, 2
        %v4253 = vshll.u32 %v4150, 16
        %v4255 = vrot.slane %v4253, 3
        %v4256 = vor.u32 %v4252, %v4255
        %v4257 = vsel %vm4159, %v4247, %v4256
        %v4259 = vshrl.u32 %v4151, 16
        %v4261 = vrot.slane %v4259, 2
        %v4262 = vshll.u32 %v4151, 16
        %v4264 = vrot.slane %v4262, 3
        %v4265 = vor.u32 %v4261, %v4264
        %v4266 = vsel %vm4159, %v4256, %v4265
        %v4268 = vshrl.u32 %v4152, 16
        %v4270 = vrot.slane %v4268, 2
        %v4271 = vshll.u32 %v4152, 16
        %v4273 = vrot.slane %v4271, 3
        %v4274 = vor.u32 %v4270, %v4273
        %v4275 = vsel %vm4159, %v4265, %v4274
        %v4277 = vshrl.u32 %v4153, 16
        %v4279 = vrot.slane %v4277, 2
        %v4280 = vshll.u32 %v4153, 16
        %v4282 = vrot.slane %v4280, 3
        %v4283 = vor.u32 %v4279, %v4282
        %v4284 = vsel %vm4159, %v4274, %v4283
        %v4286 = vshrl.u32 %v4154, 16
        %v4288 = vrot.slane %v4286, 2
        %v4289 = vshll.u32 %v4154, 16
        %v4291 = vrot.slane %v4289, 3
        %v4292 = vor.u32 %v4288, %v4291
        %v4293 = vsel %vm4159, %v4283, %v4292
        %v4295 = vshrl.u32 %v4155, 16
        %v4297 = vrot.slane %v4295, 2
        %v4298 = vshll.u32 %v4155, 16
        %v4300 = vrot.slane %v4298, 3
        %v4301 = vor.u32 %v4297, %v4300
        %v4302 = vsel %vm4159, %v4292, %v4301
        %v4304 = vshrl.u32 %v4156, 16
        %v4306 = vrot.slane %v4304, 2
        %v4307 = vshll.u32 %v4156, 16
        %v4309 = vrot.slane %v4307, 3
        %v4310 = vor.u32 %v4306, %v4309
        %v4311 = vsel %vm4159, %v4301, %v4310
        %v4313 = vshrl.u32 %v4157, 16
        %v4315 = vrot.slane %v4313, 2
        %v4316 = vshll.u32 %v4157, 16
        %v4318 = vrot.slane %v4316, 3
        %v4319 = vor.u32 %v4315, %v4318
        %v4320 = vsel %vm4159, %v4310, %v4319
        %v4322 = vshrl.u32 %v4158, 16
        %v4324 = vrot.slane %v4322, 2
        %v4325 = vshll.u32 %v4158, 16
        %v4327 = vrot.slane %v4325, 3
        %v4328 = vor.u32 %v4324, %v4327
        %v4329 = vsel %vm4159, %v4319, %v4328
        %v4331 = vsel %vm369, %v4176, 0
        %v4334 = vsel %vm369, %v4185, 0
        %v4337 = vsel %vm369, %v4194, 0
        %v4340 = vsel %vm369, %v4203, 0
        %v4343 = vsel %vm369, %v4212, 0
        %v4346 = vsel %vm369, %v4221, 0
        %v4349 = vsel %vm369, %v4230, 0
        %v4352 = vsel %vm369, %v4239, 0
        %v4355 = vsel %vm369, %v4248, 0
        %v4358 = vsel %vm369, %v4257, 0
        %v4361 = vsel %vm369, %v4266, 0
        %v4364 = vsel %vm369, %v4275, 0
        %v4367 = vsel %vm369, %v4284, 0
        %v4370 = vsel %vm369, %v4293, 0
        %v4373 = vsel %vm369, %v4302, 0
        %v4376 = vsel %vm369, %v4311, 0
        %v4379 = vsel %vm369, %v4320, 0
        %v4382 = vsel %vm369, %v4329, 0
        %v4385 = vsel %vm424, %v4065, 0
        %4387 = vmatprep.subr.bf16.mxu0 0
        %4388 = vmatpush1.bf16.msra.mxu0 %v4385
        %4389 = vmatprep.subr.bf16.mxu0 0
        %4390 = vmatpush1.bf16.msra.mxu0 0
        %4391 = vmatprep.subr.bf16.mxu0 0
        %4392 = vmatpush1.bf16.msra.mxu0 0
        %4393 = vmatprep.subr.bf16.mxu0 0
        %4394 = vmatpush1.bf16.msra.mxu0 0
        %4395 = vmatprep.subr.bf16.mxu0 0
        %4396 = vmatpush1.bf16.msra.mxu0 0
        %4397 = vmatprep.subr.bf16.mxu0 0
        %4398 = vmatpush1.bf16.msra.mxu0 0
        %4399 = vmatprep.subr.bf16.mxu0 0
        %4400 = vmatpush1.bf16.msra.mxu0 0
        %4401 = vmatprep.subr.bf16.mxu0 0
        %4402 = vmatpush1.bf16.msra.mxu0 0
        %4403 = vmatprep.subr.bf16.mxu0 0
        %4404 = vmatpush1.bf16.msra.mxu0 0
        %4405 = vmatprep.subr.bf16.mxu0 0
        %4406 = vmatpush1.bf16.msra.mxu0 0
        %4407 = vmatprep.subr.bf16.mxu0 0
        %4408 = vmatpush1.bf16.msra.mxu0 0
        %4409 = vmatprep.subr.bf16.mxu0 0
        %4410 = vmatpush1.bf16.msra.mxu0 0
        %4411 = vmatprep.subr.bf16.mxu0 0
        %4412 = vmatpush1.bf16.msra.mxu0 0
        %4413 = vmatprep.subr.bf16.mxu0 0
        %4414 = vmatpush1.bf16.msra.mxu0 0
        %4415 = vmatprep.subr.bf16.mxu0 0
        %4416 = vmatpush1.bf16.msra.mxu0 0
        %4417 = vmatprep.subr.bf16.mxu0 0
        %4418 = vmatpush1.bf16.msra.mxu0 0
        %4419 = vmatprep.mubr.bf16.mxu0 0
        %4420 = vmatmul.mubr.bf16.gmra.mrb[0].mxu0 %v4331
        %v4421 = vpop.f32.mrb[0].mxu0
        %v4422 = vadd.f32 0.0, %v4421
        %v4423 = vpop.f32.mrb[0].mxu0
        %v4424 = vpop.f32.mrb[0].mxu0
        %v4425 = vadd.f32 0.0, %v4424
        %v4426 = vpop.f32.mrb[0].mxu0
        %4427 = vmatprep.mubr.bf16.mxu0 0
        %4428 = vmatmul.mubr.bf16.gmra.mrb[0].mxu0 %v4334
        %v4429 = vpop.f32.mrb[0].mxu0
        %v4430 = vadd.f32 0.0, %v4429
        %v4431 = vpop.f32.mrb[0].mxu0
        %v4432 = vpop.f32.mrb[0].mxu0
        %v4433 = vadd.f32 0.0, %v4432
        %v4434 = vpop.f32.mrb[0].mxu0
        %4435 = vmatprep.mubr.bf16.mxu0 0
        %4436 = vmatmul.mubr.bf16.gmra.mrb[0].mxu0 %v4337
        %v4437 = vpop.f32.mrb[0].mxu0
        %v4438 = vadd.f32 0.0, %v4437
        %v4439 = vpop.f32.mrb[0].mxu0
        %v4440 = vpop.f32.mrb[0].mxu0
        %v4441 = vadd.f32 0.0, %v4440
        %v4442 = vpop.f32.mrb[0].mxu0
        %4443 = vmatprep.mubr.bf16.mxu0 0
        %4444 = vmatmul.mubr.bf16.gmra.mrb[0].mxu0 %v4340
        %v4445 = vpop.f32.mrb[0].mxu0
        %v4446 = vadd.f32 0.0, %v4445
        %v4447 = vpop.f32.mrb[0].mxu0
        %v4448 = vpop.f32.mrb[0].mxu0
        %v4449 = vadd.f32 0.0, %v4448
        %v4450 = vpop.f32.mrb[0].mxu0
        %4451 = vmatprep.mubr.bf16.mxu0 0
        %4452 = vmatmul.mubr.bf16.gmra.mrb[0].mxu0 %v4343
        %v4453 = vpop.f32.mrb[0].mxu0
        %v4454 = vadd.f32 0.0, %v4453
        %v4455 = vpop.f32.mrb[0].mxu0
        %v4456 = vpop.f32.mrb[0].mxu0
        %v4457 = vadd.f32 0.0, %v4456
        %v4458 = vpop.f32.mrb[0].mxu0
        %4459 = vmatprep.mubr.bf16.mxu0 0
        %4460 = vmatmul.mubr.bf16.gmra.mrb[0].mxu0 %v4346
        %v4461 = vpop.f32.mrb[0].mxu0
        %v4462 = vadd.f32 0.0, %v4461
        %v4463 = vpop.f32.mrb[0].mxu0
        %v4464 = vpop.f32.mrb[0].mxu0
        %v4465 = vadd.f32 0.0, %v4464
        %v4466 = vpop.f32.mrb[0].mxu0
        %4467 = vmatprep.mubr.bf16.mxu0 0
        %4468 = vmatmul.mubr.bf16.gmra.mrb[0].mxu0 %v4349
        %v4469 = vpop.f32.mrb[0].mxu0
        %v4470 = vadd.f32 0.0, %v4469
        %v4471 = vpop.f32.mrb[0].mxu0
        %v4472 = vpop.f32.mrb[0].mxu0
        %v4473 = vadd.f32 0.0, %v4472
        %v4474 = vpop.f32.mrb[0].mxu0
        %4475 = vmatprep.mubr.bf16.mxu0 0
        %4476 = vmatmul.mubr.bf16.gmra.mrb[0].mxu0 %v4352
        %v4477 = vpop.f32.mrb[0].mxu0
        %v4478 = vadd.f32 0.0, %v4477
        %v4479 = vpop.f32.mrb[0].mxu0
        %v4480 = vpop.f32.mrb[0].mxu0
        %v4481 = vadd.f32 0.0, %v4480
        %v4482 = vpop.f32.mrb[0].mxu0
        %4483 = vmatprep.mubr.bf16.mxu0 0
        %4484 = vmatmul.mubr.bf16.gmra.mrb[0].mxu0 %v4355
        %v4485 = vpop.f32.mrb[0].mxu0
        %v4486 = vadd.f32 0.0, %v4485
        %v4487 = vpop.f32.mrb[0].mxu0
        %v4488 = vpop.f32.mrb[0].mxu0
        %v4489 = vadd.f32 0.0, %v4488
        %v4490 = vpop.f32.mrb[0].mxu0
        %4491 = vmatprep.mubr.bf16.mxu0 0
        %4492 = vmatmul.mubr.bf16.gmra.mrb[0].mxu0 %v4358
        %v4493 = vpop.f32.mrb[0].mxu0
        %v4494 = vadd.f32 0.0, %v4493
        %v4495 = vpop.f32.mrb[0].mxu0
        %v4496 = vpop.f32.mrb[0].mxu0
        %v4497 = vadd.f32 0.0, %v4496
        %v4498 = vpop.f32.mrb[0].mxu0
        %4499 = vmatprep.mubr.bf16.mxu0 0
        %4500 = vmatmul.mubr.bf16.gmra.mrb[0].mxu0 %v4361
        %v4501 = vpop.f32.mrb[0].mxu0
        %v4502 = vadd.f32 0.0, %v4501
        %v4503 = vpop.f32.mrb[0].mxu0
        %v4504 = vpop.f32.mrb[0].mxu0
        %v4505 = vadd.f32 0.0, %v4504
        %v4506 = vpop.f32.mrb[0].mxu0
        %4507 = vmatprep.mubr.bf16.mxu0 0
        %4508 = vmatmul.mubr.bf16.gmra.mrb[0].mxu0 %v4364
        %v4509 = vpop.f32.mrb[0].mxu0
        %v4510 = vadd.f32 0.0, %v4509
        %v4511 = vpop.f32.mrb[0].mxu0
        %v4512 = vpop.f32.mrb[0].mxu0
        %v4513 = vadd.f32 0.0, %v4512
        %v4514 = vpop.f32.mrb[0].mxu0
        %4515 = vmatprep.mubr.bf16.mxu0 0
        %4516 = vmatmul.mubr.bf16.gmra.mrb[0].mxu0 %v4367
        %v4517 = vpop.f32.mrb[0].mxu0
        %v4518 = vadd.f32 0.0, %v4517
        %v4519 = vpop.f32.mrb[0].mxu0
        %v4520 = vpop.f32.mrb[0].mxu0
        %v4521 = vadd.f32 0.0, %v4520
        %v4522 = vpop.f32.mrb[0].mxu0
        %4523 = vmatprep.mubr.bf16.mxu0 0
        %4524 = vmatmul.mubr.bf16.gmra.mrb[0].mxu0 %v4370
        %v4525 = vpop.f32.mrb[0].mxu0
        %v4526 = vadd.f32 0.0, %v4525
        %v4527 = vpop.f32.mrb[0].mxu0
        %v4528 = vpop.f32.mrb[0].mxu0
        %v4529 = vadd.f32 0.0, %v4528
        %v4530 = vpop.f32.mrb[0].mxu0
        %4531 = vmatprep.mubr.bf16.mxu0 0
        %4532 = vmatmul.mubr.bf16.gmra.mrb[0].mxu0 %v4373
        %v4533 = vpop.f32.mrb[0].mxu0
        %v4534 = vadd.f32 0.0, %v4533
        %v4535 = vpop.f32.mrb[0].mxu0
        %v4536 = vpop.f32.mrb[0].mxu0
        %v4537 = vadd.f32 0.0, %v4536
        %v4538 = vpop.f32.mrb[0].mxu0
        %4539 = vmatprep.mubr.bf16.mxu0 0
        %4540 = vmatmul.mubr.bf16.gmra.mrb[0].mxu0 %v4376
        %v4541 = vpop.f32.mrb[0].mxu0
        %v4542 = vadd.f32 0.0, %v4541
        %v4543 = vpop.f32.mrb[0].mxu0
        %v4544 = vpop.f32.mrb[0].mxu0
        %v4545 = vadd.f32 0.0, %v4544
        %v4546 = vpop.f32.mrb[0].mxu0
        %4547 = vmatprep.mubr.bf16.mxu0 0
        %4548 = vmatmul.mubr.bf16.gmra.mrb[0].mxu0 %v4379
        %v4549 = vpop.f32.mrb[0].mxu0
        %v4550 = vadd.f32 0.0, %v4549
        %v4551 = vpop.f32.mrb[0].mxu0
        %v4552 = vpop.f32.mrb[0].mxu0
        %v4553 = vadd.f32 0.0, %v4552
        %v4554 = vpop.f32.mrb[0].mxu0
        %4555 = vmatprep.mubr.bf16.mxu0 0
        %4556 = vmatmul.mubr.bf16.gmra.mrb[0].mxu0 %v4382
        %v4557 = vpop.f32.mrb[0].mxu0
        %v4558 = vadd.f32 0.0, %v4557
        %v4559 = vpop.f32.mrb[0].mxu0
        %v4560 = vpop.f32.mrb[0].mxu0
        %v4561 = vadd.f32 0.0, %v4560
        %v4562 = vpop.f32.mrb[0].mxu0
        %4563 = vdwg.mxu0
        %v4564 = vadd.f32 %v4028, %v4422
        %v4565 = vadd.f32 %v4029, %v4425
        %v4566 = vadd.f32 %v4030, %v4430
        %v4567 = vadd.f32 %v4031, %v4433
        %v4568 = vadd.f32 %v4032, %v4438
        %v4569 = vadd.f32 %v4033, %v4441
        %v4570 = vadd.f32 %v4034, %v4446
        %v4571 = vadd.f32 %v4035, %v4449
        %v4572 = vadd.f32 %v4036, %v4454
        %v4573 = vadd.f32 %v4037, %v4457
        %v4574 = vadd.f32 %v4038, %v4462
        %v4575 = vadd.f32 %v4039, %v4465
        %v4576 = vadd.f32 %v4040, %v4470
        %v4577 = vadd.f32 %v4041, %v4473
        %v4578 = vadd.f32 %v4042, %v4478
        %v4579 = vadd.f32 %v4043, %v4481
        %v4580 = vadd.f32 %v4044, %v4486
        %v4581 = vadd.f32 %v4045, %v4489
        %v4582 = vadd.f32 %v4046, %v4494
        %v4583 = vadd.f32 %v4047, %v4497
        %v4584 = vadd.f32 %v4048, %v4502
        %v4585 = vadd.f32 %v4049, %v4505
        %v4586 = vadd.f32 %v4050, %v4510
        %v4587 = vadd.f32 %v4051, %v4513
        %v4588 = vadd.f32 %v4052, %v4518
        %v4589 = vadd.f32 %v4053, %v4521
        %v4590 = vadd.f32 %v4054, %v4526
        %v4591 = vadd.f32 %v4055, %v4529
        %v4592 = vadd.f32 %v4056, %v4534
        %v4593 = vadd.f32 %v4057, %v4537
        %v4594 = vadd.f32 %v4058, %v4542
        %v4595 = vadd.f32 %v4059, %v4545
        %v4596 = vadd.f32 %v4060, %v4550
        %v4597 = vadd.f32 %v4061, %v4553
        %v4598 = vadd.f32 %v4062, %v4558
        %v4599 = vadd.f32 %v4063, %v4561
        %4600 = vst [vmem:[#allocation2] sm:$0xff] %v4564
        %4601 = vst [vmem:[#allocation2 + $0x8] sm:$0xff] %v4565
        %4602 = vst [vmem:[#allocation2 + $0x10] sm:$0xff] %v4566
        %4603 = vst [vmem:[#allocation2 + $0x18] sm:$0xff] %v4567
        %4604 = vst [vmem:[#allocation2 + $0x20] sm:$0xff] %v4568
        %4605 = vst [vmem:[#allocation2 + $0x28] sm:$0xff] %v4569
        %4606 = vst [vmem:[#allocation2 + $0x30] sm:$0xff] %v4570
        %4607 = vst [vmem:[#allocation2 + $0x38] sm:$0xff] %v4571
        %4608 = vst [vmem:[#allocation2 + $0x40] sm:$0xff] %v4572
        %4609 = vst [vmem:[#allocation2 + $0x48] sm:$0xff] %v4573
        %4610 = vst [vmem:[#allocation2 + $0x50] sm:$0xff] %v4574
        %4611 = vst [vmem:[#allocation2 + $0x58] sm:$0xff] %v4575
        %4612 = vst [vmem:[#allocation2 + $0x60] sm:$0xff] %v4576
        %4613 = vst [vmem:[#allocation2 + $0x68] sm:$0xff] %v4577
        %4614 = vst [vmem:[#allocation2 + $0x70] sm:$0xff] %v4578
        %4615 = vst [vmem:[#allocation2 + $0x78] sm:$0xff] %v4579
        %4616 = vst [vmem:[#allocation2 + $0x80] sm:$0xff] %v4580
        %4617 = vst [vmem:[#allocation2 + $0x88] sm:$0xff] %v4581
        %4618 = vst [vmem:[#allocation2 + $0x90] sm:$0xff] %v4582
        %4619 = vst [vmem:[#allocation2 + $0x98] sm:$0xff] %v4583
        %4620 = vst [vmem:[#allocation2 + $0xa0] sm:$0xff] %v4584
        %4621 = vst [vmem:[#allocation2 + $0xa8] sm:$0xff] %v4585
        %4622 = vst [vmem:[#allocation2 + $0xb0] sm:$0xff] %v4586
        %4623 = vst [vmem:[#allocation2 + $0xb8] sm:$0xff] %v4587
        %4624 = vst [vmem:[#allocation2 + $0xc0] sm:$0xff] %v4588
        %4625 = vst [vmem:[#allocation2 + $0xc8] sm:$0xff] %v4589
        %4626 = vst [vmem:[#allocation2 + $0xd0] sm:$0xff] %v4590
        %4627 = vst [vmem:[#allocation2 + $0xd8] sm:$0xff] %v4591
        %4628 = vst [vmem:[#allocation2 + $0xe0] sm:$0xff] %v4592
        %4629 = vst [vmem:[#allocation2 + $0xe8] sm:$0xff] %v4593
        %4630 = vst [vmem:[#allocation2 + $0xf0] sm:$0xff] %v4594
        %4631 = vst [vmem:[#allocation2 + $0xf8] sm:$0xff] %v4595
        %4632 = vst [vmem:[#allocation2 + $0x100] sm:$0xff] %v4596
        %4633 = vst [vmem:[#allocation2 + $0x108] sm:$0xff] %v4597
        %4634 = vst [vmem:[#allocation2 + $0x110] sm:$0xff] %v4598
        %4635 = vst [vmem:[#allocation2 + $0x118] sm:$0xff] %v4599
        %v4636 = vld [vmem:[%s168 + $0x10] sm:$0x8]
        %v4637 = vld [vmem:[%s168 + $0x14] sm:$0xf]
        %v4638 = vld [vmem:[%s168 + $0x18] sm:$0xf]
        %v4639 = vld [vmem:[%s168 + $0x1c] sm:$0xf]
        %v4640 = vld [vmem:[%s168 + $0x20] sm:$0xf]
        %v4641 = vld [vmem:[%s168 + $0x24] sm:$0xf]
        %v4642 = vld [vmem:[%s168 + $0x28] sm:$0xf]
        %v4643 = vld [vmem:[%s168 + $0x2c] sm:$0xf]
        %v4644 = vld [vmem:[%s168 + $0x30] sm:$0xf]
        %v4645 = vld [vmem:[%s168 + $0x34] sm:$0xf]
        %v4646 = vld [vmem:[%s168 + $0x38] sm:$0xf]
        %v4647 = vld [vmem:[%s168 + $0x3c] sm:$0xf]
        %v4648 = vld [vmem:[%s168 + $0x40] sm:$0xf]
        %v4649 = vld [vmem:[%s168 + $0x44] sm:$0xf]
        %v4650 = vld [vmem:[%s168 + $0x48] sm:$0xf]
        %v4651 = vld [vmem:[%s168 + $0x4c] sm:$0xf]
        %v4652 = vld [vmem:[%s168 + $0x50] sm:$0xf]
        %v4653 = vld [vmem:[%s168 + $0x54] sm:$0xf]
        %v4654 = vld [vmem:[%s168 + $0x58] sm:$0xf]
        %v4655 = vld [vmem:[%s168 + $0x5c] sm:$0xf]
        %v4656 = vld [vmem:[%s168 + $0x60] sm:$0xf]
        %v4657 = vld [vmem:[%s168 + $0x64] sm:$0xf]
        %v4658 = vld [vmem:[%s168 + $0x68] sm:$0xf]
        %v4659 = vld [vmem:[%s168 + $0x6c] sm:$0xf]
        %v4660 = vld [vmem:[%s168 + $0x70] sm:$0xf]
        %v4661 = vld [vmem:[%s168 + $0x74] sm:$0xf]
        %v4662 = vld [vmem:[%s168 + $0x78] sm:$0xf]
        %v4663 = vld [vmem:[%s168 + $0x7c] sm:$0xf]
        %v4664 = vld [vmem:[%s168 + $0x80] sm:$0xf]
        %v4665 = vld [vmem:[%s168 + $0x84] sm:$0xf]
        %v4666 = vld [vmem:[%s168 + $0x88] sm:$0xf]
        %v4667 = vld [vmem:[%s168 + $0x8c] sm:$0xf]
        %v4668 = vld [vmem:[%s168 + $0x90] sm:$0xf]
        %v4669 = vld [vmem:[%s168 + $0x94] sm:$0xf]
        %v4670 = vld [vmem:[%s168 + $0x98] sm:$0xf]
        %v4671 = vld [vmem:[%s168 + $0x9c] sm:$0xf]
        %v4672 = vld [vmem:[%s168 + $0xa0] sm:$0x7]
        %v4673 = vld [vmem:[#allocation2] sm:$0xff]
        %v4674 = vld [vmem:[#allocation2 + $0x8] sm:$0xff]
        %v4675 = vld [vmem:[#allocation2 + $0x10] sm:$0xff]
        %v4676 = vld [vmem:[#allocation2 + $0x18] sm:$0xff]
        %v4677 = vld [vmem:[#allocation2 + $0x20] sm:$0xff]
        %v4678 = vld [vmem:[#allocation2 + $0x28] sm:$0xff]
        %v4679 = vld [vmem:[#allocation2 + $0x30] sm:$0xff]
        %v4680 = vld [vmem:[#allocation2 + $0x38] sm:$0xff]
        %v4681 = vld [vmem:[#allocation2 + $0x40] sm:$0xff]
        %v4682 = vld [vmem:[#allocation2 + $0x48] sm:$0xff]
        %v4683 = vld [vmem:[#allocation2 + $0x50] sm:$0xff]
        %v4684 = vld [vmem:[#allocation2 + $0x58] sm:$0xff]
        %v4685 = vld [vmem:[#allocation2 + $0x60] sm:$0xff]
        %v4686 = vld [vmem:[#allocation2 + $0x68] sm:$0xff]
        %v4687 = vld [vmem:[#allocation2 + $0x70] sm:$0xff]
        %v4688 = vld [vmem:[#allocation2 + $0x78] sm:$0xff]
        %v4689 = vld [vmem:[#allocation2 + $0x80] sm:$0xff]
        %v4690 = vld [vmem:[#allocation2 + $0x88] sm:$0xff]
        %v4691 = vld [vmem:[#allocation2 + $0x90] sm:$0xff]
        %v4692 = vld [vmem:[#allocation2 + $0x98] sm:$0xff]
        %v4693 = vld [vmem:[#allocation2 + $0xa0] sm:$0xff]
        %v4694 = vld [vmem:[#allocation2 + $0xa8] sm:$0xff]
        %v4695 = vld [vmem:[#allocation2 + $0xb0] sm:$0xff]
        %v4696 = vld [vmem:[#allocation2 + $0xb8] sm:$0xff]
        %v4697 = vld [vmem:[#allocation2 + $0xc0] sm:$0xff]
        %v4698 = vld [vmem:[#allocation2 + $0xc8] sm:$0xff]
        %v4699 = vld [vmem:[#allocation2 + $0xd0] sm:$0xff]
        %v4700 = vld [vmem:[#allocation2 + $0xd8] sm:$0xff]
        %v4701 = vld [vmem:[#allocation2 + $0xe0] sm:$0xff]
        %v4702 = vld [vmem:[#allocation2 + $0xe8] sm:$0xff]
        %v4703 = vld [vmem:[#allocation2 + $0xf0] sm:$0xff]
        %v4704 = vld [vmem:[#allocation2 + $0xf8] sm:$0xff]
        %v4705 = vld [vmem:[#allocation2 + $0x100] sm:$0xff]
        %v4706 = vld [vmem:[#allocation2 + $0x108] sm:$0xff]
        %v4707 = vld [vmem:[#allocation2 + $0x110] sm:$0xff]
        %v4708 = vld [vmem:[#allocation2 + $0x118] sm:$0xff]
        %s4709 = scalar_lea.vmem %s1, 32
        %v4710 = vld [vmem:[%s4709] sm:$0xf]
        %v4748 = vunpack.c.l.b16 %v4636
        %v4749 = vunpack.c.l.b16 %v4637
        %v4750 = vunpack.c.l.b16 %v4638
        %v4751 = vunpack.c.l.b16 %v4639
        %v4752 = vunpack.c.l.b16 %v4640
        %v4753 = vunpack.c.l.b16 %v4641
        %v4754 = vunpack.c.l.b16 %v4642
        %v4755 = vunpack.c.l.b16 %v4643
        %v4756 = vunpack.c.l.b16 %v4644
        %v4757 = vunpack.c.l.b16 %v4645
        %v4758 = vunpack.c.l.b16 %v4646
        %v4759 = vunpack.c.l.b16 %v4647
        %v4760 = vunpack.c.l.b16 %v4648
        %v4761 = vunpack.c.l.b16 %v4649
        %v4762 = vunpack.c.l.b16 %v4650
        %v4763 = vunpack.c.l.b16 %v4651
        %v4764 = vunpack.c.l.b16 %v4652
        %v4765 = vunpack.c.l.b16 %v4653
        %v4766 = vunpack.c.l.b16 %v4654
        %v4767 = vunpack.c.l.b16 %v4655
        %v4768 = vunpack.c.l.b16 %v4656
        %v4769 = vunpack.c.l.b16 %v4657
        %v4770 = vunpack.c.l.b16 %v4658
        %v4771 = vunpack.c.l.b16 %v4659
        %v4772 = vunpack.c.l.b16 %v4660
        %v4773 = vunpack.c.l.b16 %v4661
        %v4774 = vunpack.c.l.b16 %v4662
        %v4775 = vunpack.c.l.b16 %v4663
        %v4776 = vunpack.c.l.b16 %v4664
        %v4777 = vunpack.c.l.b16 %v4665
        %v4778 = vunpack.c.l.b16 %v4666
        %v4779 = vunpack.c.l.b16 %v4667
        %v4780 = vunpack.c.l.b16 %v4668
        %v4781 = vunpack.c.l.b16 %v4669
        %v4782 = vunpack.c.l.b16 %v4670
        %v4783 = vunpack.c.l.b16 %v4671
        %v4784 = vunpack.c.l.b16 %v4672
        %v4785 = vpack.c.b16 %v4749, %v4748
        %v4786 = vpack.c.b16 %v4751, %v4750
        %v4787 = vpack.c.b16 %v4753, %v4752
        %v4788 = vpack.c.b16 %v4755, %v4754
        %v4789 = vpack.c.b16 %v4757, %v4756
        %v4790 = vpack.c.b16 %v4759, %v4758
        %v4791 = vpack.c.b16 %v4761, %v4760
        %v4792 = vpack.c.b16 %v4763, %v4762
        %v4793 = vpack.c.b16 %v4765, %v4764
        %v4794 = vpack.c.b16 %v4767, %v4766
        %v4795 = vpack.c.b16 %v4769, %v4768
        %v4796 = vpack.c.b16 %v4771, %v4770
        %v4797 = vpack.c.b16 %v4773, %v4772
        %v4798 = vpack.c.b16 %v4775, %v4774
        %v4799 = vpack.c.b16 %v4777, %v4776
        %v4800 = vpack.c.b16 %v4779, %v4778
        %v4801 = vpack.c.b16 %v4781, %v4780
        %v4802 = vpack.c.b16 %v4783, %v4782
        %v4803 = vpack.c.b16 %v4784, %v4784
        %vm4804 = vcmask 1044480
        %v4805 = vrot.slane %v4785, 3
        %v4806 = vrot.slane %v4786, 3
        %v4807 = vsel %vm4804, %v4805, %v4806
        %v4808 = vrot.slane %v4787, 3
        %v4809 = vsel %vm4804, %v4806, %v4808
        %v4810 = vrot.slane %v4788, 3
        %v4811 = vsel %vm4804, %v4808, %v4810
        %v4812 = vrot.slane %v4789, 3
        %v4813 = vsel %vm4804, %v4810, %v4812
        %v4814 = vrot.slane %v4790, 3
        %v4815 = vsel %vm4804, %v4812, %v4814
        %v4816 = vrot.slane %v4791, 3
        %v4817 = vsel %vm4804, %v4814, %v4816
        %v4818 = vrot.slane %v4792, 3
        %v4819 = vsel %vm4804, %v4816, %v4818
        %v4820 = vrot.slane %v4793, 3
        %v4821 = vsel %vm4804, %v4818, %v4820
        %v4822 = vrot.slane %v4794, 3
        %v4823 = vsel %vm4804, %v4820, %v4822
        %v4824 = vrot.slane %v4795, 3
        %v4825 = vsel %vm4804, %v4822, %v4824
        %v4826 = vrot.slane %v4796, 3
        %v4827 = vsel %vm4804, %v4824, %v4826
        %v4828 = vrot.slane %v4797, 3
        %v4829 = vsel %vm4804, %v4826, %v4828
        %v4830 = vrot.slane %v4798, 3
        %v4831 = vsel %vm4804, %v4828, %v4830
        %v4832 = vrot.slane %v4799, 3
        %v4833 = vsel %vm4804, %v4830, %v4832
        %v4834 = vrot.slane %v4800, 3
        %v4835 = vsel %vm4804, %v4832, %v4834
        %v4836 = vrot.slane %v4801, 3
        %v4837 = vsel %vm4804, %v4834, %v4836
        %v4838 = vrot.slane %v4802, 3
        %v4839 = vsel %vm4804, %v4836, %v4838
        %v4840 = vrot.slane %v4803, 3
        %v4841 = vsel %vm4804, %v4838, %v4840
        %v4843 = vsel %vm369, %v4807, 0
        %v4846 = vsel %vm369, %v4809, 0
        %v4849 = vsel %vm369, %v4811, 0
        %v4852 = vsel %vm369, %v4813, 0
        %v4855 = vsel %vm369, %v4815, 0
        %v4858 = vsel %vm369, %v4817, 0
        %v4861 = vsel %vm369, %v4819, 0
        %v4864 = vsel %vm369, %v4821, 0
        %v4867 = vsel %vm369, %v4823, 0
        %v4870 = vsel %vm369, %v4825, 0
        %v4873 = vsel %vm369, %v4827, 0
        %v4876 = vsel %vm369, %v4829, 0
        %v4879 = vsel %vm369, %v4831, 0
        %v4882 = vsel %vm369, %v4833, 0
        %v4885 = vsel %vm369, %v4835, 0
        %v4888 = vsel %vm369, %v4837, 0
        %v4891 = vsel %vm369, %v4839, 0
        %v4894 = vsel %vm369, %v4841, 0
        %v4897 = vsel %vm424, %v4710, 0
        %4899 = vmatprep.subr.bf16.mxu0 0
        %4900 = vmatpush1.bf16.msra.mxu0 %v4897
        %4901 = vmatprep.subr.bf16.mxu0 0
        %4902 = vmatpush1.bf16.msra.mxu0 0
        %4903 = vmatprep.subr.bf16.mxu0 0
        %4904 = vmatpush1.bf16.msra.mxu0 0
        %4905 = vmatprep.subr.bf16.mxu0 0
        %4906 = vmatpush1.bf16.msra.mxu0 0
        %4907 = vmatprep.subr.bf16.mxu0 0
        %4908 = vmatpush1.bf16.msra.mxu0 0
        %4909 = vmatprep.subr.bf16.mxu0 0
        %4910 = vmatpush1.bf16.msra.mxu0 0
        %4911 = vmatprep.subr.bf16.mxu0 0
        %4912 = vmatpush1.bf16.msra.mxu0 0
        %4913 = vmatprep.subr.bf16.mxu0 0
        %4914 = vmatpush1.bf16.msra.mxu0 0
        %4915 = vmatprep.subr.bf16.mxu0 0
        %4916 = vmatpush1.bf16.msra.mxu0 0
        %4917 = vmatprep.subr.bf16.mxu0 0
        %4918 = vmatpush1.bf16.msra.mxu0 0
        %4919 = vmatprep.subr.bf16.mxu0 0
        %4920 = vmatpush1.bf16.msra.mxu0 0
        %4921 = vmatprep.subr.bf16.mxu0 0
        %4922 = vmatpush1.bf16.msra.mxu0 0
        %4923 = vmatprep.subr.bf16.mxu0 0
        %4924 = vmatpush1.bf16.msra.mxu0 0
        %4925 = vmatprep.subr.bf16.mxu0 0
        %4926 = vmatpush1.bf16.msra.mxu0 0
        %4927 = vmatprep.subr.bf16.mxu0 0
        %4928 = vmatpush1.bf16.msra.mxu0 0
        %4929 = vmatprep.subr.bf16.mxu0 0
        %4930 = vmatpush1.bf16.msra.mxu0 0
        %4931 = vmatprep.mubr.bf16.mxu0 0
        %4932 = vmatmul.mubr.bf16.gmra.mrb[0].mxu0 %v4843
        %v4933 = vpop.f32.mrb[0].mxu0
        %v4934 = vadd.f32 0.0, %v4933
        %v4935 = vpop.f32.mrb[0].mxu0
        %v4936 = vpop.f32.mrb[0].mxu0
        %v4937 = vadd.f32 0.0, %v4936
        %v4938 = vpop.f32.mrb[0].mxu0
        %4939 = vmatprep.mubr.bf16.mxu0 0
        %4940 = vmatmul.mubr.bf16.gmra.mrb[0].mxu0 %v4846
        %v4941 = vpop.f32.mrb[0].mxu0
        %v4942 = vadd.f32 0.0, %v4941
        %v4943 = vpop.f32.mrb[0].mxu0
        %v4944 = vpop.f32.mrb[0].mxu0
        %v4945 = vadd.f32 0.0, %v4944
        %v4946 = vpop.f32.mrb[0].mxu0
        %4947 = vmatprep.mubr.bf16.mxu0 0
        %4948 = vmatmul.mubr.bf16.gmra.mrb[0].mxu0 %v4849
        %v4949 = vpop.f32.mrb[0].mxu0
        %v4950 = vadd.f32 0.0, %v4949
        %v4951 = vpop.f32.mrb[0].mxu0
        %v4952 = vpop.f32.mrb[0].mxu0
        %v4953 = vadd.f32 0.0, %v4952
        %v4954 = vpop.f32.mrb[0].mxu0
        %4955 = vmatprep.mubr.bf16.mxu0 0
        %4956 = vmatmul.mubr.bf16.gmra.mrb[0].mxu0 %v4852
        %v4957 = vpop.f32.mrb[0].mxu0
        %v4958 = vadd.f32 0.0, %v4957
        %v4959 = vpop.f32.mrb[0].mxu0
        %v4960 = vpop.f32.mrb[0].mxu0
        %v4961 = vadd.f32 0.0, %v4960
        %v4962 = vpop.f32.mrb[0].mxu0
        %4963 = vmatprep.mubr.bf16.mxu0 0
        %4964 = vmatmul.mubr.bf16.gmra.mrb[0].mxu0 %v4855
        %v4965 = vpop.f32.mrb[0].mxu0
        %v4966 = vadd.f32 0.0, %v4965
        %v4967 = vpop.f32.mrb[0].mxu0
        %v4968 = vpop.f32.mrb[0].mxu0
        %v4969 = vadd.f32 0.0, %v4968
        %v4970 = vpop.f32.mrb[0].mxu0
        %4971 = vmatprep.mubr.bf16.mxu0 0
        %4972 = vmatmul.mubr.bf16.gmra.mrb[0].mxu0 %v4858
        %v4973 = vpop.f32.mrb[0].mxu0
        %v4974 = vadd.f32 0.0, %v4973
        %v4975 = vpop.f32.mrb[0].mxu0
        %v4976 = vpop.f32.mrb[0].mxu0
        %v4977 = vadd.f32 0.0, %v4976
        %v4978 = vpop.f32.mrb[0].mxu0
        %4979 = vmatprep.mubr.bf16.mxu0 0
        %4980 = vmatmul.mubr.bf16.gmra.mrb[0].mxu0 %v4861
        %v4981 = vpop.f32.mrb[0].mxu0
        %v4982 = vadd.f32 0.0, %v4981
        %v4983 = vpop.f32.mrb[0].mxu0
        %v4984 = vpop.f32.mrb[0].mxu0
        %v4985 = vadd.f32 0.0, %v4984
        %v4986 = vpop.f32.mrb[0].mxu0
        %4987 = vmatprep.mubr.bf16.mxu0 0
        %4988 = vmatmul.mubr.bf16.gmra.mrb[0].mxu0 %v4864
        %v4989 = vpop.f32.mrb[0].mxu0
        %v4990 = vadd.f32 0.0, %v4989
        %v4991 = vpop.f32.mrb[0].mxu0
        %v4992 = vpop.f32.mrb[0].mxu0
        %v4993 = vadd.f32 0.0, %v4992
        %v4994 = vpop.f32.mrb[0].mxu0
        %4995 = vmatprep.mubr.bf16.mxu0 0
        %4996 = vmatmul.mubr.bf16.gmra.mrb[0].mxu0 %v4867
        %v4997 = vpop.f32.mrb[0].mxu0
        %v4998 = vadd.f32 0.0, %v4997
        %v4999 = vpop.f32.mrb[0].mxu0
        %v5000 = vpop.f32.mrb[0].mxu0
        %v5001 = vadd.f32 0.0, %v5000
        %v5002 = vpop.f32.mrb[0].mxu0
        %5003 = vmatprep.mubr.bf16.mxu0 0
        %5004 = vmatmul.mubr.bf16.gmra.mrb[0].mxu0 %v4870
        %v5005 = vpop.f32.mrb[0].mxu0
        %v5006 = vadd.f32 0.0, %v5005
        %v5007 = vpop.f32.mrb[0].mxu0
        %v5008 = vpop.f32.mrb[0].mxu0
        %v5009 = vadd.f32 0.0, %v5008
        %v5010 = vpop.f32.mrb[0].mxu0
        %5011 = vmatprep.mubr.bf16.mxu0 0
        %5012 = vmatmul.mubr.bf16.gmra.mrb[0].mxu0 %v4873
        %v5013 = vpop.f32.mrb[0].mxu0
        %v5014 = vadd.f32 0.0, %v5013
        %v5015 = vpop.f32.mrb[0].mxu0
        %v5016 = vpop.f32.mrb[0].mxu0
        %v5017 = vadd.f32 0.0, %v5016
        %v5018 = vpop.f32.mrb[0].mxu0
        %5019 = vmatprep.mubr.bf16.mxu0 0
        %5020 = vmatmul.mubr.bf16.gmra.mrb[0].mxu0 %v4876
        %v5021 = vpop.f32.mrb[0].mxu0
        %v5022 = vadd.f32 0.0, %v5021
        %v5023 = vpop.f32.mrb[0].mxu0
        %v5024 = vpop.f32.mrb[0].mxu0
        %v5025 = vadd.f32 0.0, %v5024
        %v5026 = vpop.f32.mrb[0].mxu0
        %5027 = vmatprep.mubr.bf16.mxu0 0
        %5028 = vmatmul.mubr.bf16.gmra.mrb[0].mxu0 %v4879
        %v5029 = vpop.f32.mrb[0].mxu0
        %v5030 = vadd.f32 0.0, %v5029
        %v5031 = vpop.f32.mrb[0].mxu0
        %v5032 = vpop.f32.mrb[0].mxu0
        %v5033 = vadd.f32 0.0, %v5032
        %v5034 = vpop.f32.mrb[0].mxu0
        %5035 = vmatprep.mubr.bf16.mxu0 0
        %5036 = vmatmul.mubr.bf16.gmra.mrb[0].mxu0 %v4882
        %v5037 = vpop.f32.mrb[0].mxu0
        %v5038 = vadd.f32 0.0, %v5037
        %v5039 = vpop.f32.mrb[0].mxu0
        %v5040 = vpop.f32.mrb[0].mxu0
        %v5041 = vadd.f32 0.0, %v5040
        %v5042 = vpop.f32.mrb[0].mxu0
        %5043 = vmatprep.mubr.bf16.mxu0 0
        %5044 = vmatmul.mubr.bf16.gmra.mrb[0].mxu0 %v4885
        %v5045 = vpop.f32.mrb[0].mxu0
        %v5046 = vadd.f32 0.0, %v5045
        %v5047 = vpop.f32.mrb[0].mxu0
        %v5048 = vpop.f32.mrb[0].mxu0
        %v5049 = vadd.f32 0.0, %v5048
        %v5050 = vpop.f32.mrb[0].mxu0
        %5051 = vmatprep.mubr.bf16.mxu0 0
        %5052 = vmatmul.mubr.bf16.gmra.mrb[0].mxu0 %v4888
        %v5053 = vpop.f32.mrb[0].mxu0
        %v5054 = vadd.f32 0.0, %v5053
        %v5055 = vpop.f32.mrb[0].mxu0
        %v5056 = vpop.f32.mrb[0].mxu0
        %v5057 = vadd.f32 0.0, %v5056
        %v5058 = vpop.f32.mrb[0].mxu0
        %5059 = vmatprep.mubr.bf16.mxu0 0
        %5060 = vmatmul.mubr.bf16.gmra.mrb[0].mxu0 %v4891
        %v5061 = vpop.f32.mrb[0].mxu0
        %v5062 = vadd.f32 0.0, %v5061
        %v5063 = vpop.f32.mrb[0].mxu0
        %v5064 = vpop.f32.mrb[0].mxu0
        %v5065 = vadd.f32 0.0, %v5064
        %v5066 = vpop.f32.mrb[0].mxu0
        %5067 = vmatprep.mubr.bf16.mxu0 0
        %5068 = vmatmul.mubr.bf16.gmra.mrb[0].mxu0 %v4894
        %v5069 = vpop.f32.mrb[0].mxu0
        %v5070 = vadd.f32 0.0, %v5069
        %v5071 = vpop.f32.mrb[0].mxu0
        %v5072 = vpop.f32.mrb[0].mxu0
        %v5073 = vadd.f32 0.0, %v5072
        %v5074 = vpop.f32.mrb[0].mxu0
        %5075 = vdwg.mxu0
        %v5076 = vadd.f32 %v4673, %v4934
        %v5077 = vadd.f32 %v4674, %v4937
        %v5078 = vadd.f32 %v4675, %v4942
        %v5079 = vadd.f32 %v4676, %v4945
        %v5080 = vadd.f32 %v4677, %v4950
        %v5081 = vadd.f32 %v4678, %v4953
        %v5082 = vadd.f32 %v4679, %v4958
        %v5083 = vadd.f32 %v4680, %v4961
        %v5084 = vadd.f32 %v4681, %v4966
        %v5085 = vadd.f32 %v4682, %v4969
        %v5086 = vadd.f32 %v4683, %v4974
        %v5087 = vadd.f32 %v4684, %v4977
        %v5088 = vadd.f32 %v4685, %v4982
        %v5089 = vadd.f32 %v4686, %v4985
        %v5090 = vadd.f32 %v4687, %v4990
        %v5091 = vadd.f32 %v4688, %v4993
        %v5092 = vadd.f32 %v4689, %v4998
        %v5093 = vadd.f32 %v4690, %v5001
        %v5094 = vadd.f32 %v4691, %v5006
        %v5095 = vadd.f32 %v4692, %v5009
        %v5096 = vadd.f32 %v4693, %v5014
        %v5097 = vadd.f32 %v4694, %v5017
        %v5098 = vadd.f32 %v4695, %v5022
        %v5099 = vadd.f32 %v4696, %v5025
        %v5100 = vadd.f32 %v4697, %v5030
        %v5101 = vadd.f32 %v4698, %v5033
        %v5102 = vadd.f32 %v4699, %v5038
        %v5103 = vadd.f32 %v4700, %v5041
        %v5104 = vadd.f32 %v4701, %v5046
        %v5105 = vadd.f32 %v4702, %v5049
        %v5106 = vadd.f32 %v4703, %v5054
        %v5107 = vadd.f32 %v4704, %v5057
        %v5108 = vadd.f32 %v4705, %v5062
        %v5109 = vadd.f32 %v4706, %v5065
        %v5110 = vadd.f32 %v4707, %v5070
        %v5111 = vadd.f32 %v4708, %v5073
        %5112 = vst [vmem:[#allocation2] sm:$0xff] %v5076
        %5113 = vst [vmem:[#allocation2 + $0x8] sm:$0xff] %v5077
        %5114 = vst [vmem:[#allocation2 + $0x10] sm:$0xff] %v5078
        %5115 = vst [vmem:[#allocation2 + $0x18] sm:$0xff] %v5079
        %5116 = vst [vmem:[#allocation2 + $0x20] sm:$0xff] %v5080
        %5117 = vst [vmem:[#allocation2 + $0x28] sm:$0xff] %v5081
        %5118 = vst [vmem:[#allocation2 + $0x30] sm:$0xff] %v5082
        %5119 = vst [vmem:[#allocation2 + $0x38] sm:$0xff] %v5083
        %5120 = vst [vmem:[#allocation2 + $0x40] sm:$0xff] %v5084
        %5121 = vst [vmem:[#allocation2 + $0x48] sm:$0xff] %v5085
        %5122 = vst [vmem:[#allocation2 + $0x50] sm:$0xff] %v5086
        %5123 = vst [vmem:[#allocation2 + $0x58] sm:$0xff] %v5087
        %5124 = vst [vmem:[#allocation2 + $0x60] sm:$0xff] %v5088
        %5125 = vst [vmem:[#allocation2 + $0x68] sm:$0xff] %v5089
        %5126 = vst [vmem:[#allocation2 + $0x70] sm:$0xff] %v5090
        %5127 = vst [vmem:[#allocation2 + $0x78] sm:$0xff] %v5091
        %5128 = vst [vmem:[#allocation2 + $0x80] sm:$0xff] %v5092
        %5129 = vst [vmem:[#allocation2 + $0x88] sm:$0xff] %v5093
        %5130 = vst [vmem:[#allocation2 + $0x90] sm:$0xff] %v5094
        %5131 = vst [vmem:[#allocation2 + $0x98] sm:$0xff] %v5095
        %5132 = vst [vmem:[#allocation2 + $0xa0] sm:$0xff] %v5096
        %5133 = vst [vmem:[#allocation2 + $0xa8] sm:$0xff] %v5097
        %5134 = vst [vmem:[#allocation2 + $0xb0] sm:$0xff] %v5098
        %5135 = vst [vmem:[#allocation2 + $0xb8] sm:$0xff] %v5099
        %5136 = vst [vmem:[#allocation2 + $0xc0] sm:$0xff] %v5100
        %5137 = vst [vmem:[#allocation2 + $0xc8] sm:$0xff] %v5101
        %5138 = vst [vmem:[#allocation2 + $0xd0] sm:$0xff] %v5102
        %5139 = vst [vmem:[#allocation2 + $0xd8] sm:$0xff] %v5103
        %5140 = vst [vmem:[#allocation2 + $0xe0] sm:$0xff] %v5104
        %5141 = vst [vmem:[#allocation2 + $0xe8] sm:$0xff] %v5105
        %5142 = vst [vmem:[#allocation2 + $0xf0] sm:$0xff] %v5106
        %5143 = vst [vmem:[#allocation2 + $0xf8] sm:$0xff] %v5107
        %5144 = vst [vmem:[#allocation2 + $0x100] sm:$0xff] %v5108
        %5145 = vst [vmem:[#allocation2 + $0x108] sm:$0xff] %v5109
        %5146 = vst [vmem:[#allocation2 + $0x110] sm:$0xff] %v5110
        %5147 = vst [vmem:[#allocation2 + $0x118] sm:$0xff] %v5111
        %v5148 = vld [vmem:[#allocation2] sm:$0xff]
        %v5149 = vld [vmem:[#allocation2 + $0x8] sm:$0xff]
        %v5150 = vld [vmem:[#allocation2 + $0x10] sm:$0xff]
        %v5151 = vld [vmem:[#allocation2 + $0x18] sm:$0xff]
        %v5152 = vld [vmem:[#allocation2 + $0x20] sm:$0xff]
        %v5153 = vld [vmem:[#allocation2 + $0x28] sm:$0xff]
        %v5154 = vld [vmem:[#allocation2 + $0x30] sm:$0xff]
        %v5155 = vld [vmem:[#allocation2 + $0x38] sm:$0xff]
        %v5156 = vld [vmem:[#allocation2 + $0x40] sm:$0xff]
        %v5157 = vld [vmem:[#allocation2 + $0x48] sm:$0xff]
        %v5158 = vld [vmem:[#allocation2 + $0x50] sm:$0xff]
        %v5159 = vld [vmem:[#allocation2 + $0x58] sm:$0xff]
        %v5160 = vld [vmem:[#allocation2 + $0x60] sm:$0xff]
        %v5161 = vld [vmem:[#allocation2 + $0x68] sm:$0xff]
        %v5162 = vld [vmem:[#allocation2 + $0x70] sm:$0xff]
        %v5163 = vld [vmem:[#allocation2 + $0x78] sm:$0xff]
        %v5164 = vld [vmem:[#allocation2 + $0x80] sm:$0xff]
        %v5165 = vld [vmem:[#allocation2 + $0x88] sm:$0xff]
        %v5166 = vld [vmem:[#allocation2 + $0x90] sm:$0xff]
        %v5167 = vld [vmem:[#allocation2 + $0x98] sm:$0xff]
        %v5168 = vld [vmem:[#allocation2 + $0xa0] sm:$0xff]
        %v5169 = vld [vmem:[#allocation2 + $0xa8] sm:$0xff]
        %v5170 = vld [vmem:[#allocation2 + $0xb0] sm:$0xff]
        %v5171 = vld [vmem:[#allocation2 + $0xb8] sm:$0xff]
        %v5172 = vld [vmem:[#allocation2 + $0xc0] sm:$0xff]
        %v5173 = vld [vmem:[#allocation2 + $0xc8] sm:$0xff]
        %v5174 = vld [vmem:[#allocation2 + $0xd0] sm:$0xff]
        %v5175 = vld [vmem:[#allocation2 + $0xd8] sm:$0xff]
        %v5176 = vld [vmem:[#allocation2 + $0xe0] sm:$0xff]
        %v5177 = vld [vmem:[#allocation2 + $0xe8] sm:$0xff]
        %v5178 = vld [vmem:[#allocation2 + $0xf0] sm:$0xff]
        %v5179 = vld [vmem:[#allocation2 + $0xf8] sm:$0xff]
        %v5180 = vld [vmem:[#allocation2 + $0x100] sm:$0xff]
        %v5181 = vld [vmem:[#allocation2 + $0x108] sm:$0xff]
        %v5182 = vld [vmem:[#allocation2 + $0x110] sm:$0xff]
        %v5183 = vld [vmem:[#allocation2 + $0x118] sm:$0xff]
        %v5184 = vld [vmem:[%s2] sm:$0x1]
        %v5186 = vlaneseq
        %v5187 = vshrl.u32 %v5186, 7
        %v5188 = vsub.s32 0, %v5187
        %v5189 = vrot.slane %v5184, %v5188
        %v5191 = vadd.f32 %v5148, %v5189
        %v5192 = vadd.f32 %v5149, %v5189
        %v5193 = vadd.f32 %v5150, %v5189
        %v5194 = vadd.f32 %v5151, %v5189
        %v5195 = vadd.f32 %v5152, %v5189
        %v5196 = vadd.f32 %v5153, %v5189
        %v5197 = vadd.f32 %v5154, %v5189
        %v5198 = vadd.f32 %v5155, %v5189
        %v5199 = vadd.f32 %v5156, %v5189
        %v5200 = vadd.f32 %v5157, %v5189
        %v5201 = vadd.f32 %v5158, %v5189
        %v5202 = vadd.f32 %v5159, %v5189
        %v5203 = vadd.f32 %v5160, %v5189
        %v5204 = vadd.f32 %v5161, %v5189
        %v5205 = vadd.f32 %v5162, %v5189
        %v5206 = vadd.f32 %v5163, %v5189
        %v5207 = vadd.f32 %v5164, %v5189
        %v5208 = vadd.f32 %v5165, %v5189
        %v5209 = vadd.f32 %v5166, %v5189
        %v5210 = vadd.f32 %v5167, %v5189
        %v5211 = vadd.f32 %v5168, %v5189
        %v5212 = vadd.f32 %v5169, %v5189
        %v5213 = vadd.f32 %v5170, %v5189
        %v5214 = vadd.f32 %v5171, %v5189
        %v5215 = vadd.f32 %v5172, %v5189
        %v5216 = vadd.f32 %v5173, %v5189
        %v5217 = vadd.f32 %v5174, %v5189
        %v5218 = vadd.f32 %v5175, %v5189
        %v5219 = vadd.f32 %v5176, %v5189
        %v5220 = vadd.f32 %v5177, %v5189
        %v5221 = vadd.f32 %v5178, %v5189
        %v5222 = vadd.f32 %v5179, %v5189
        %v5223 = vadd.f32 %v5180, %v5189
        %v5224 = vadd.f32 %v5181, %v5189
        %v5225 = vadd.f32 %v5182, %v5189
        %v5226 = vadd.f32 %v5183, %v5189
        %v5227 = vadd.f32 %v5191, 3.0
        %v5228 = vadd.f32 %v5192, 3.0
        %v5229 = vadd.f32 %v5193, 3.0
        %v5230 = vadd.f32 %v5194, 3.0
        %v5231 = vadd.f32 %v5195, 3.0
        %v5232 = vadd.f32 %v5196, 3.0
        %v5233 = vadd.f32 %v5197, 3.0
        %v5234 = vadd.f32 %v5198, 3.0
        %v5235 = vadd.f32 %v5199, 3.0
        %v5236 = vadd.f32 %v5200, 3.0
        %v5237 = vadd.f32 %v5201, 3.0
        %v5238 = vadd.f32 %v5202, 3.0
        %v5239 = vadd.f32 %v5203, 3.0
        %v5240 = vadd.f32 %v5204, 3.0
        %v5241 = vadd.f32 %v5205, 3.0
        %v5242 = vadd.f32 %v5206, 3.0
        %v5243 = vadd.f32 %v5207, 3.0
        %v5244 = vadd.f32 %v5208, 3.0
        %v5245 = vadd.f32 %v5209, 3.0
        %v5246 = vadd.f32 %v5210, 3.0
        %v5247 = vadd.f32 %v5211, 3.0
        %v5248 = vadd.f32 %v5212, 3.0
        %v5249 = vadd.f32 %v5213, 3.0
        %v5250 = vadd.f32 %v5214, 3.0
        %v5251 = vadd.f32 %v5215, 3.0
        %v5252 = vadd.f32 %v5216, 3.0
        %v5253 = vadd.f32 %v5217, 3.0
        %v5254 = vadd.f32 %v5218, 3.0
        %v5255 = vadd.f32 %v5219, 3.0
        %v5256 = vadd.f32 %v5220, 3.0
        %v5257 = vadd.f32 %v5221, 3.0
        %v5258 = vadd.f32 %v5222, 3.0
        %v5259 = vadd.f32 %v5223, 3.0
        %v5260 = vadd.f32 %v5224, 3.0
        %v5261 = vadd.f32 %v5225, 3.0
        %v5262 = vadd.f32 %v5226, 3.0
        %v5263 = vmax.f32 %v5227, 0.0
        %v5264 = vmax.f32 %v5228, 0.0
        %v5265 = vmax.f32 %v5229, 0.0
        %v5266 = vmax.f32 %v5230, 0.0
        %v5267 = vmax.f32 %v5231, 0.0
        %v5268 = vmax.f32 %v5232, 0.0
        %v5269 = vmax.f32 %v5233, 0.0
        %v5270 = vmax.f32 %v5234, 0.0
        %v5271 = vmax.f32 %v5235, 0.0
        %v5272 = vmax.f32 %v5236, 0.0
        %v5273 = vmax.f32 %v5237, 0.0
        %v5274 = vmax.f32 %v5238, 0.0
        %v5275 = vmax.f32 %v5239, 0.0
        %v5276 = vmax.f32 %v5240, 0.0
        %v5277 = vmax.f32 %v5241, 0.0
        %v5278 = vmax.f32 %v5242, 0.0
        %v5279 = vmax.f32 %v5243, 0.0
        %v5280 = vmax.f32 %v5244, 0.0
        %v5281 = vmax.f32 %v5245, 0.0
        %v5282 = vmax.f32 %v5246, 0.0
        %v5283 = vmax.f32 %v5247, 0.0
        %v5284 = vmax.f32 %v5248, 0.0
        %v5285 = vmax.f32 %v5249, 0.0
        %v5286 = vmax.f32 %v5250, 0.0
        %v5287 = vmax.f32 %v5251, 0.0
        %v5288 = vmax.f32 %v5252, 0.0
        %v5289 = vmax.f32 %v5253, 0.0
        %v5290 = vmax.f32 %v5254, 0.0
        %v5291 = vmax.f32 %v5255, 0.0
        %v5292 = vmax.f32 %v5256, 0.0
        %v5293 = vmax.f32 %v5257, 0.0
        %v5294 = vmax.f32 %v5258, 0.0
        %v5295 = vmax.f32 %v5259, 0.0
        %v5296 = vmax.f32 %v5260, 0.0
        %v5297 = vmax.f32 %v5261, 0.0
        %v5298 = vmax.f32 %v5262, 0.0
        %v5299 = vmin.f32 %v5263, 6.0
        %v5300 = vmin.f32 %v5264, 6.0
        %v5301 = vmin.f32 %v5265, 6.0
        %v5302 = vmin.f32 %v5266, 6.0
        %v5303 = vmin.f32 %v5267, 6.0
        %v5304 = vmin.f32 %v5268, 6.0
        %v5305 = vmin.f32 %v5269, 6.0
        %v5306 = vmin.f32 %v5270, 6.0
        %v5307 = vmin.f32 %v5271, 6.0
        %v5308 = vmin.f32 %v5272, 6.0
        %v5309 = vmin.f32 %v5273, 6.0
        %v5310 = vmin.f32 %v5274, 6.0
        %v5311 = vmin.f32 %v5275, 6.0
        %v5312 = vmin.f32 %v5276, 6.0
        %v5313 = vmin.f32 %v5277, 6.0
        %v5314 = vmin.f32 %v5278, 6.0
        %v5315 = vmin.f32 %v5279, 6.0
        %v5316 = vmin.f32 %v5280, 6.0
        %v5317 = vmin.f32 %v5281, 6.0
        %v5318 = vmin.f32 %v5282, 6.0
        %v5319 = vmin.f32 %v5283, 6.0
        %v5320 = vmin.f32 %v5284, 6.0
        %v5321 = vmin.f32 %v5285, 6.0
        %v5322 = vmin.f32 %v5286, 6.0
        %v5323 = vmin.f32 %v5287, 6.0
        %v5324 = vmin.f32 %v5288, 6.0
        %v5325 = vmin.f32 %v5289, 6.0
        %v5326 = vmin.f32 %v5290, 6.0
        %v5327 = vmin.f32 %v5291, 6.0
        %v5328 = vmin.f32 %v5292, 6.0
        %v5329 = vmin.f32 %v5293, 6.0
        %v5330 = vmin.f32 %v5294, 6.0
        %v5331 = vmin.f32 %v5295, 6.0
        %v5332 = vmin.f32 %v5296, 6.0
        %v5333 = vmin.f32 %v5297, 6.0
        %v5334 = vmin.f32 %v5298, 6.0
        %v5335 = vmul.f32 %v5191, %v5299
        %v5336 = vmul.f32 %v5192, %v5300
        %v5337 = vmul.f32 %v5193, %v5301
        %v5338 = vmul.f32 %v5194, %v5302
        %v5339 = vmul.f32 %v5195, %v5303
        %v5340 = vmul.f32 %v5196, %v5304
        %v5341 = vmul.f32 %v5197, %v5305
        %v5342 = vmul.f32 %v5198, %v5306
        %v5343 = vmul.f32 %v5199, %v5307
        %v5344 = vmul.f32 %v5200, %v5308
        %v5345 = vmul.f32 %v5201, %v5309
        %v5346 = vmul.f32 %v5202, %v5310
        %v5347 = vmul.f32 %v5203, %v5311
        %v5348 = vmul.f32 %v5204, %v5312
        %v5349 = vmul.f32 %v5205, %v5313
        %v5350 = vmul.f32 %v5206, %v5314
        %v5351 = vmul.f32 %v5207, %v5315
        %v5352 = vmul.f32 %v5208, %v5316
        %v5353 = vmul.f32 %v5209, %v5317
        %v5354 = vmul.f32 %v5210, %v5318
        %v5355 = vmul.f32 %v5211, %v5319
        %v5356 = vmul.f32 %v5212, %v5320
        %v5357 = vmul.f32 %v5213, %v5321
        %v5358 = vmul.f32 %v5214, %v5322
        %v5359 = vmul.f32 %v5215, %v5323
        %v5360 = vmul.f32 %v5216, %v5324
        %v5361 = vmul.f32 %v5217, %v5325
        %v5362 = vmul.f32 %v5218, %v5326
        %v5363 = vmul.f32 %v5219, %v5327
        %v5364 = vmul.f32 %v5220, %v5328
        %v5365 = vmul.f32 %v5221, %v5329
        %v5366 = vmul.f32 %v5222, %v5330
        %v5367 = vmul.f32 %v5223, %v5331
        %v5368 = vmul.f32 %v5224, %v5332
        %v5369 = vmul.f32 %v5225, %v5333
        %v5370 = vmul.f32 %v5226, %v5334
        %v5371 = vmul.f32 %v5335, 0.16666667
        %v5372 = vmul.f32 %v5336, 0.16666667
        %v5373 = vmul.f32 %v5337, 0.16666667
        %v5374 = vmul.f32 %v5338, 0.16666667
        %v5375 = vmul.f32 %v5339, 0.16666667
        %v5376 = vmul.f32 %v5340, 0.16666667
        %v5377 = vmul.f32 %v5341, 0.16666667
        %v5378 = vmul.f32 %v5342, 0.16666667
        %v5379 = vmul.f32 %v5343, 0.16666667
        %v5380 = vmul.f32 %v5344, 0.16666667
        %v5381 = vmul.f32 %v5345, 0.16666667
        %v5382 = vmul.f32 %v5346, 0.16666667
        %v5383 = vmul.f32 %v5347, 0.16666667
        %v5384 = vmul.f32 %v5348, 0.16666667
        %v5385 = vmul.f32 %v5349, 0.16666667
        %v5386 = vmul.f32 %v5350, 0.16666667
        %v5387 = vmul.f32 %v5351, 0.16666667
        %v5388 = vmul.f32 %v5352, 0.16666667
        %v5389 = vmul.f32 %v5353, 0.16666667
        %v5390 = vmul.f32 %v5354, 0.16666667
        %v5391 = vmul.f32 %v5355, 0.16666667
        %v5392 = vmul.f32 %v5356, 0.16666667
        %v5393 = vmul.f32 %v5357, 0.16666667
        %v5394 = vmul.f32 %v5358, 0.16666667
        %v5395 = vmul.f32 %v5359, 0.16666667
        %v5396 = vmul.f32 %v5360, 0.16666667
        %v5397 = vmul.f32 %v5361, 0.16666667
        %v5398 = vmul.f32 %v5362, 0.16666667
        %v5399 = vmul.f32 %v5363, 0.16666667
        %v5400 = vmul.f32 %v5364, 0.16666667
        %v5401 = vmul.f32 %v5365, 0.16666667
        %v5402 = vmul.f32 %v5366, 0.16666667
        %v5403 = vmul.f32 %v5367, 0.16666667
        %v5404 = vmul.f32 %v5368, 0.16666667
        %v5405 = vmul.f32 %v5369, 0.16666667
        %v5406 = vmul.f32 %v5370, 0.16666667
        %5407 = vst [vmem:[%s163] sm:$0xff] %v5371
        %5408 = vst [vmem:[%s163 + $0x8] sm:$0xff] %v5372
        %5409 = vst [vmem:[%s163 + $0x10] sm:$0xff] %v5373
        %5410 = vst [vmem:[%s163 + $0x18] sm:$0xff] %v5374
        %5411 = vst [vmem:[%s163 + $0x20] sm:$0xff] %v5375
        %5412 = vst [vmem:[%s163 + $0x28] sm:$0xff] %v5376
        %5413 = vst [vmem:[%s163 + $0x30] sm:$0xff] %v5377
        %5414 = vst [vmem:[%s163 + $0x38] sm:$0xff] %v5378
        %5415 = vst [vmem:[%s163 + $0x40] sm:$0xff] %v5379
        %5416 = vst [vmem:[%s163 + $0x48] sm:$0xff] %v5380
        %5417 = vst [vmem:[%s163 + $0x50] sm:$0xff] %v5381
        %5418 = vst [vmem:[%s163 + $0x58] sm:$0xff] %v5382
        %5419 = vst [vmem:[%s163 + $0x60] sm:$0xff] %v5383
        %5420 = vst [vmem:[%s163 + $0x68] sm:$0xff] %v5384
        %5421 = vst [vmem:[%s163 + $0x70] sm:$0xff] %v5385
        %5422 = vst [vmem:[%s163 + $0x78] sm:$0xff] %v5386
        %5423 = vst [vmem:[%s163 + $0x80] sm:$0xff] %v5387
        %5424 = vst [vmem:[%s163 + $0x88] sm:$0xff] %v5388
        %5425 = vst [vmem:[%s163 + $0x90] sm:$0xff] %v5389
        %5426 = vst [vmem:[%s163 + $0x98] sm:$0xff] %v5390
        %5427 = vst [vmem:[%s163 + $0xa0] sm:$0xff] %v5391
        %5428 = vst [vmem:[%s163 + $0xa8] sm:$0xff] %v5392
        %5429 = vst [vmem:[%s163 + $0xb0] sm:$0xff] %v5393
        %5430 = vst [vmem:[%s163 + $0xb8] sm:$0xff] %v5394
        %5431 = vst [vmem:[%s163 + $0xc0] sm:$0xff] %v5395
        %5432 = vst [vmem:[%s163 + $0xc8] sm:$0xff] %v5396
        %5433 = vst [vmem:[%s163 + $0xd0] sm:$0xff] %v5397
        %5434 = vst [vmem:[%s163 + $0xd8] sm:$0xff] %v5398
        %5435 = vst [vmem:[%s163 + $0xe0] sm:$0xff] %v5399
        %5436 = vst [vmem:[%s163 + $0xe8] sm:$0xff] %v5400
        %5437 = vst [vmem:[%s163 + $0xf0] sm:$0xff] %v5401
        %5438 = vst [vmem:[%s163 + $0xf8] sm:$0xff] %v5402
        %5439 = vst [vmem:[%s163 + $0x100] sm:$0xff] %v5403
        %5440 = vst [vmem:[%s163 + $0x108] sm:$0xff] %v5404
        %5441 = vst [vmem:[%s163 + $0x110] sm:$0xff] %v5405
        %5442 = vst [vmem:[%s163 + $0x118] sm:$0xff] %v5406
        %s5443 = sand.u32 %s93, 1
        %s5444 = scalar_lea.sflag [#allocation4], %s5443
        %s5445 = sand.u32 %s93, 1
        %s5446 = smul.addr %s5445, 288
        %s5447 = scalar_lea.vmem [#allocation3], %s5446
        // Predicated region
        $region33: #{tpu_custom_call.1} parent=31 // pred_check
          %p5448 = pneg %p103
        $region34: #{tpu_custom_call.1} parent=31 // pred_check_branch
          %5450 = sbr.rel (%p5448) target = $region36
        $region35: #{tpu_custom_call.1} parent=31 // pred_region
          %s5452 = ssub.s32 4608, 4608
          %5453 = vsyncadd %s5444, %s5452
          %s5454 = smul.addr %s17, 36
          %s5455 = smul.addr %s5454, 128
          %s5456 = scalar_lea.hbm %s3, %s5455
          %s5457 = sshll.u32 %s5447, 4
          %s5458 = int_to_ptr.vmem [resolvable:$true] %s5457
          %5463 = dma.vmem_to_hbm [thread:$0]  %s5458, 4608, %s5456, %s5444, 128, 128, 8
        $region36: #{tpu_custom_call.1} parent=31 // pred_fallthru
          _
      $region32: #{tpu_custom_call.1} parent=5 // pred_fallthru
        _
      %p5464 = scmp.le.s32.totalorder 2, %s12
      // Predicated region
      $region37: #{tpu_custom_call.1} parent=5 // pred_check
        %p5465 = pneg %p5464
      $region38: #{tpu_custom_call.1} parent=5 // pred_check_branch
        %5467 = sbr.rel (%p5465) target = $region40
      $region39: #{tpu_custom_call.1} parent=5 // pred_region
        %s5468 = ssub.s32 %s12, 2
        // Predicated region
        $region41: #{tpu_custom_call.1} parent=39 // pred_check
          %p5469 = pneg %p109
        $region42: #{tpu_custom_call.1} parent=39 // pred_check_branch
          %5471 = sbr.rel (%p5469) target = $region44
        $region43: #{tpu_custom_call.1} parent=39 // pred_region
          %s5472 = sand.u32 %s94, 1
          %s5473 = scalar_lea.sflag [#allocation4], %s5472
          %s5474 = sand.u32 %s94, 1
          %s5475 = smul.addr %s5474, 288
          %s5476 = scalar_lea.vmem [#allocation3], %s5475
          %5477 = dma.done %s5473, 4608
        $region44: #{tpu_custom_call.1} parent=39 // pred_fallthru
          _
      $region40: #{tpu_custom_call.1} parent=5 // pred_fallthru
        _
    $region6: #{tpu_custom_call.1} parent=1 // loop_footer
      %s16 = sadd.s32 1, %s12
    $region7: #{tpu_custom_call.1} parent=1 // loop_footer_branch
      %11 = sbr.rel target = $region3
    $region8: #{tpu_custom_call.1} parent=1 // loop_exit
      _
    %5478 = vsyncpa [#allocation4], 1
    %s5479 = scalar_lea.sflag [#allocation4], 1
    %5480 = vsyncpa %s5479, 1

</llo_original>
